<compile_context>
chip_gen: v7x
topology: tpu7x:2x2x1
jax: 0.10.0
libtpu: 0.0.40
codegen_flags: <defaults>
</compile_context>

<pallas_src>
import functools
import math

import jax
import jax.numpy as jnp
from jax import lax
from jax.experimental import pallas as pl
from jax.experimental.pallas import tpu as pltpu

_MASK_VALUE = -1e30   # stands in for -inf; diagonal is always unmasked so softmax is safe
_LN_EPS = 1e-5


# ----------------------------------------------------------------------------
# small helpers
# ----------------------------------------------------------------------------
def _round_up(x, m):
    return ((x + m - 1) // m) * m


@functools.lru_cache(maxsize=None)
def _vmem_limit_bytes():
    """~0.75x of physical VMEM (96 MiB on v5e/v6e, 48 MiB on v7x); conservative fallback."""
    cap = None
    try:
        cap = getattr(pltpu.get_tpu_info(), "vmem_capacity_bytes", None)
    except Exception:
        cap = None
    if not cap:
        cap = 64 * 1024 * 1024
    return int(min((cap * 3) // 4, 100 * 1024 * 1024))


def _plan_rows(m, tile_m):
    """Row tiling: prefer a tile (multiple of 8) that divides M exactly -> no pad/slice."""
    if m <= tile_m:
        tm = _round_up(m, 8)
        return tm, tm
    if m % 8 == 0:
        t = (tile_m // 8) * 8
        floor = max(8, ((tile_m // 4) // 8) * 8)
        while t >= floor:
            if m % t == 0:
                return t, m
            t -= 8
    tm = (tile_m // 8) * 8
    return tm, _round_up(m, tm)


def _pick_tile(dim, preferred, align):
    """Largest tile <= preferred that divides dim (multiple of align), else the full dim."""
    if dim <= preferred:
        return dim
    t = (preferred // align) * align
    while t >= align:
        if dim % t == 0:
            return t
        t -= align
    return dim


def _maybe_pad_rows(x2, m_pad):
    m = x2.shape[0]
    if m_pad == m:
        return x2
    return jnp.pad(x2, ((0, m_pad - m), (0, 0)))


def _gelu_exact(x):
    # nn.GELU() default: 0.5 * x * (1 + erf(x / sqrt(2)))
    return 0.5 * x * (1.0 + lax.erf(x * (1.0 / math.sqrt(2.0))))


def _layernorm_f32(x, g, b, eps):
    mu = jnp.mean(x, axis=-1, keepdims=True)
    xc = x - mu
    var = jnp.mean(xc * xc, axis=-1, keepdims=True)
    return xc * lax.rsqrt(var + eps) * g + b


# ----------------------------------------------------------------------------
# kernels
# ----------------------------------------------------------------------------
def _ln_matmul_kernel(x_ref, g_ref, b_ref, w_ref, o_ref, *, eps, compute_dtype):
    """o = LayerNorm(x) @ W   (bias-free linear, bf16 MXU inputs, f32 accumulation)."""
    xn = _layernorm_f32(x_ref[...].astype(jnp.float32), g_ref[...], b_ref[...], eps)
    y = jnp.dot(xn.astype(compute_dtype), w_ref[...], preferred_element_type=jnp.float32)
    o_ref[...] = y.astype(o_ref.dtype)


def _attention_kernel(qkv_ref, xres_ref, wp_ref, o_ref, *, n_head, t_len, compute_dtype):
    """Per-batch-element particle attention (all heads) + output projection + residual."""
    s_len = qkv_ref.shape[1]
    c = xres_ref.shape[-1]
    hd = c // n_head

    qkv = qkv_ref[0]                                               # (S, 3C) bf16

    # time-causal mask generated in-kernel: t_key <= t_query, full across particles
    # (flattened index s = particle * T + time)
    row_t = lax.broadcasted_iota(jnp.int32, (s_len, s_len), 0) % t_len
    col_t = lax.broadcasted_iota(jnp.int32, (s_len, s_len), 1) % t_len
    allowed = col_t <= row_t

    heads = []
    for h in range(n_head):                                        # static unroll (n_head small)
        # 1/sqrt(hd) softmax scale is pre-folded into Wq at prepare_params time.
        qh = qkv[:, h * hd:(h + 1) * hd]                           # (S, hd)
        kh = qkv[:, c + h * hd:c + (h + 1) * hd]
        vh = qkv[:, 2 * c + h * hd:2 * c + (h + 1) * hd]
        s = lax.dot_general(qh, kh, (((1,), (1,)), ((), ())),
                            preferred_element_type=jnp.float32)    # (S, S) = q @ k^T
        s = jnp.where(allowed, s, _MASK_VALUE)
        m = jnp.max(s, axis=-1, keepdims=True)
        p = jnp.exp(s - m)
        denom = jnp.sum(p, axis=-1, keepdims=True)
        p = p * pl.reciprocal(denom, approx=True)                  # EUP reciprocal (free slot)
        # TODO(synk): attn_drop (attn_pdrop=0.1) is identity in eval mode.
        heads.append(jnp.dot(p.astype(compute_dtype), vh,
                             preferred_element_type=jnp.float32))  # (S, hd)

    y = jnp.concatenate(heads, axis=-1).astype(compute_dtype)      # (S, C) head merge
    # fused output projection + residual add (resid_drop is identity in eval mode)
    out = jnp.dot(y, wp_ref[...], preferred_element_type=jnp.float32)
    out = out + xres_ref[0].astype(jnp.float32)
    o_ref[0] = out.astype(o_ref.dtype)                             # lane-dense (S, C) store


def _ln_mlp_kernel(x_ref, g_ref, b_ref, w1_ref, b1_ref, w2_ref, b2_ref, o_ref,
                   acc_ref, xn_ref, *, eps, compute_dtype):
    """o = x + proj(gelu(fc_1(LayerNorm(x))));  hidden dim tiled on grid axis 1."""
    j = pl.program_id(1)

    @pl.when(j == 0)
    def _():
        xn = _layernorm_f32(x_ref[...].astype(jnp.float32), g_ref[...], b_ref[...], eps)
        xn_ref[...] = xn.astype(compute_dtype)
        acc_ref[...] = jnp.zeros_like(acc_ref)

    h = jnp.dot(xn_ref[...], w1_ref[...], preferred_element_type=jnp.float32) + b1_ref[...]
    h = _gelu_exact(h)                                             # f32 GELU on (tm, th) slab
    acc_ref[...] += jnp.dot(h.astype(compute_dtype), w2_ref[...],
                            preferred_element_type=jnp.float32)

    @pl.when(j == pl.num_programs(1) - 1)
    def _():
        # TODO(synk): resid dropout (resid_pdrop=0.1) is identity in eval mode.
        out = acc_ref[...] + b2_ref[...] + x_ref[...].astype(jnp.float32)
        o_ref[...] = out.astype(o_ref.dtype)


# ----------------------------------------------------------------------------
# wrappers
# ----------------------------------------------------------------------------
def ln_matmul_forward(x2, gamma, beta, w, *, out_dtype, compute_dtype, tile_m,
                      eps=_LN_EPS):
    """(M, Cin) -> (M, Cout): fused LayerNorm + bias-free linear."""
    m, cin = x2.shape
    cout = w.shape[1]
    tm, m_pad = _plan_rows(m, tile_m)
    x2 = _maybe_pad_rows(x2, m_pad)

    cost = pl.CostEstimate(
        flops=int(2 * m_pad * cin * cout),
        transcendentals=0,
        bytes_accessed=int(m_pad * cin * 4 + cin * cout * 2 + m_pad * cout * 4))

    out = pl.pallas_call(
        functools.partial(_ln_matmul_kernel, eps=eps, compute_dtype=compute_dtype),
        out_shape=jax.ShapeDtypeStruct((m_pad, cout), out_dtype),
        grid_spec=pltpu.PrefetchScalarGridSpec(
            num_scalar_prefetch=0,
            grid=(m_pad // tm,),
            in_specs=[
                pl.BlockSpec((tm, cin), lambda i: (i, 0)),
                pl.BlockSpec((1, cin), lambda i: (0, 0)),
                pl.BlockSpec((1, cin), lambda i: (0, 0)),
                pl.BlockSpec((cin, cout), lambda i: (0, 0)),
            ],
            out_specs=pl.BlockSpec((tm, cout), lambda i: (i, 0)),
        ),
        compiler_params=pltpu.CompilerParams(
            dimension_semantics=("parallel",),
            vmem_limit_bytes=_vmem_limit_bytes()),
        cost_estimate=cost,
    )(x2, gamma, beta, w)
    return out if m_pad == m else out[:m]


def attention_residual_forward(qkv, x_res, wp, *, n_head, t_len, compute_dtype):
    """qkv: (B, S, 3C) bf16; x_res: (B, S, C).  Returns x_res + proj(attn)."""
    b, s, _ = qkv.shape
    c = x_res.shape[-1]

    cost = pl.CostEstimate(
        flops=int(b * (4 * s * s * c + 2 * s * c * c)),
        transcendentals=int(b * n_head * s * s),
        bytes_accessed=int(qkv.size * qkv.dtype.itemsize
                           + 2 * x_res.size * x_res.dtype.itemsize
                           + b * wp.size * wp.dtype.itemsize))

    return pl.pallas_call(
        functools.partial(_attention_kernel, n_head=n_head, t_len=t_len,
                          compute_dtype=compute_dtype),
        out_shape=jax.ShapeDtypeStruct((b, s, c), x_res.dtype),
        grid_spec=pltpu.PrefetchScalarGridSpec(
            num_scalar_prefetch=0,
            grid=(b,),
            in_specs=[
                pl.BlockSpec((1, s, 3 * c), lambda i: (i, 0, 0)),
                pl.BlockSpec((1, s, c), lambda i: (i, 0, 0)),
                pl.BlockSpec((c, c), lambda i: (0, 0)),
            ],
            out_specs=pl.BlockSpec((1, s, c), lambda i: (i, 0, 0)),
        ),
        compiler_params=pltpu.CompilerParams(
            dimension_semantics=("parallel",),
            vmem_limit_bytes=_vmem_limit_bytes()),
        cost_estimate=cost,
    )(qkv, x_res, wp)


def ln_mlp_residual_forward(x2, gamma, beta, w1, b1, w2, b2, *, compute_dtype,
                            tile_m, tile_h, eps=_LN_EPS):
    """(M, E) -> (M, E): x + proj(gelu(fc_1(LayerNorm(x))))."""
    m, e = x2.shape
    h_dim = w1.shape[1]
    tm, m_pad = _plan_rows(m, tile_m)
    x2 = _maybe_pad_rows(x2, m_pad)
    th = _pick_tile(h_dim, tile_h, 128)
    grid_m, grid_h = m_pad // tm, h_dim // th

    cost = pl.CostEstimate(
        flops=int(4 * m_pad * e * h_dim + 2 * m_pad * e),
        transcendentals=int(m_pad * h_dim),
        bytes_accessed=int(2 * m_pad * e * 4 + 2 * e * h_dim * 2 + h_dim * 4 + e * 4))

    out = pl.pallas_call(
        functools.partial(_ln_mlp_kernel, eps=eps, compute_dtype=compute_dtype),
        out_shape=jax.ShapeDtypeStruct((m_pad, e), x2.dtype),
        grid_spec=pltpu.PrefetchScalarGridSpec(
            num_scalar_prefetch=0,
            grid=(grid_m, grid_h),                        # hidden (reduction) axis last
            in_specs=[
                pl.BlockSpec((tm, e), lambda i, j: (i, 0)),
                pl.BlockSpec((1, e), lambda i, j: (0, 0)),
                pl.BlockSpec((1, e), lambda i, j: (0, 0)),
                pl.BlockSpec((e, th), lambda i, j: (0, j)),
                pl.BlockSpec((1, th), lambda i, j: (0, j)),
                pl.BlockSpec((th, e), lambda i, j: (j, 0)),
                pl.BlockSpec((1, e), lambda i, j: (0, 0)),
            ],
            out_specs=pl.BlockSpec((tm, e), lambda i, j: (i, 0)),
            scratch_shapes=[pltpu.VMEM((tm, e), jnp.float32),
                            pltpu.VMEM((tm, e), compute_dtype)],
        ),
        compiler_params=pltpu.CompilerParams(
            dimension_semantics=("parallel", "arbitrary"),
            vmem_limit_bytes=_vmem_limit_bytes()),
        cost_estimate=cost,
    )(x2, gamma, beta, w1, b1, w2, b2)
    return out if m_pad == m else out[:m]


def particle_transformer_forward(x, params, *, n_head, output_dim,
                                 compute_dtype=jnp.bfloat16, tile_m=256, tile_h=512):
    b, n, t, c = x.shape
    s = n * t
    pos = params["pos_emb"]
    assert t <= pos.shape[1], "block size exhausted"
    # positional_bias=False path: learned absolute positional embedding (broadcast add)
    # TODO(synk): positional_bias=True path (SimpleRelativePositionalBias) not implemented.
    x = x + pos[:, None, :t, :].astype(x.dtype)
    x = x.reshape(b, s, c)                                # free (contiguous) reshape

    for blk in params["blocks"]:
        # ln1 -> fused QKV projection (single (E, 3E) matmul, 1/sqrt(hd) folded into Wq)
        qkv = ln_matmul_forward(x.reshape(b * s, c), blk["ln1_g"], blk["ln1_b"],
                                blk["w_qkv"], out_dtype=compute_dtype,
                                compute_dtype=compute_dtype, tile_m=tile_m)
        # attention + output projection + residual, all fused; heads split/merged in-kernel
        x = attention_residual_forward(qkv.reshape(b, s, 3 * c), x, blk["wp"],
                                       n_head=n_head, t_len=t,
                                       compute_dtype=compute_dtype)
        # ln2 -> MLP -> residual, fused
        x = ln_mlp_residual_forward(x.reshape(b * s, c), blk["ln2_g"], blk["ln2_b"],
                                    blk["w1"], blk["b1"], blk["w2"], blk["b2"],
                                    compute_dtype=compute_dtype,
                                    tile_m=tile_m, tile_h=tile_h).reshape(b, s, c)

    # ln_f -> head (weight zero-padded to a 128-lane output; slice afterwards)
    logits = ln_matmul_forward(x.reshape(b * s, c), params["lnf_g"], params["lnf_b"],
                               params["head_w"], out_dtype=x.dtype,
                               compute_dtype=compute_dtype, tile_m=tile_m)
    return logits.reshape(b, n, t, -1)[..., :output_dim]


# ----------------------------------------------------------------------------
# parameters
# ----------------------------------------------------------------------------
def init_params(key, n_embed, n_head, n_layer, block_size, output_dim,
                hidden_dim_multiplier=4, dtype=jnp.float32):
    """PyTorch _init_weights: Linear ~ N(0, 0.02), biases 0, LN weight 1 / bias 0,
    pos_emb ~ N(0, 0.02).  Linear weights stored pre-transposed as (in, out)."""
    std = 0.02
    hidden = hidden_dim_multiplier * n_embed

    def normal(k, shape):
        return std * jax.random.normal(k, shape, dtype)

    keys = jax.random.split(key, 2 + n_layer)
    params = {
        "pos_emb": normal(keys[0], (1, block_size, n_embed)),
        "head_w": normal(keys[1], (n_embed, output_dim)),
        "lnf_g": jnp.ones((n_embed,), dtype),
        "lnf_b": jnp.zeros((n_embed,), dtype),
        "blocks": [],
    }
    for layer in range(n_layer):
        ks = jax.random.split(keys[2 + layer], 6)
        params["blocks"].append({
            "ln1_g": jnp.ones((n_embed,), dtype), "ln1_b": jnp.zeros((n_embed,), dtype),
            "wq": normal(ks[0], (n_embed, n_embed)),
            "wk": normal(ks[1], (n_embed, n_embed)),
            "wv": normal(ks[2], (n_embed, n_embed)),
            "wp": normal(ks[3], (n_embed, n_embed)),
            "ln2_g": jnp.ones((n_embed,), dtype), "ln2_b": jnp.zeros((n_embed,), dtype),
            "w1": normal(ks[4], (n_embed, hidden)), "b1": jnp.zeros((hidden,), dtype),
            "w2": normal(ks[5], (hidden, n_embed)), "b2": jnp.zeros((n_embed,), dtype),
        })
    return params


def prepare_params(raw, *, n_head, compute_dtype=jnp.bfloat16):
    """One-time prep: bf16 weight casts, QKV concat (softmax scale folded into Wq),
    LN params reshaped to (1, E) f32, head weight zero-padded to 128 output lanes."""
    e = raw["lnf_g"].shape[0]
    hd = e // n_head
    scale = 1.0 / math.sqrt(hd)
    out_dim = raw["head_w"].shape[1]
    cout_pad = _round_up(out_dim, 128)
    head_w = jnp.pad(raw["head_w"].astype(jnp.float32), ((0, 0), (0, cout_pad - out_dim)))

    p = {
        "pos_emb": raw["pos_emb"].astype(jnp.float32),
        "lnf_g": raw["lnf_g"].astype(jnp.float32).reshape(1, e),
        "lnf_b": raw["lnf_b"].astype(jnp.float32).reshape(1, e),
        "head_w": head_w.astype(compute_dtype),
        "blocks": [],
    }
    for blk in raw["blocks"]:
        h_dim = blk["w1"].shape[1]
        p["blocks"].append({
            "ln1_g": blk["ln1_g"].astype(jnp.float32).reshape(1, e),
            "ln1_b": blk["ln1_b"].astype(jnp.float32).reshape(1, e),
            "w_qkv": jnp.concatenate(
                [blk["wq"].astype(jnp.float32) * scale,
                 blk["wk"].astype(jnp.float32),
                 blk["wv"].astype(jnp.float32)], axis=1).astype(compute_dtype),
            "wp": blk["wp"].astype(compute_dtype),
            "ln2_g": blk["ln2_g"].astype(jnp.float32).reshape(1, e),
            "ln2_b": blk["ln2_b"].astype(jnp.float32).reshape(1, e),
            "w1": blk["w1"].astype(compute_dtype),
            "b1": blk["b1"].astype(jnp.float32).reshape(1, h_dim),
            "w2": blk["w2"].astype(compute_dtype),
            "b2": blk["b2"].astype(jnp.float32).reshape(1, e),
        })
    return p


# ----------------------------------------------------------------------------
# pure-JAX f32 reference (exact module semantics, eval mode)
# ----------------------------------------------------------------------------
def reference_forward(x, params, *, n_head, eps=_LN_EPS):
    def ln(v, g, b):
        mu = v.mean(-1, keepdims=True)
        var = ((v - mu) ** 2).mean(-1, keepdims=True)
        return (v - mu) / jnp.sqrt(var + eps) * g + b

    b, n, t, c = x.shape
    s, hd = n * t, c // n_head
    x = x + params["pos_emb"][:, None, :t, :]
    t_idx = jnp.tile(jnp.arange(t), n)
    allowed = t_idx[None, :] <= t_idx[:, None]

    for blk in params["blocks"]:
        h = ln(x, blk["ln1_g"], blk["ln1_b"]).reshape(b, s, c)
        q = jnp.transpose((h @ blk["wq"]).reshape(b, s, n_head, hd), (0, 2, 1, 3))
        k = jnp.transpose((h @ blk["wk"]).reshape(b, s, n_head, hd), (0, 2, 1, 3))
        v = jnp.transpose((h @ blk["wv"]).reshape(b, s, n_head, hd), (0, 2, 1, 3))
        att = (q @ jnp.swapaxes(k, -1, -2)) / math.sqrt(hd)
        att = jnp.where(allowed[None, None], att, -jnp.inf)
        att = jax.nn.softmax(att, axis=-1)
        y = jnp.transpose(att @ v, (0, 2, 1, 3)).reshape(b, s, c) @ blk["wp"]
        x = x + y.reshape(b, n, t, c)

        h = ln(x, blk["ln2_g"], blk["ln2_b"]).reshape(-1, c)
        hh = _gelu_exact(h @ blk["w1"] + blk["b1"])
        x = x + (hh @ blk["w2"] + blk["b2"]).reshape(b, n, t, c)

    x = ln(x, params["lnf_g"], params["lnf_b"])
    return x @ params["head_w"]


# ----------------------------------------------------------------------------
if __name__ == "__main__":
    key = jax.random.PRNGKey(0)
    kx, kp = jax.random.split(key)

    batch, n_particles, seq_len = 2, 4, 8
    n_embed, n_head, n_layer = 128, 4, 2        # n_embed=128 -> lane-dense tiles
    block_size, output_dim = 16, 8

    x = jax.random.normal(kx, (batch, n_particles, seq_len, n_embed), jnp.float32)
    raw = init_params(kp, n_embed, n_head, n_layer, block_size, output_dim)
    params = prepare_params(raw, n_head=n_head)

    fwd = jax.jit(functools.partial(particle_transformer_forward,
                                    n_head=n_head, output_dim=output_dim))
    logits = jax.block_until_ready(fwd(x, params))
    assert logits.shape == (batch, n_particles, seq_len, output_dim)

    ref = reference_forward(x, raw, n_head=n_head)
    max_err = float(jnp.max(jnp.abs(logits - ref)))
    # bf16 MXU inputs with f32 accumulation (+ approx softmax reciprocal) -> loose tolerance
    assert jnp.allclose(logits, ref, atol=2e-2, rtol=2e-2), \
        f"mismatch vs reference (max abs err {max_err})"

    print("KERNEL_OK")
</pallas_src>

<mosaic_0001>
module attributes {stable_mosaic.version = 11 : i64} {
  func.func @_ln_matmul_kernel(%arg0: i32, %arg1: memref<64x128xf32, #tpu.memory_space<vmem>>, %arg2: memref<1x128xf32, #tpu.memory_space<vmem>>, %arg3: memref<1x128xf32, #tpu.memory_space<vmem>>, %arg4: memref<128x128xbf16, #tpu.memory_space<vmem>>, %arg5: memref<64x128xf32, #tpu.memory_space<vmem>>) attributes {dimension_semantics = [#tpu.dimension_semantics<parallel>], iteration_bounds = array<i64: 1>, scalar_prefetch = 0 : i64, scratch_operands = 0 : i64, tpu.core_type = #tpu.core_type<tc>, window_params = [{transform_indices = @transform_0, window_bounds = array<i64: 64, 128>}, {pipeline_mode = #tpu.pipeline_mode<synchronous>, transform_indices = @transform_1, window_bounds = array<i64: 1, 128>}, {pipeline_mode = #tpu.pipeline_mode<synchronous>, transform_indices = @transform_2, window_bounds = array<i64: 1, 128>}, {pipeline_mode = #tpu.pipeline_mode<synchronous>, transform_indices = @transform_3, window_bounds = array<i64: 128, 128>}, {transform_indices = @transform_4, window_bounds = array<i64: 64, 128>}]} {
    %c0 = arith.constant 0 : index
    %c0_0 = arith.constant 0 : index
    %0 = vector.load %arg1[%c0, %c0_0] : memref<64x128xf32, #tpu.memory_space<vmem>>, vector<64x128xf32>
    %c0_1 = arith.constant 0 : index
    %c0_2 = arith.constant 0 : index
    %1 = vector.load %arg2[%c0_1, %c0_2] : memref<1x128xf32, #tpu.memory_space<vmem>>, vector<1x128xf32>
    %c0_3 = arith.constant 0 : index
    %c0_4 = arith.constant 0 : index
    %2 = vector.load %arg3[%c0_3, %c0_4] : memref<1x128xf32, #tpu.memory_space<vmem>>, vector<1x128xf32>
    %cst = arith.constant dense<0.000000e+00> : vector<64xf32>
    %3 = vector.multi_reduction <add>, %0, %cst [1] : vector<64x128xf32> to vector<64xf32>
    %4 = vector.shape_cast %3 : vector<64xf32> to vector<64x1xf32>
    %cst_5 = arith.constant 1.280000e+02 : f32
    %5 = vector.broadcast %cst_5 : f32 to vector<64x1xf32>
    %6 = arith.divf %4, %5 : vector<64x1xf32>
    %7 = vector.broadcast %6 : vector<64x1xf32> to vector<64x128xf32>
    %8 = arith.subf %0, %7 : vector<64x128xf32>
    %9 = arith.mulf %8, %8 : vector<64x128xf32>
    %cst_6 = arith.constant dense<0.000000e+00> : vector<64xf32>
    %10 = vector.multi_reduction <add>, %9, %cst_6 [1] : vector<64x128xf32> to vector<64xf32>
    %11 = vector.shape_cast %10 : vector<64xf32> to vector<64x1xf32>
    %cst_7 = arith.constant 1.280000e+02 : f32
    %12 = vector.broadcast %cst_7 : f32 to vector<64x1xf32>
    %13 = arith.divf %11, %12 : vector<64x1xf32>
    %cst_8 = arith.constant 9.99999974E-6 : f32
    %14 = vector.broadcast %cst_8 : f32 to vector<64x1xf32>
    %15 = arith.addf %13, %14 : vector<64x1xf32>
    %16 = math.rsqrt %15 : vector<64x1xf32>
    %17 = vector.broadcast %16 : vector<64x1xf32> to vector<64x128xf32>
    %18 = arith.mulf %8, %17 : vector<64x128xf32>
    %19 = vector.broadcast %1 : vector<1x128xf32> to vector<64x128xf32>
    %20 = arith.mulf %18, %19 : vector<64x128xf32>
    %21 = vector.broadcast %2 : vector<1x128xf32> to vector<64x128xf32>
    %22 = arith.addf %20, %21 : vector<64x128xf32>
    %23 = arith.truncf %22 : vector<64x128xf32> to vector<64x128xbf16>
    %c0_9 = arith.constant 0 : index
    %c0_10 = arith.constant 0 : index
    %24 = vector.load %arg4[%c0_9, %c0_10] : memref<128x128xbf16, #tpu.memory_space<vmem>>, vector<128x128xbf16>
    %cst_11 = arith.constant dense<0.000000e+00> : vector<64x128xf32>
    %25 = tpu.matmul %23, %24, %cst_11 {dimension_numbers = #tpu.dot_dimension_numbers<[1], [0], [0], [1], [0, 0, 1, 1], [], []>} : vector<64x128xbf16>, vector<128x128xbf16>, vector<64x128xf32> -> vector<64x128xf32>
    %c0_12 = arith.constant 0 : index
    %c0_13 = arith.constant 0 : index
    %26 = vector.load %arg5[%c0_12, %c0_13] : memref<64x128xf32, #tpu.memory_space<vmem>>, vector<64x128xf32>
    tpu.vector_store %arg5[%c0_12, %c0_13], %25 {strides = array<i32>} : memref<64x128xf32, #tpu.memory_space<vmem>>, vector<64x128xf32>,
    return
  }
  func.func @transform_0(%arg0: i32) -> (i32, i32) {
    %c0_i32 = arith.constant 0 : i32
    %c0_i32_0 = arith.constant 0 : i32
    return %arg0, %c0_i32 : i32, i32
  }
  func.func @transform_1(%arg0: i32) -> (i32, i32) {
    %c0_i32 = arith.constant 0 : i32
    %c0_i32_0 = arith.constant 0 : i32
    %c0_i32_1 = arith.constant 0 : i32
    return %c0_i32, %c0_i32_0 : i32, i32
  }
  func.func @transform_2(%arg0: i32) -> (i32, i32) {
    %c0_i32 = arith.constant 0 : i32
    %c0_i32_0 = arith.constant 0 : i32
    %c0_i32_1 = arith.constant 0 : i32
    return %c0_i32, %c0_i32_0 : i32, i32
  }
  func.func @transform_3(%arg0: i32) -> (i32, i32) {
    %c0_i32 = arith.constant 0 : i32
    %c0_i32_0 = arith.constant 0 : i32
    %c0_i32_1 = arith.constant 0 : i32
    return %c0_i32, %c0_i32_0 : i32, i32
  }
  func.func @transform_4(%arg0: i32) -> (i32, i32) {
    %c0_i32 = arith.constant 0 : i32
    %c0_i32_0 = arith.constant 0 : i32
    return %arg0, %c0_i32 : i32, i32
  }
}

module attributes {stable_mosaic.version = 11 : i64} {
  func.func @_ln_matmul_kernel(%arg0: i32, %arg1: memref<64x128xf32, #tpu.memory_space<vmem>>, %arg2: memref<1x128xf32, #tpu.memory_space<vmem>>, %arg3: memref<1x128xf32, #tpu.memory_space<vmem>>, %arg4: memref<128x384xbf16, #tpu.memory_space<vmem>>, %arg5: memref<64x384xbf16, #tpu.memory_space<vmem>>) attributes {dimension_semantics = [#tpu.dimension_semantics<parallel>], iteration_bounds = array<i64: 1>, scalar_prefetch = 0 : i64, scratch_operands = 0 : i64, tpu.core_type = #tpu.core_type<tc>, window_params = [{transform_indices = @transform_0, window_bounds = array<i64: 64, 128>}, {pipeline_mode = #tpu.pipeline_mode<synchronous>, transform_indices = @transform_1, window_bounds = array<i64: 1, 128>}, {pipeline_mode = #tpu.pipeline_mode<synchronous>, transform_indices = @transform_2, window_bounds = array<i64: 1, 128>}, {pipeline_mode = #tpu.pipeline_mode<synchronous>, transform_indices = @transform_3, window_bounds = array<i64: 128, 384>}, {transform_indices = @transform_4, window_bounds = array<i64: 64, 384>}]} {
    %c0 = arith.constant 0 : index
    %c0_0 = arith.constant 0 : index
    %0 = vector.load %arg1[%c0, %c0_0] : memref<64x128xf32, #tpu.memory_space<vmem>>, vector<64x128xf32>
    %c0_1 = arith.constant 0 : index
    %c0_2 = arith.constant 0 : index
    %1 = vector.load %arg2[%c0_1, %c0_2] : memref<1x128xf32, #tpu.memory_space<vmem>>, vector<1x128xf32>
    %c0_3 = arith.constant 0 : index
    %c0_4 = arith.constant 0 : index
    %2 = vector.load %arg3[%c0_3, %c0_4] : memref<1x128xf32, #tpu.memory_space<vmem>>, vector<1x128xf32>
    %cst = arith.constant dense<0.000000e+00> : vector<64xf32>
    %3 = vector.multi_reduction <add>, %0, %cst [1] : vector<64x128xf32> to vector<64xf32>
    %4 = vector.shape_cast %3 : vector<64xf32> to vector<64x1xf32>
    %cst_5 = arith.constant 1.280000e+02 : f32
    %5 = vector.broadcast %cst_5 : f32 to vector<64x1xf32>
    %6 = arith.divf %4, %5 : vector<64x1xf32>
    %7 = vector.broadcast %6 : vector<64x1xf32> to vector<64x128xf32>
    %8 = arith.subf %0, %7 : vector<64x128xf32>
    %9 = arith.mulf %8, %8 : vector<64x128xf32>
    %cst_6 = arith.constant dense<0.000000e+00> : vector<64xf32>
    %10 = vector.multi_reduction <add>, %9, %cst_6 [1] : vector<64x128xf32> to vector<64xf32>
    %11 = vector.shape_cast %10 : vector<64xf32> to vector<64x1xf32>
    %cst_7 = arith.constant 1.280000e+02 : f32
    %12 = vector.broadcast %cst_7 : f32 to vector<64x1xf32>
    %13 = arith.divf %11, %12 : vector<64x1xf32>
    %cst_8 = arith.constant 9.99999974E-6 : f32
    %14 = vector.broadcast %cst_8 : f32 to vector<64x1xf32>
    %15 = arith.addf %13, %14 : vector<64x1xf32>
    %16 = math.rsqrt %15 : vector<64x1xf32>
    %17 = vector.broadcast %16 : vector<64x1xf32> to vector<64x128xf32>
    %18 = arith.mulf %8, %17 : vector<64x128xf32>
    %19 = vector.broadcast %1 : vector<1x128xf32> to vector<64x128xf32>
    %20 = arith.mulf %18, %19 : vector<64x128xf32>
    %21 = vector.broadcast %2 : vector<1x128xf32> to vector<64x128xf32>
    %22 = arith.addf %20, %21 : vector<64x128xf32>
    %23 = arith.truncf %22 : vector<64x128xf32> to vector<64x128xbf16>
    %c0_9 = arith.constant 0 : index
    %c0_10 = arith.constant 0 : index
    %24 = vector.load %arg4[%c0_9, %c0_10] : memref<128x384xbf16, #tpu.memory_space<vmem>>, vector<128x384xbf16>
    %cst_11 = arith.constant dense<0.000000e+00> : vector<64x384xf32>
    %25 = tpu.matmul %23, %24, %cst_11 {dimension_numbers = #tpu.dot_dimension_numbers<[1], [0], [0], [1], [0, 0, 1, 1], [], []>} : vector<64x128xbf16>, vector<128x384xbf16>, vector<64x384xf32> -> vector<64x384xf32>
    %26 = arith.truncf %25 : vector<64x384xf32> to vector<64x384xbf16>
    %c0_12 = arith.constant 0 : index
    %c0_13 = arith.constant 0 : index
    %27 = vector.load %arg5[%c0_12, %c0_13] : memref<64x384xbf16, #tpu.memory_space<vmem>>, vector<64x384xbf16>
    tpu.vector_store %arg5[%c0_12, %c0_13], %26 {strides = array<i32>} : memref<64x384xbf16, #tpu.memory_space<vmem>>, vector<64x384xbf16>,
    return
  }
  func.func @transform_0(%arg0: i32) -> (i32, i32) {
    %c0_i32 = arith.constant 0 : i32
    %c0_i32_0 = arith.constant 0 : i32
    return %arg0, %c0_i32 : i32, i32
  }
  func.func @transform_1(%arg0: i32) -> (i32, i32) {
    %c0_i32 = arith.constant 0 : i32
    %c0_i32_0 = arith.constant 0 : i32
    %c0_i32_1 = arith.constant 0 : i32
    return %c0_i32, %c0_i32_0 : i32, i32
  }
  func.func @transform_2(%arg0: i32) -> (i32, i32) {
    %c0_i32 = arith.constant 0 : i32
    %c0_i32_0 = arith.constant 0 : i32
    %c0_i32_1 = arith.constant 0 : i32
    return %c0_i32, %c0_i32_0 : i32, i32
  }
  func.func @transform_3(%arg0: i32) -> (i32, i32) {
    %c0_i32 = arith.constant 0 : i32
    %c0_i32_0 = arith.constant 0 : i32
    %c0_i32_1 = arith.constant 0 : i32
    return %c0_i32, %c0_i32_0 : i32, i32
  }
  func.func @transform_4(%arg0: i32) -> (i32, i32) {
    %c0_i32 = arith.constant 0 : i32
    %c0_i32_0 = arith.constant 0 : i32
    return %arg0, %c0_i32 : i32, i32
  }
}

module attributes {stable_mosaic.version = 11 : i64} {
  func.func @_ln_mlp_kernel(%arg0: i32, %arg1: i32, %arg2: memref<64x128xf32, #tpu.memory_space<vmem>>, %arg3: memref<1x128xf32, #tpu.memory_space<vmem>>, %arg4: memref<1x128xf32, #tpu.memory_space<vmem>>, %arg5: memref<128x512xbf16, #tpu.memory_space<vmem>>, %arg6: memref<1x512xf32, #tpu.memory_space<vmem>>, %arg7: memref<512x128xbf16, #tpu.memory_space<vmem>>, %arg8: memref<1x128xf32, #tpu.memory_space<vmem>>, %arg9: memref<64x128xf32, #tpu.memory_space<vmem>>, %arg10: memref<64x128xf32, #tpu.memory_space<vmem>>, %arg11: memref<64x128xbf16, #tpu.memory_space<vmem>>) attributes {dimension_semantics = [#tpu.dimension_semantics<parallel>, #tpu.dimension_semantics<arbitrary>], iteration_bounds = array<i64: 1, 1>, scalar_prefetch = 0 : i64, scratch_operands = 2 : i64, tpu.core_type = #tpu.core_type<tc>, window_params = [{transform_indices = @transform_0, window_bounds = array<i64: 64, 128>}, {pipeline_mode = #tpu.pipeline_mode<synchronous>, transform_indices = @transform_1, window_bounds = array<i64: 1, 128>}, {pipeline_mode = #tpu.pipeline_mode<synchronous>, transform_indices = @transform_2, window_bounds = array<i64: 1, 128>}, {transform_indices = @transform_3, window_bounds = array<i64: 128, 512>}, {transform_indices = @transform_4, window_bounds = array<i64: 1, 512>}, {transform_indices = @transform_5, window_bounds = array<i64: 512, 128>}, {pipeline_mode = #tpu.pipeline_mode<synchronous>, transform_indices = @transform_6, window_bounds = array<i64: 1, 128>}, {transform_indices = @transform_7, window_bounds = array<i64: 64, 128>}]} {
    %c0_i32 = arith.constant 0 : i32
    %0 = arith.cmpi eq, %arg1, %c0_i32 : i32
    %1 = arith.extui %0 : i1 to i32
    %c0_i32_0 = arith.constant 0 : i32
    %2 = arith.cmpi ne, %1, %c0_i32_0 : i32
    scf.if %2 {
      %c0_18 = arith.constant 0 : index
      %c0_19 = arith.constant 0 : index
      %26 = vector.load %arg2[%c0_18, %c0_19] : memref<64x128xf32, #tpu.memory_space<vmem>>, vector<64x128xf32>
      %c0_20 = arith.constant 0 : index
      %c0_21 = arith.constant 0 : index
      %27 = vector.load %arg3[%c0_20, %c0_21] : memref<1x128xf32, #tpu.memory_space<vmem>>, vector<1x128xf32>
      %c0_22 = arith.constant 0 : index
      %c0_23 = arith.constant 0 : index
      %28 = vector.load %arg4[%c0_22, %c0_23] : memref<1x128xf32, #tpu.memory_space<vmem>>, vector<1x128xf32>
      %cst_24 = arith.constant dense<0.000000e+00> : vector<64xf32>
      %29 = vector.multi_reduction <add>, %26, %cst_24 [1] : vector<64x128xf32> to vector<64xf32>
      %30 = vector.shape_cast %29 : vector<64xf32> to vector<64x1xf32>
      %cst_25 = arith.constant 1.280000e+02 : f32
      %31 = vector.broadcast %cst_25 : f32 to vector<64x1xf32>
      %32 = arith.divf %30, %31 : vector<64x1xf32>
      %33 = vector.broadcast %32 : vector<64x1xf32> to vector<64x128xf32>
      %34 = arith.subf %26, %33 : vector<64x128xf32>
      %35 = arith.mulf %34, %34 : vector<64x128xf32>
      %cst_26 = arith.constant dense<0.000000e+00> : vector<64xf32>
      %36 = vector.multi_reduction <add>, %35, %cst_26 [1] : vector<64x128xf32> to vector<64xf32>
      %37 = vector.shape_cast %36 : vector<64xf32> to vector<64x1xf32>
      %cst_27 = arith.constant 1.280000e+02 : f32
      %38 = vector.broadcast %cst_27 : f32 to vector<64x1xf32>
      %39 = arith.divf %37, %38 : vector<64x1xf32>
      %cst_28 = arith.constant 9.99999974E-6 : f32
      %40 = vector.broadcast %cst_28 : f32 to vector<64x1xf32>
      %41 = arith.addf %39, %40 : vector<64x1xf32>
      %42 = math.rsqrt %41 : vector<64x1xf32>
      %43 = vector.broadcast %42 : vector<64x1xf32> to vector<64x128xf32>
      %44 = arith.mulf %34, %43 : vector<64x128xf32>
      %45 = vector.broadcast %27 : vector<1x128xf32> to vector<64x128xf32>
      %46 = arith.mulf %44, %45 : vector<64x128xf32>
      %47 = vector.broadcast %28 : vector<1x128xf32> to vector<64x128xf32>
      %48 = arith.addf %46, %47 : vector<64x128xf32>
      %49 = arith.truncf %48 : vector<64x128xf32> to vector<64x128xbf16>
      %c0_29 = arith.constant 0 : index
      %c0_30 = arith.constant 0 : index
      %50 = vector.load %arg11[%c0_29, %c0_30] : memref<64x128xbf16, #tpu.memory_space<vmem>>, vector<64x128xbf16>
      tpu.vector_store %arg11[%c0_29, %c0_30], %49 {strides = array<i32>} : memref<64x128xbf16, #tpu.memory_space<vmem>>, vector<64x128xbf16>,
      %cst_31 = arith.constant 0.000000e+00 : f32
      %51 = vector.broadcast %cst_31 : f32 to vector<64x128xf32>
      %c0_32 = arith.constant 0 : index
      %c0_33 = arith.constant 0 : index
      %52 = vector.load %arg10[%c0_32, %c0_33] : memref<64x128xf32, #tpu.memory_space<vmem>>, vector<64x128xf32>
      tpu.vector_store %arg10[%c0_32, %c0_33], %51 {strides = array<i32>} : memref<64x128xf32, #tpu.memory_space<vmem>>, vector<64x128xf32>,
    } else {
    }
    %c0 = arith.constant 0 : index
    %c0_1 = arith.constant 0 : index
    %3 = vector.load %arg11[%c0, %c0_1] : memref<64x128xbf16, #tpu.memory_space<vmem>>, vector<64x128xbf16>
    %c0_2 = arith.constant 0 : index
    %c0_3 = arith.constant 0 : index
    %4 = vector.load %arg5[%c0_2, %c0_3] : memref<128x512xbf16, #tpu.memory_space<vmem>>, vector<128x512xbf16>
    %cst = arith.constant dense<0.000000e+00> : vector<64x512xf32>
    %5 = tpu.matmul %3, %4, %cst {dimension_numbers = #tpu.dot_dimension_numbers<[1], [0], [0], [1], [0, 0, 1, 1], [], []>} : vector<64x128xbf16>, vector<128x512xbf16>, vector<64x512xf32> -> vector<64x512xf32>
    %c0_4 = arith.constant 0 : index
    %c0_5 = arith.constant 0 : index
    %6 = vector.load %arg6[%c0_4, %c0_5] : memref<1x512xf32, #tpu.memory_space<vmem>>, vector<1x512xf32>
    %7 = vector.broadcast %6 : vector<1x512xf32> to vector<64x512xf32>
    %8 = arith.addf %5, %7 : vector<64x512xf32>
    %cst_6 = arith.constant 5.000000e-01 : f32
    %9 = vector.broadcast %cst_6 : f32 to vector<64x512xf32>
    %10 = arith.mulf %9, %8 : vector<64x512xf32>
    %cst_7 = arith.constant 0.707106769 : f32
    %11 = vector.broadcast %cst_7 : f32 to vector<64x512xf32>
    %12 = arith.mulf %8, %11 : vector<64x512xf32>
    %13 = math.erf %12 : vector<64x512xf32>
    %cst_8 = arith.constant 1.000000e+00 : f32
    %14 = vector.broadcast %cst_8 : f32 to vector<64x512xf32>
    %15 = arith.addf %14, %13 : vector<64x512xf32>
    %16 = arith.mulf %10, %15 : vector<64x512xf32>
    %c0_9 = arith.constant 0 : index
    %c0_10 = arith.constant 0 : index
    %17 = vector.load %arg10[%c0_9, %c0_10] : memref<64x128xf32, #tpu.memory_space<vmem>>, vector<64x128xf32>
    %18 = arith.truncf %16 : vector<64x512xf32> to vector<64x512xbf16>
    %c0_11 = arith.constant 0 : index
    %c0_12 = arith.constant 0 : index
    %19 = vector.load %arg7[%c0_11, %c0_12] : memref<512x128xbf16, #tpu.memory_space<vmem>>, vector<512x128xbf16>
    %cst_13 = arith.constant dense<0.000000e+00> : vector<64x128xf32>
    %20 = tpu.matmul %18, %19, %cst_13 {dimension_numbers = #tpu.dot_dimension_numbers<[1], [0], [0], [1], [0, 0, 1, 1], [], []>} : vector<64x512xbf16>, vector<512x128xbf16>, vector<64x128xf32> -> vector<64x128xf32>
    %21 = arith.addf %17, %20 : vector<64x128xf32>
    %c0_14 = arith.constant 0 : index
    %c0_15 = arith.constant 0 : index
    %22 = vector.load %arg10[%c0_14, %c0_15] : memref<64x128xf32, #tpu.memory_space<vmem>>, vector<64x128xf32>
    tpu.vector_store %arg10[%c0_14, %c0_15], %21 {strides = array<i32>} : memref<64x128xf32, #tpu.memory_space<vmem>>, vector<64x128xf32>,
    %c0_i32_16 = arith.constant 0 : i32
    %23 = arith.cmpi eq, %arg1, %c0_i32_16 : i32
    %24 = arith.extui %23 : i1 to i32
    %c0_i32_17 = arith.constant 0 : i32
    %25 = arith.cmpi ne, %24, %c0_i32_17 : i32
    scf.if %25 {
      %c0_18 = arith.constant 0 : index
      %c0_19 = arith.constant 0 : index
      %26 = vector.load %arg10[%c0_18, %c0_19] : memref<64x128xf32, #tpu.memory_space<vmem>>, vector<64x128xf32>
      %c0_20 = arith.constant 0 : index
      %c0_21 = arith.constant 0 : index
      %27 = vector.load %arg8[%c0_20, %c0_21] : memref<1x128xf32, #tpu.memory_space<vmem>>, vector<1x128xf32>
      %28 = vector.broadcast %27 : vector<1x128xf32> to vector<64x128xf32>
      %29 = arith.addf %26, %28 : vector<64x128xf32>
      %c0_22 = arith.constant 0 : index
      %c0_23 = arith.constant 0 : index
      %30 = vector.load %arg2[%c0_22, %c0_23] : memref<64x128xf32, #tpu.memory_space<vmem>>, vector<64x128xf32>
      %31 = arith.addf %29, %30 : vector<64x128xf32>
      %c0_24 = arith.constant 0 : index
      %c0_25 = arith.constant 0 : index
      %32 = vector.load %arg9[%c0_24, %c0_25] : memref<64x128xf32, #tpu.memory_space<vmem>>, vector<64x128xf32>
      tpu.vector_store %arg9[%c0_24, %c0_25], %31 {strides = array<i32>} : memref<64x128xf32, #tpu.memory_space<vmem>>, vector<64x128xf32>,
    } else {
    }
    return
  }
  func.func @transform_0(%arg0: i32, %arg1: i32) -> (i32, i32) {
    %c0_i32 = arith.constant 0 : i32
    %c0_i32_0 = arith.constant 0 : i32
    return %arg0, %c0_i32 : i32, i32
  }
  func.func @transform_1(%arg0: i32, %arg1: i32) -> (i32, i32) {
    %c0_i32 = arith.constant 0 : i32
    %c0_i32_0 = arith.constant 0 : i32
    %c0_i32_1 = arith.constant 0 : i32
    return %c0_i32, %c0_i32_0 : i32, i32
  }
  func.func @transform_2(%arg0: i32, %arg1: i32) -> (i32, i32) {
    %c0_i32 = arith.constant 0 : i32
    %c0_i32_0 = arith.constant 0 : i32
    %c0_i32_1 = arith.constant 0 : i32
    return %c0_i32, %c0_i32_0 : i32, i32
  }
  func.func @transform_3(%arg0: i32, %arg1: i32) -> (i32, i32) {
    %c0_i32 = arith.constant 0 : i32
    %c0_i32_0 = arith.constant 0 : i32
    return %c0_i32, %arg1 : i32, i32
  }
  func.func @transform_4(%arg0: i32, %arg1: i32) -> (i32, i32) {
    %c0_i32 = arith.constant 0 : i32
    %c0_i32_0 = arith.constant 0 : i32
    return %c0_i32, %arg1 : i32, i32
  }
  func.func @transform_5(%arg0: i32, %arg1: i32) -> (i32, i32) {
    %c0_i32 = arith.constant 0 : i32
    %c0_i32_0 = arith.constant 0 : i32
    return %arg1, %c0_i32 : i32, i32
  }
  func.func @transform_6(%arg0: i32, %arg1: i32) -> (i32, i32) {
    %c0_i32 = arith.constant 0 : i32
    %c0_i32_0 = arith.constant 0 : i32
    %c0_i32_1 = arith.constant 0 : i32
    return %c0_i32, %c0_i32_0 : i32, i32
  }
  func.func @transform_7(%arg0: i32, %arg1: i32) -> (i32, i32) {
    %c0_i32 = arith.constant 0 : i32
    %c0_i32_0 = arith.constant 0 : i32
    return %arg0, %c0_i32 : i32, i32
  }
}

module attributes {stable_mosaic.version = 11 : i64} {
  func.func @_attention_kernel(%arg0: i32, %arg1: memref<1x32x384xbf16, #tpu.memory_space<vmem>>, %arg2: memref<1x32x128xf32, #tpu.memory_space<vmem>>, %arg3: memref<128x128xbf16, #tpu.memory_space<vmem>>, %arg4: memref<1x32x128xf32, #tpu.memory_space<vmem>>) attributes {dimension_semantics = [#tpu.dimension_semantics<parallel>], iteration_bounds = array<i64: 2>, scalar_prefetch = 0 : i64, scratch_operands = 0 : i64, tpu.core_type = #tpu.core_type<tc>, window_params = [{transform_indices = @transform_0, window_bounds = array<i64: 1, 32, 384>}, {transform_indices = @transform_1, window_bounds = array<i64: 1, 32, 128>}, {pipeline_mode = #tpu.pipeline_mode<synchronous>, transform_indices = @transform_2, window_bounds = array<i64: 128, 128>}, {transform_indices = @transform_3, window_bounds = array<i64: 1, 32, 128>}]} {
    %c0 = arith.constant 0 : index
    %c0_0 = arith.constant 0 : index
    %c0_1 = arith.constant 0 : index
    %0 = vector.load %arg1[%c0, %c0_0, %c0_1] : memref<1x32x384xbf16, #tpu.memory_space<vmem>>, vector<1x32x384xbf16>
    %1 = vector.shape_cast %0 : vector<1x32x384xbf16> to vector<32x384xbf16>
    %2 = tpu.iota {dimensions = array<i32: 0>} : vector<32x32xi32>
    %c8_i32 = arith.constant 8 : i32
    %c0_i32 = arith.constant 0 : i32
    %3 = arith.cmpi eq, %c8_i32, %c0_i32 : i32
    %c1_i32 = arith.constant 1 : i32
    %4 = arith.select %3, %c1_i32, %c8_i32 : i32
    %5 = vector.broadcast %4 : i32 to vector<32x32xi32>
    %6 = arith.remsi %2, %5 : vector<32x32xi32>
    %c0_i32_2 = arith.constant 0 : i32
    %7 = vector.broadcast %c0_i32_2 : i32 to vector<32x32xi32>
    %8 = arith.cmpi ne, %6, %7 : vector<32x32xi32>
    %c0_i32_3 = arith.constant 0 : i32
    %9 = vector.broadcast %c0_i32_3 : i32 to vector<32x32xi32>
    %10 = arith.cmpi slt, %6, %9 : vector<32x32xi32>
    %c0_i32_4 = arith.constant 0 : i32
    %11 = arith.cmpi slt, %4, %c0_i32_4 : i32
    %12 = vector.broadcast %11 : i1 to vector<32x32xi1>
    %13 = vector.broadcast %12 : vector<32x32xi1> to vector<32x32xi1>
    %14 = arith.xori %10, %13 : vector<32x32xi1>
    %15 = arith.andi %14, %8 : vector<32x32xi1>
    %16 = vector.broadcast %4 : i32 to vector<32x32xi32>
    %17 = arith.addi %6, %16 : vector<32x32xi32>
    %18 = arith.select %15, %17, %6 : vector<32x32xi1>, vector<32x32xi32>
    %19 = tpu.iota {dimensions = array<i32: 1>} : vector<32x32xi32>
    %c8_i32_5 = arith.constant 8 : i32
    %c0_i32_6 = arith.constant 0 : i32
    %20 = arith.cmpi eq, %c8_i32_5, %c0_i32_6 : i32
    %c1_i32_7 = arith.constant 1 : i32
    %21 = arith.select %20, %c1_i32_7, %c8_i32_5 : i32
    %22 = vector.broadcast %21 : i32 to vector<32x32xi32>
    %23 = arith.remsi %19, %22 : vector<32x32xi32>
    %c0_i32_8 = arith.constant 0 : i32
    %24 = vector.broadcast %c0_i32_8 : i32 to vector<32x32xi32>
    %25 = arith.cmpi ne, %23, %24 : vector<32x32xi32>
    %c0_i32_9 = arith.constant 0 : i32
    %26 = vector.broadcast %c0_i32_9 : i32 to vector<32x32xi32>
    %27 = arith.cmpi slt, %23, %26 : vector<32x32xi32>
    %c0_i32_10 = arith.constant 0 : i32
    %28 = arith.cmpi slt, %21, %c0_i32_10 : i32
    %29 = vector.broadcast %28 : i1 to vector<32x32xi1>
    %30 = vector.broadcast %29 : vector<32x32xi1> to vector<32x32xi1>
    %31 = arith.xori %27, %30 : vector<32x32xi1>
    %32 = arith.andi %31, %25 : vector<32x32xi1>
    %33 = vector.broadcast %21 : i32 to vector<32x32xi32>
    %34 = arith.addi %23, %33 : vector<32x32xi32>
    %35 = arith.select %32, %34, %23 : vector<32x32xi1>, vector<32x32xi32>
    %36 = arith.cmpi sle, %35, %18 : vector<32x32xi32>
    %37 = vector.extract_strided_slice %1 {offsets = [0, 0], sizes = [32, 32], strides = [1, 1]} : vector<32x384xbf16> to vector<32x32xbf16>
    %38 = vector.extract_strided_slice %1 {offsets = [0, 128], sizes = [32, 32], strides = [1, 1]} : vector<32x384xbf16> to vector<32x32xbf16>
    %39 = vector.extract_strided_slice %1 {offsets = [0, 256], sizes = [32, 32], strides = [1, 1]} : vector<32x384xbf16> to vector<32x32xbf16>
    %cst = arith.constant dense<0.000000e+00> : vector<32x32xf32>
    %40 = tpu.matmul %37, %38, %cst {dimension_numbers = #tpu.dot_dimension_numbers<[1], [1], [0], [0], [0, 0, 1, 0], [], []>} : vector<32x32xbf16>, vector<32x32xbf16>, vector<32x32xf32> -> vector<32x32xf32>
    %cst_11 = arith.constant -1.000000e+30 : f32
    %41 = vector.broadcast %cst_11 : f32 to vector<32x32xf32>
    %42 = arith.select %36, %40, %41 : vector<32x32xi1>, vector<32x32xf32>
    %cst_12 = arith.constant dense<0xFF800000> : vector<32xf32>
    %43 = vector.multi_reduction <maximumf>, %42, %cst_12 [1] : vector<32x32xf32> to vector<32xf32>
    %44 = vector.shape_cast %43 : vector<32xf32> to vector<32x1xf32>
    %45 = vector.broadcast %44 : vector<32x1xf32> to vector<32x32xf32>
    %46 = arith.subf %42, %45 : vector<32x32xf32>
    %47 = math.exp %46 : vector<32x32xf32>
    %cst_13 = arith.constant dense<0.000000e+00> : vector<32xf32>
    %48 = vector.multi_reduction <add>, %47, %cst_13 [1] : vector<32x32xf32> to vector<32xf32>
    %49 = vector.shape_cast %48 : vector<32xf32> to vector<32x1xf32>
    %50 = tpu.reciprocal %49 {approx = true} : vector<32x1xf32> -> vector<32x1xf32>
    %51 = vector.broadcast %50 : vector<32x1xf32> to vector<32x32xf32>
    %52 = arith.mulf %47, %51 : vector<32x32xf32>
    %53 = arith.truncf %52 : vector<32x32xf32> to vector<32x32xbf16>
    %cst_14 = arith.constant dense<0.000000e+00> : vector<32x32xf32>
    %54 = tpu.matmul %53, %39, %cst_14 {dimension_numbers = #tpu.dot_dimension_numbers<[1], [0], [0], [1], [0, 0, 1, 1], [], []>} : vector<32x32xbf16>, vector<32x32xbf16>, vector<32x32xf32> -> vector<32x32xf32>
    %55 = vector.extract_strided_slice %1 {offsets = [0, 32], sizes = [32, 32], strides = [1, 1]} : vector<32x384xbf16> to vector<32x32xbf16>
    %56 = vector.extract_strided_slice %1 {offsets = [0, 160], sizes = [32, 32], strides = [1, 1]} : vector<32x384xbf16> to vector<32x32xbf16>
    %57 = vector.extract_strided_slice %1 {offsets = [0, 288], sizes = [32, 32], strides = [1, 1]} : vector<32x384xbf16> to vector<32x32xbf16>
    %cst_15 = arith.constant dense<0.000000e+00> : vector<32x32xf32>
    %58 = tpu.matmul %55, %56, %cst_15 {dimension_numbers = #tpu.dot_dimension_numbers<[1], [1], [0], [0], [0, 0, 1, 0], [], []>} : vector<32x32xbf16>, vector<32x32xbf16>, vector<32x32xf32> -> vector<32x32xf32>
    %cst_16 = arith.constant -1.000000e+30 : f32
    %59 = vector.broadcast %cst_16 : f32 to vector<32x32xf32>
    %60 = arith.select %36, %58, %59 : vector<32x32xi1>, vector<32x32xf32>
    %cst_17 = arith.constant dense<0xFF800000> : vector<32xf32>
    %61 = vector.multi_reduction <maximumf>, %60, %cst_17 [1] : vector<32x32xf32> to vector<32xf32>
    %62 = vector.shape_cast %61 : vector<32xf32> to vector<32x1xf32>
    %63 = vector.broadcast %62 : vector<32x1xf32> to vector<32x32xf32>
    %64 = arith.subf %60, %63 : vector<32x32xf32>
    %65 = math.exp %64 : vector<32x32xf32>
    %cst_18 = arith.constant dense<0.000000e+00> : vector<32xf32>
    %66 = vector.multi_reduction <add>, %65, %cst_18 [1] : vector<32x32xf32> to vector<32xf32>
    %67 = vector.shape_cast %66 : vector<32xf32> to vector<32x1xf32>
    %68 = tpu.reciprocal %67 {approx = true} : vector<32x1xf32> -> vector<32x1xf32>
    %69 = vector.broadcast %68 : vector<32x1xf32> to vector<32x32xf32>
    %70 = arith.mulf %65, %69 : vector<32x32xf32>
    %71 = arith.truncf %70 : vector<32x32xf32> to vector<32x32xbf16>
    %cst_19 = arith.constant dense<0.000000e+00> : vector<32x32xf32>
    %72 = tpu.matmul %71, %57, %cst_19 {dimension_numbers = #tpu.dot_dimension_numbers<[1], [0], [0], [1], [0, 0, 1, 1], [], []>} : vector<32x32xbf16>, vector<32x32xbf16>, vector<32x32xf32> -> vector<32x32xf32>
    %73 = vector.extract_strided_slice %1 {offsets = [0, 64], sizes = [32, 32], strides = [1, 1]} : vector<32x384xbf16> to vector<32x32xbf16>
    %74 = vector.extract_strided_slice %1 {offsets = [0, 192], sizes = [32, 32], strides = [1, 1]} : vector<32x384xbf16> to vector<32x32xbf16>
    %75 = vector.extract_strided_slice %1 {offsets = [0, 320], sizes = [32, 32], strides = [1, 1]} : vector<32x384xbf16> to vector<32x32xbf16>
    %cst_20 = arith.constant dense<0.000000e+00> : vector<32x32xf32>
    %76 = tpu.matmul %73, %74, %cst_20 {dimension_numbers = #tpu.dot_dimension_numbers<[1], [1], [0], [0], [0, 0, 1, 0], [], []>} : vector<32x32xbf16>, vector<32x32xbf16>, vector<32x32xf32> -> vector<32x32xf32>
    %cst_21 = arith.constant -1.000000e+30 : f32
    %77 = vector.broadcast %cst_21 : f32 to vector<32x32xf32>
    %78 = arith.select %36, %76, %77 : vector<32x32xi1>, vector<32x32xf32>
    %cst_22 = arith.constant dense<0xFF800000> : vector<32xf32>
    %79 = vector.multi_reduction <maximumf>, %78, %cst_22 [1] : vector<32x32xf32> to vector<32xf32>
    %80 = vector.shape_cast %79 : vector<32xf32> to vector<32x1xf32>
    %81 = vector.broadcast %80 : vector<32x1xf32> to vector<32x32xf32>
    %82 = arith.subf %78, %81 : vector<32x32xf32>
    %83 = math.exp %82 : vector<32x32xf32>
    %cst_23 = arith.constant dense<0.000000e+00> : vector<32xf32>
    %84 = vector.multi_reduction <add>, %83, %cst_23 [1] : vector<32x32xf32> to vector<32xf32>
    %85 = vector.shape_cast %84 : vector<32xf32> to vector<32x1xf32>
    %86 = tpu.reciprocal %85 {approx = true} : vector<32x1xf32> -> vector<32x1xf32>
    %87 = vector.broadcast %86 : vector<32x1xf32> to vector<32x32xf32>
    %88 = arith.mulf %83, %87 : vector<32x32xf32>
    %89 = arith.truncf %88 : vector<32x32xf32> to vector<32x32xbf16>
    %cst_24 = arith.constant dense<0.000000e+00> : vector<32x32xf32>
    %90 = tpu.matmul %89, %75, %cst_24 {dimension_numbers = #tpu.dot_dimension_numbers<[1], [0], [0], [1], [0, 0, 1, 1], [], []>} : vector<32x32xbf16>, vector<32x32xbf16>, vector<32x32xf32> -> vector<32x32xf32>
    %91 = vector.extract_strided_slice %1 {offsets = [0, 96], sizes = [32, 32], strides = [1, 1]} : vector<32x384xbf16> to vector<32x32xbf16>
    %92 = vector.extract_strided_slice %1 {offsets = [0, 224], sizes = [32, 32], strides = [1, 1]} : vector<32x384xbf16> to vector<32x32xbf16>
    %93 = vector.extract_strided_slice %1 {offsets = [0, 352], sizes = [32, 32], strides = [1, 1]} : vector<32x384xbf16> to vector<32x32xbf16>
    %cst_25 = arith.constant dense<0.000000e+00> : vector<32x32xf32>
    %94 = tpu.matmul %91, %92, %cst_25 {dimension_numbers = #tpu.dot_dimension_numbers<[1], [1], [0], [0], [0, 0, 1, 0], [], []>} : vector<32x32xbf16>, vector<32x32xbf16>, vector<32x32xf32> -> vector<32x32xf32>
    %cst_26 = arith.constant -1.000000e+30 : f32
    %95 = vector.broadcast %cst_26 : f32 to vector<32x32xf32>
    %96 = arith.select %36, %94, %95 : vector<32x32xi1>, vector<32x32xf32>
    %cst_27 = arith.constant dense<0xFF800000> : vector<32xf32>
    %97 = vector.multi_reduction <maximumf>, %96, %cst_27 [1] : vector<32x32xf32> to vector<32xf32>
    %98 = vector.shape_cast %97 : vector<32xf32> to vector<32x1xf32>
    %99 = vector.broadcast %98 : vector<32x1xf32> to vector<32x32xf32>
    %100 = arith.subf %96, %99 : vector<32x32xf32>
    %101 = math.exp %100 : vector<32x32xf32>
    %cst_28 = arith.constant dense<0.000000e+00> : vector<32xf32>
    %102 = vector.multi_reduction <add>, %101, %cst_28 [1] : vector<32x32xf32> to vector<32xf32>
    %103 = vector.shape_cast %102 : vector<32xf32> to vector<32x1xf32>
    %104 = tpu.reciprocal %103 {approx = true} : vector<32x1xf32> -> vector<32x1xf32>
    %105 = vector.broadcast %104 : vector<32x1xf32> to vector<32x32xf32>
    %106 = arith.mulf %101, %105 : vector<32x32xf32>
    %107 = arith.truncf %106 : vector<32x32xf32> to vector<32x32xbf16>
    %cst_29 = arith.constant dense<0.000000e+00> : vector<32x32xf32>
    %108 = tpu.matmul %107, %93, %cst_29 {dimension_numbers = #tpu.dot_dimension_numbers<[1], [0], [0], [1], [0, 0, 1, 1], [], []>} : vector<32x32xbf16>, vector<32x32xbf16>, vector<32x32xf32> -> vector<32x32xf32>
    %109 = tpu.concatenate %54, %72, %90, %108 in 1 : vector<32x32xf32>, vector<32x32xf32>, vector<32x32xf32>, vector<32x32xf32> -> vector<32x128xf32>
    %110 = arith.truncf %109 : vector<32x128xf32> to vector<32x128xbf16>
    %c0_30 = arith.constant 0 : index
    %c0_31 = arith.constant 0 : index
    %111 = vector.load %arg3[%c0_30, %c0_31] : memref<128x128xbf16, #tpu.memory_space<vmem>>, vector<128x128xbf16>
    %cst_32 = arith.constant dense<0.000000e+00> : vector<32x128xf32>
    %112 = tpu.matmul %110, %111, %cst_32 {dimension_numbers = #tpu.dot_dimension_numbers<[1], [0], [0], [1], [0, 0, 1, 1], [], []>} : vector<32x128xbf16>, vector<128x128xbf16>, vector<32x128xf32> -> vector<32x128xf32>
    %c0_33 = arith.constant 0 : index
    %c0_34 = arith.constant 0 : index
    %c0_35 = arith.constant 0 : index
    %113 = vector.load %arg2[%c0_33, %c0_34, %c0_35] : memref<1x32x128xf32, #tpu.memory_space<vmem>>, vector<1x32x128xf32>
    %114 = vector.shape_cast %113 : vector<1x32x128xf32> to vector<32x128xf32>
    %115 = arith.addf %112, %114 : vector<32x128xf32>
    %c0_36 = arith.constant 0 : index
    %c0_37 = arith.constant 0 : index
    %c0_38 = arith.constant 0 : index
    %116 = vector.load %arg4[%c0_36, %c0_37, %c0_38] : memref<1x32x128xf32, #tpu.memory_space<vmem>>, vector<1x32x128xf32>
    %117 = vector.shape_cast %116 : vector<1x32x128xf32> to vector<32x128xf32>
    %118 = vector.shape_cast %115 : vector<32x128xf32> to vector<1x32x128xf32>
    tpu.vector_store %arg4[%c0_36, %c0_37, %c0_38], %118 {strides = array<i32>} : memref<1x32x128xf32, #tpu.memory_space<vmem>>, vector<1x32x128xf32>,
    return
  }
  func.func @transform_0(%arg0: i32) -> (i32, i32, i32) {
    %c0_i32 = arith.constant 0 : i32
    %c0_i32_0 = arith.constant 0 : i32
    %c0_i32_1 = arith.constant 0 : i32
    return %arg0, %c0_i32, %c0_i32_0 : i32, i32, i32
  }
  func.func @transform_1(%arg0: i32) -> (i32, i32, i32) {
    %c0_i32 = arith.constant 0 : i32
    %c0_i32_0 = arith.constant 0 : i32
    %c0_i32_1 = arith.constant 0 : i32
    return %arg0, %c0_i32, %c0_i32_0 : i32, i32, i32
  }
  func.func @transform_2(%arg0: i32) -> (i32, i32) {
    %c0_i32 = arith.constant 0 : i32
    %c0_i32_0 = arith.constant 0 : i32
    %c0_i32_1 = arith.constant 0 : i32
    return %c0_i32, %c0_i32_0 : i32, i32
  }
  func.func @transform_3(%arg0: i32) -> (i32, i32, i32) {
    %c0_i32 = arith.constant 0 : i32
    %c0_i32_0 = arith.constant 0 : i32
    %c0_i32_1 = arith.constant 0 : i32
    return %arg0, %c0_i32, %c0_i32_0 : i32, i32, i32
  }
}

</mosaic_0001>

<llo_original>
// kernel: particle_transformer_forward.13
$region0: #{particle_transformer_forward.13}
  #allocation0 [shape = 'u32[]', space=smem, size = 0x4, offset = 0x4, fixed_abs, tag = 'smem constant byte address 0x4 - core index']
  #allocation1 [shape = 'u32[144,128]{1,0:T(1,128)}', space=vmem, size = 0x12000, scoped, tag = 'internal scratch']
  %s0 = inlined_call_operand.vmem [shape: f32[64,128], index: 0, kind: input, shape index: {}]
  %s1 = inlined_call_operand.vmem [shape: f32[1,128], index: 1, kind: input, shape index: {}]
  %s2 = inlined_call_operand.vmem [shape: f32[1,128], index: 2, kind: input, shape index: {}]
  %s3 = inlined_call_operand.vmem [shape: bf16[128,128], index: 3, kind: input, shape index: {}]
  %s4 = inlined_call_operand.hbm [shape: f32[64,128], index: 4, kind: output, shape index: {}]
  %s5 = sld [smem:[#allocation0]]
  $region26: #{particle_transformer_forward.13} parent=0
    _
  %s7 = ssub.s32 1, %s5
  %s8 = scalar_select 0, %s7, %s5
  $region1: #{particle_transformer_forward.13} parent=0
    #allocation2 [shape = 'u8[32768]{0}', space=vmem, size = 0x8000, scoped, tag = 'output window, operand 0, single buffered']
    #allocation3 [shape = 's32[1]{0}', space=sflag, size = 0x4, scoped, tag = 'scoped memory for particle_transformer_forward.13']
    %9 = vsyncpa [#allocation3], 0
    // Predicated region
    $region2: #{particle_transformer_forward.13} parent=1 // pred_check
      _
    $region3: #{particle_transformer_forward.13} parent=1 // pred_check_branch
      %11 = sbr.rel (0) target = $region5
    $region4: #{particle_transformer_forward.13} parent=1 // pred_region
      _
    $region5: #{particle_transformer_forward.13} parent=1 // pred_fallthru
      _
    // Predicated region
    $region6: #{particle_transformer_forward.13} parent=1 // pred_check
      _
    $region7: #{particle_transformer_forward.13} parent=1 // pred_check_branch
      %13 = sbr.rel (0) target = $region9
    $region8: #{particle_transformer_forward.13} parent=1 // pred_region
      _
    $region9: #{particle_transformer_forward.13} parent=1 // pred_fallthru
      _
    // Predicated region
    $region10: #{particle_transformer_forward.13} parent=1 // pred_check
      _
    $region11: #{particle_transformer_forward.13} parent=1 // pred_check_branch
      %15 = sbr.rel (0) target = $region13
    $region12: #{particle_transformer_forward.13} parent=1 // pred_region
      _
    $region13: #{particle_transformer_forward.13} parent=1 // pred_fallthru
      _
    // Predicated region
    $region14: #{particle_transformer_forward.13} parent=1 // pred_check
      _
    $region15: #{particle_transformer_forward.13} parent=1 // pred_check_branch
      %17 = sbr.rel (0) target = $region17
    $region16: #{particle_transformer_forward.13} parent=1 // pred_region
      _
    $region17: #{particle_transformer_forward.13} parent=1 // pred_fallthru
      _
    %v19 = vld [vmem:[%s0] sm:$0xff]
    %v20 = vld [vmem:[%s0 + $0x8] sm:$0xff]
    %v21 = vld [vmem:[%s0 + $0x10] sm:$0xff]
    %v22 = vld [vmem:[%s0 + $0x18] sm:$0xff]
    %v23 = vld [vmem:[%s0 + $0x20] sm:$0xff]
    %v24 = vld [vmem:[%s0 + $0x28] sm:$0xff]
    %v25 = vld [vmem:[%s0 + $0x30] sm:$0xff]
    %v26 = vld [vmem:[%s0 + $0x38] sm:$0xff]
    %v27 = vld [vmem:[%s1] sm:$0x1]
    %v28 = vld [vmem:[%s2] sm:$0x1]
    %29 = vadd.xlane.f32.xlu0 %v19
    %v30 = vpop.xlane.xlu0 %29
    %31 = vadd.xlane.f32.xlu0 %v20
    %v32 = vpop.xlane.xlu0 %31
    %33 = vadd.xlane.f32.xlu0 %v21
    %v34 = vpop.xlane.xlu0 %33
    %35 = vadd.xlane.f32.xlu0 %v22
    %v36 = vpop.xlane.xlu0 %35
    %37 = vadd.xlane.f32.xlu0 %v23
    %v38 = vpop.xlane.xlu0 %37
    %39 = vadd.xlane.f32.xlu0 %v24
    %v40 = vpop.xlane.xlu0 %39
    %41 = vadd.xlane.f32.xlu0 %v25
    %v42 = vpop.xlane.xlu0 %41
    %43 = vadd.xlane.f32.xlu0 %v26
    %v44 = vpop.xlane.xlu0 %43
    %v45 = vrcp.pop 128.0
    %v46 = vmul.f32 %v30, %v45
    %v47 = vmul.f32 %v32, %v45
    %v48 = vmul.f32 %v34, %v45
    %v49 = vmul.f32 %v36, %v45
    %v50 = vmul.f32 %v38, %v45
    %v51 = vmul.f32 %v40, %v45
    %v52 = vmul.f32 %v42, %v45
    %v53 = vmul.f32 %v44, %v45
    %v54 = vsub.f32 %v19, %v46
    %v55 = vsub.f32 %v20, %v47
    %v56 = vsub.f32 %v21, %v48
    %v57 = vsub.f32 %v22, %v49
    %v58 = vsub.f32 %v23, %v50
    %v59 = vsub.f32 %v24, %v51
    %v60 = vsub.f32 %v25, %v52
    %v61 = vsub.f32 %v26, %v53
    %v62 = vmul.f32 %v54, %v54
    %v63 = vmul.f32 %v55, %v55
    %v64 = vmul.f32 %v56, %v56
    %v65 = vmul.f32 %v57, %v57
    %v66 = vmul.f32 %v58, %v58
    %v67 = vmul.f32 %v59, %v59
    %v68 = vmul.f32 %v60, %v60
    %v69 = vmul.f32 %v61, %v61
    %70 = vadd.xlane.f32.xlu0 %v62
    %v71 = vpop.xlane.xlu0 %70
    %72 = vadd.xlane.f32.xlu0 %v63
    %v73 = vpop.xlane.xlu0 %72
    %74 = vadd.xlane.f32.xlu0 %v64
    %v75 = vpop.xlane.xlu0 %74
    %76 = vadd.xlane.f32.xlu0 %v65
    %v77 = vpop.xlane.xlu0 %76
    %78 = vadd.xlane.f32.xlu0 %v66
    %v79 = vpop.xlane.xlu0 %78
    %80 = vadd.xlane.f32.xlu0 %v67
    %v81 = vpop.xlane.xlu0 %80
    %82 = vadd.xlane.f32.xlu0 %v68
    %v83 = vpop.xlane.xlu0 %82
    %84 = vadd.xlane.f32.xlu0 %v69
    %v85 = vpop.xlane.xlu0 %84
    %v86 = vmul.f32 %v71, %v45
    %v87 = vmul.f32 %v73, %v45
    %v88 = vmul.f32 %v75, %v45
    %v89 = vmul.f32 %v77, %v45
    %v90 = vmul.f32 %v79, %v45
    %v91 = vmul.f32 %v81, %v45
    %v92 = vmul.f32 %v83, %v45
    %v93 = vmul.f32 %v85, %v45
    %v94 = vadd.f32 %v86, 1e-05
    %v95 = vadd.f32 %v87, 1e-05
    %v96 = vadd.f32 %v88, 1e-05
    %v97 = vadd.f32 %v89, 1e-05
    %v98 = vadd.f32 %v90, 1e-05
    %v99 = vadd.f32 %v91, 1e-05
    %v100 = vadd.f32 %v92, 1e-05
    %v101 = vadd.f32 %v93, 1e-05
    %v102 = vrsqrt.pop %v94
    %v103 = vrsqrt.pop %v95
    %v104 = vrsqrt.pop %v96
    %v105 = vrsqrt.pop %v97
    %v106 = vrsqrt.pop %v98
    %v107 = vrsqrt.pop %v99
    %v108 = vrsqrt.pop %v100
    %v109 = vrsqrt.pop %v101
    %v110 = vmul.f32 %v54, %v102
    %v111 = vmul.f32 %v55, %v103
    %v112 = vmul.f32 %v56, %v104
    %v113 = vmul.f32 %v57, %v105
    %v114 = vmul.f32 %v58, %v106
    %v115 = vmul.f32 %v59, %v107
    %v116 = vmul.f32 %v60, %v108
    %v117 = vmul.f32 %v61, %v109
    %v119 = vlaneseq
    %v120 = vshrl.u32 %v119, 7
    %v121 = vsub.s32 0, %v120
    %v122 = vrot.slane %v27, %v121
    %v124 = vmul.f32 %v110, %v122
    %v125 = vmul.f32 %v111, %v122
    %v126 = vmul.f32 %v112, %v122
    %v127 = vmul.f32 %v113, %v122
    %v128 = vmul.f32 %v114, %v122
    %v129 = vmul.f32 %v115, %v122
    %v130 = vmul.f32 %v116, %v122
    %v131 = vmul.f32 %v117, %v122
    %v133 = vlaneseq
    %v134 = vshrl.u32 %v133, 7
    %v135 = vsub.s32 0, %v134
    %v136 = vrot.slane %v28, %v135
    %v138 = vadd.f32 %v124, %v136
    %v139 = vadd.f32 %v125, %v136
    %v140 = vadd.f32 %v126, %v136
    %v141 = vadd.f32 %v127, %v136
    %v142 = vadd.f32 %v128, %v136
    %v143 = vadd.f32 %v129, %v136
    %v144 = vadd.f32 %v130, %v136
    %v145 = vadd.f32 %v131, %v136
    %v146 = vpack.c.bf16 %v139, %v138
    %v147 = vpack.c.bf16 %v141, %v140
    %v148 = vpack.c.bf16 %v143, %v142
    %v149 = vpack.c.bf16 %v145, %v144
    %v150 = vld [vmem:[%s3] sm:$0xf]
    %v151 = vld [vmem:[%s3 + $0x4] sm:$0xf]
    %v152 = vld [vmem:[%s3 + $0x8] sm:$0xf]
    %v153 = vld [vmem:[%s3 + $0xc] sm:$0xf]
    %v154 = vld [vmem:[%s3 + $0x10] sm:$0xf]
    %v155 = vld [vmem:[%s3 + $0x14] sm:$0xf]
    %v156 = vld [vmem:[%s3 + $0x18] sm:$0xf]
    %v157 = vld [vmem:[%s3 + $0x1c] sm:$0xf]
    %v158 = vld [vmem:[%s3 + $0x20] sm:$0xf]
    %v159 = vld [vmem:[%s3 + $0x24] sm:$0xf]
    %v160 = vld [vmem:[%s3 + $0x28] sm:$0xf]
    %v161 = vld [vmem:[%s3 + $0x2c] sm:$0xf]
    %v162 = vld [vmem:[%s3 + $0x30] sm:$0xf]
    %v163 = vld [vmem:[%s3 + $0x34] sm:$0xf]
    %v164 = vld [vmem:[%s3 + $0x38] sm:$0xf]
    %v165 = vld [vmem:[%s3 + $0x3c] sm:$0xf]
    %v182 = vunpack.c.l.b16 %v150
    %v183 = vunpack.c.l.b16 %v151
    %v184 = vunpack.c.l.b16 %v152
    %v185 = vunpack.c.l.b16 %v153
    %v186 = vunpack.c.l.b16 %v154
    %v187 = vunpack.c.l.b16 %v155
    %v188 = vunpack.c.l.b16 %v156
    %v189 = vunpack.c.l.b16 %v157
    %v190 = vunpack.c.l.b16 %v158
    %v191 = vunpack.c.l.b16 %v159
    %v192 = vunpack.c.l.b16 %v160
    %v193 = vunpack.c.l.b16 %v161
    %v194 = vunpack.c.l.b16 %v162
    %v195 = vunpack.c.l.b16 %v163
    %v196 = vunpack.c.l.b16 %v164
    %v197 = vunpack.c.l.b16 %v165
    %v198 = vpack.c.b16 %v183, %v182
    %v199 = vpack.c.b16 %v185, %v184
    %v200 = vpack.c.b16 %v187, %v186
    %v201 = vpack.c.b16 %v189, %v188
    %v202 = vpack.c.b16 %v191, %v190
    %v203 = vpack.c.b16 %v193, %v192
    %v204 = vpack.c.b16 %v195, %v194
    %v205 = vpack.c.b16 %v197, %v196
    %214 = vmatprep.subr.bf16.mxu0 0
    %215 = vmatpush1.bf16.msra.mxu0 %v198
    %216 = vmatprep.subr.bf16.mxu0 0
    %217 = vmatpush1.bf16.msra.mxu0 %v199
    %218 = vmatprep.subr.bf16.mxu0 0
    %219 = vmatpush1.bf16.msra.mxu0 %v200
    %220 = vmatprep.subr.bf16.mxu0 0
    %221 = vmatpush1.bf16.msra.mxu0 %v201
    %222 = vmatprep.subr.bf16.mxu0 0
    %223 = vmatpush1.bf16.msra.mxu0 %v202
    %224 = vmatprep.subr.bf16.mxu0 0
    %225 = vmatpush1.bf16.msra.mxu0 %v203
    %226 = vmatprep.subr.bf16.mxu0 0
    %227 = vmatpush1.bf16.msra.mxu0 %v204
    %228 = vmatprep.subr.bf16.mxu0 0
    %229 = vmatpush1.bf16.msra.mxu0 %v205
    %230 = vmatprep.subr.bf16.mxu0 0
    %231 = vmatpush1.bf16.msra.mxu0 0
    %232 = vmatprep.subr.bf16.mxu0 0
    %233 = vmatpush1.bf16.msra.mxu0 0
    %234 = vmatprep.subr.bf16.mxu0 0
    %235 = vmatpush1.bf16.msra.mxu0 0
    %236 = vmatprep.subr.bf16.mxu0 0
    %237 = vmatpush1.bf16.msra.mxu0 0
    %238 = vmatprep.subr.bf16.mxu0 0
    %239 = vmatpush1.bf16.msra.mxu0 0
    %240 = vmatprep.subr.bf16.mxu0 0
    %241 = vmatpush1.bf16.msra.mxu0 0
    %242 = vmatprep.subr.bf16.mxu0 0
    %243 = vmatpush1.bf16.msra.mxu0 0
    %244 = vmatprep.subr.bf16.mxu0 0
    %245 = vmatpush1.bf16.msra.mxu0 0
    %246 = vmatprep.mubr.bf16.mxu0 0
    %247 = vmatmul.mubr.bf16.gmra.mrb[0].mxu0 %v146
    %v248 = vpop.f32.mrb[0].mxu0
    %v249 = vadd.f32 0.0, %v248
    %v250 = vpop.f32.mrb[0].mxu0
    %v251 = vpop.f32.mrb[0].mxu0
    %v252 = vadd.f32 0.0, %v251
    %v253 = vpop.f32.mrb[0].mxu0
    %254 = vmatprep.mubr.bf16.mxu0 0
    %255 = vmatmul.mubr.bf16.gmra.mrb[0].mxu0 %v147
    %v256 = vpop.f32.mrb[0].mxu0
    %v257 = vadd.f32 0.0, %v256
    %v258 = vpop.f32.mrb[0].mxu0
    %v259 = vpop.f32.mrb[0].mxu0
    %v260 = vadd.f32 0.0, %v259
    %v261 = vpop.f32.mrb[0].mxu0
    %262 = vmatprep.mubr.bf16.mxu0 0
    %263 = vmatmul.mubr.bf16.gmra.mrb[0].mxu0 %v148
    %v264 = vpop.f32.mrb[0].mxu0
    %v265 = vadd.f32 0.0, %v264
    %v266 = vpop.f32.mrb[0].mxu0
    %v267 = vpop.f32.mrb[0].mxu0
    %v268 = vadd.f32 0.0, %v267
    %v269 = vpop.f32.mrb[0].mxu0
    %270 = vmatprep.mubr.bf16.mxu0 0
    %271 = vmatmul.mubr.bf16.gmra.mrb[0].mxu0 %v149
    %v272 = vpop.f32.mrb[0].mxu0
    %v273 = vadd.f32 0.0, %v272
    %v274 = vpop.f32.mrb[0].mxu0
    %v275 = vpop.f32.mrb[0].mxu0
    %v276 = vadd.f32 0.0, %v275
    %v277 = vpop.f32.mrb[0].mxu0
    %278 = vdwg.mxu0
    %279 = vst [vmem:[#allocation2] sm:$0xff] %v249
    %280 = vst [vmem:[#allocation2 + $0x8] sm:$0xff] %v252
    %281 = vst [vmem:[#allocation2 + $0x10] sm:$0xff] %v257
    %282 = vst [vmem:[#allocation2 + $0x18] sm:$0xff] %v260
    %283 = vst [vmem:[#allocation2 + $0x20] sm:$0xff] %v265
    %284 = vst [vmem:[#allocation2 + $0x28] sm:$0xff] %v268
    %285 = vst [vmem:[#allocation2 + $0x30] sm:$0xff] %v273
    %286 = vst [vmem:[#allocation2 + $0x38] sm:$0xff] %v276
    // Predicated region
    $region18: #{particle_transformer_forward.13} parent=1 // pred_check
      _
    $region19: #{particle_transformer_forward.13} parent=1 // pred_check_branch
      %288 = sbr.rel (0) target = $region21
    $region20: #{particle_transformer_forward.13} parent=1 // pred_region
      %s290 = ssub.s32 1024, 1024
      %291 = vsyncadd [#allocation3], %s290
      %s292 = sshll.u32 [#allocation2], 4
      %s293 = int_to_ptr.vmem [resolvable:$true] %s292
      %298 = dma.vmem_to_hbm [thread:$0]  %s293, 1024, %s4, [#allocation3], 128, 128, 8
    $region21: #{particle_transformer_forward.13} parent=1 // pred_fallthru
      _
    // Predicated region
    $region22: #{particle_transformer_forward.13} parent=1 // pred_check
      _
    $region23: #{particle_transformer_forward.13} parent=1 // pred_check_branch
      %300 = sbr.rel (0) target = $region25
    $region24: #{particle_transformer_forward.13} parent=1 // pred_region
      %301 = dma.done [#allocation3], 1024
    $region25: #{particle_transformer_forward.13} parent=1 // pred_fallthru
      _
    %302 = vsyncpa [#allocation3], 1

// kernel: particle_transformer_forward.7
$region0: #{particle_transformer_forward.7}
  #allocation0 [shape = 'u32[]', space=smem, size = 0x4, offset = 0x4, fixed_abs, tag = 'smem constant byte address 0x4 - core index']
  #allocation1 [shape = 'u32[144,128]{1,0:T(1,128)}', space=vmem, size = 0x12000, scoped, tag = 'internal scratch']
  %s0 = inlined_call_operand.vmem [shape: f32[64,128], index: 0, kind: input, shape index: {}]
  %s1 = inlined_call_operand.vmem [shape: f32[1,128], index: 1, kind: input, shape index: {}]
  %s2 = inlined_call_operand.vmem [shape: f32[1,128], index: 2, kind: input, shape index: {}]
  %s3 = inlined_call_operand.vmem [shape: bf16[128,384], index: 3, kind: input, shape index: {}]
  %s4 = inlined_call_operand.vmem [shape: bf16[64,384], index: 4, kind: output, shape index: {}]
  %s5 = sld [smem:[#allocation0]]
  $region26: #{particle_transformer_forward.7} parent=0
    _
  %s7 = ssub.s32 1, %s5
  %s8 = scalar_select 0, %s7, %s5
  // Predicated region
  $region2: #{particle_transformer_forward.7} parent=0 // pred_check
    _
  $region3: #{particle_transformer_forward.7} parent=0 // pred_check_branch
    %10 = sbr.rel (0) target = $region5
  $region4: #{particle_transformer_forward.7} parent=0 // pred_region
    _
  $region5: #{particle_transformer_forward.7} parent=0 // pred_fallthru
    _
  // Predicated region
  $region6: #{particle_transformer_forward.7} parent=0 // pred_check
    _
  $region7: #{particle_transformer_forward.7} parent=0 // pred_check_branch
    %12 = sbr.rel (0) target = $region9
  $region8: #{particle_transformer_forward.7} parent=0 // pred_region
    _
  $region9: #{particle_transformer_forward.7} parent=0 // pred_fallthru
    _
  // Predicated region
  $region10: #{particle_transformer_forward.7} parent=0 // pred_check
    _
  $region11: #{particle_transformer_forward.7} parent=0 // pred_check_branch
    %14 = sbr.rel (0) target = $region13
  $region12: #{particle_transformer_forward.7} parent=0 // pred_region
    _
  $region13: #{particle_transformer_forward.7} parent=0 // pred_fallthru
    _
  // Predicated region
  $region14: #{particle_transformer_forward.7} parent=0 // pred_check
    _
  $region15: #{particle_transformer_forward.7} parent=0 // pred_check_branch
    %16 = sbr.rel (0) target = $region17
  $region16: #{particle_transformer_forward.7} parent=0 // pred_region
    _
  $region17: #{particle_transformer_forward.7} parent=0 // pred_fallthru
    _
  %v18 = vld [vmem:[%s0] sm:$0xff]
  %v19 = vld [vmem:[%s0 + $0x8] sm:$0xff]
  %v20 = vld [vmem:[%s0 + $0x10] sm:$0xff]
  %v21 = vld [vmem:[%s0 + $0x18] sm:$0xff]
  %v22 = vld [vmem:[%s0 + $0x20] sm:$0xff]
  %v23 = vld [vmem:[%s0 + $0x28] sm:$0xff]
  %v24 = vld [vmem:[%s0 + $0x30] sm:$0xff]
  %v25 = vld [vmem:[%s0 + $0x38] sm:$0xff]
  %v26 = vld [vmem:[%s1] sm:$0x1]
  %v27 = vld [vmem:[%s2] sm:$0x1]
  %28 = vadd.xlane.f32.xlu0 %v18
  %v29 = vpop.xlane.xlu0 %28
  %30 = vadd.xlane.f32.xlu0 %v19
  %v31 = vpop.xlane.xlu0 %30
  %32 = vadd.xlane.f32.xlu0 %v20
  %v33 = vpop.xlane.xlu0 %32
  %34 = vadd.xlane.f32.xlu0 %v21
  %v35 = vpop.xlane.xlu0 %34
  %36 = vadd.xlane.f32.xlu0 %v22
  %v37 = vpop.xlane.xlu0 %36
  %38 = vadd.xlane.f32.xlu0 %v23
  %v39 = vpop.xlane.xlu0 %38
  %40 = vadd.xlane.f32.xlu0 %v24
  %v41 = vpop.xlane.xlu0 %40
  %42 = vadd.xlane.f32.xlu0 %v25
  %v43 = vpop.xlane.xlu0 %42
  %v44 = vrcp.pop 128.0
  %v45 = vmul.f32 %v29, %v44
  %v46 = vmul.f32 %v31, %v44
  %v47 = vmul.f32 %v33, %v44
  %v48 = vmul.f32 %v35, %v44
  %v49 = vmul.f32 %v37, %v44
  %v50 = vmul.f32 %v39, %v44
  %v51 = vmul.f32 %v41, %v44
  %v52 = vmul.f32 %v43, %v44
  %v53 = vsub.f32 %v18, %v45
  %v54 = vsub.f32 %v19, %v46
  %v55 = vsub.f32 %v20, %v47
  %v56 = vsub.f32 %v21, %v48
  %v57 = vsub.f32 %v22, %v49
  %v58 = vsub.f32 %v23, %v50
  %v59 = vsub.f32 %v24, %v51
  %v60 = vsub.f32 %v25, %v52
  %v61 = vmul.f32 %v53, %v53
  %v62 = vmul.f32 %v54, %v54
  %v63 = vmul.f32 %v55, %v55
  %v64 = vmul.f32 %v56, %v56
  %v65 = vmul.f32 %v57, %v57
  %v66 = vmul.f32 %v58, %v58
  %v67 = vmul.f32 %v59, %v59
  %v68 = vmul.f32 %v60, %v60
  %69 = vadd.xlane.f32.xlu0 %v61
  %v70 = vpop.xlane.xlu0 %69
  %71 = vadd.xlane.f32.xlu0 %v62
  %v72 = vpop.xlane.xlu0 %71
  %73 = vadd.xlane.f32.xlu0 %v63
  %v74 = vpop.xlane.xlu0 %73
  %75 = vadd.xlane.f32.xlu0 %v64
  %v76 = vpop.xlane.xlu0 %75
  %77 = vadd.xlane.f32.xlu0 %v65
  %v78 = vpop.xlane.xlu0 %77
  %79 = vadd.xlane.f32.xlu0 %v66
  %v80 = vpop.xlane.xlu0 %79
  %81 = vadd.xlane.f32.xlu0 %v67
  %v82 = vpop.xlane.xlu0 %81
  %83 = vadd.xlane.f32.xlu0 %v68
  %v84 = vpop.xlane.xlu0 %83
  %v85 = vmul.f32 %v70, %v44
  %v86 = vmul.f32 %v72, %v44
  %v87 = vmul.f32 %v74, %v44
  %v88 = vmul.f32 %v76, %v44
  %v89 = vmul.f32 %v78, %v44
  %v90 = vmul.f32 %v80, %v44
  %v91 = vmul.f32 %v82, %v44
  %v92 = vmul.f32 %v84, %v44
  %v93 = vadd.f32 %v85, 1e-05
  %v94 = vadd.f32 %v86, 1e-05
  %v95 = vadd.f32 %v87, 1e-05
  %v96 = vadd.f32 %v88, 1e-05
  %v97 = vadd.f32 %v89, 1e-05
  %v98 = vadd.f32 %v90, 1e-05
  %v99 = vadd.f32 %v91, 1e-05
  %v100 = vadd.f32 %v92, 1e-05
  %v101 = vrsqrt.pop %v93
  %v102 = vrsqrt.pop %v94
  %v103 = vrsqrt.pop %v95
  %v104 = vrsqrt.pop %v96
  %v105 = vrsqrt.pop %v97
  %v106 = vrsqrt.pop %v98
  %v107 = vrsqrt.pop %v99
  %v108 = vrsqrt.pop %v100
  %v109 = vmul.f32 %v53, %v101
  %v110 = vmul.f32 %v54, %v102
  %v111 = vmul.f32 %v55, %v103
  %v112 = vmul.f32 %v56, %v104
  %v113 = vmul.f32 %v57, %v105
  %v114 = vmul.f32 %v58, %v106
  %v115 = vmul.f32 %v59, %v107
  %v116 = vmul.f32 %v60, %v108
  %v118 = vlaneseq
  %v119 = vshrl.u32 %v118, 7
  %v120 = vsub.s32 0, %v119
  %v121 = vrot.slane %v26, %v120
  %v123 = vmul.f32 %v109, %v121
  %v124 = vmul.f32 %v110, %v121
  %v125 = vmul.f32 %v111, %v121
  %v126 = vmul.f32 %v112, %v121
  %v127 = vmul.f32 %v113, %v121
  %v128 = vmul.f32 %v114, %v121
  %v129 = vmul.f32 %v115, %v121
  %v130 = vmul.f32 %v116, %v121
  %v132 = vlaneseq
  %v133 = vshrl.u32 %v132, 7
  %v134 = vsub.s32 0, %v133
  %v135 = vrot.slane %v27, %v134
  %v137 = vadd.f32 %v123, %v135
  %v138 = vadd.f32 %v124, %v135
  %v139 = vadd.f32 %v125, %v135
  %v140 = vadd.f32 %v126, %v135
  %v141 = vadd.f32 %v127, %v135
  %v142 = vadd.f32 %v128, %v135
  %v143 = vadd.f32 %v129, %v135
  %v144 = vadd.f32 %v130, %v135
  %v145 = vpack.c.bf16 %v138, %v137
  %v146 = vpack.c.bf16 %v140, %v139
  %v147 = vpack.c.bf16 %v142, %v141
  %v148 = vpack.c.bf16 %v144, %v143
  %v149 = vld [vmem:[%s3] sm:$0xff]
  %v150 = vld [vmem:[%s3 + $0x8] sm:$0xf]
  %v151 = vld [vmem:[%s3 + $0xc] sm:$0xff]
  %v152 = vld [vmem:[%s3 + $0x14] sm:$0xf]
  %v153 = vld [vmem:[%s3 + $0x18] sm:$0xff]
  %v154 = vld [vmem:[%s3 + $0x20] sm:$0xf]
  %v155 = vld [vmem:[%s3 + $0x24] sm:$0xff]
  %v156 = vld [vmem:[%s3 + $0x2c] sm:$0xf]
  %v157 = vld [vmem:[%s3 + $0x30] sm:$0xff]
  %v158 = vld [vmem:[%s3 + $0x38] sm:$0xf]
  %v159 = vld [vmem:[%s3 + $0x3c] sm:$0xff]
  %v160 = vld [vmem:[%s3 + $0x44] sm:$0xf]
  %v161 = vld [vmem:[%s3 + $0x48] sm:$0xff]
  %v162 = vld [vmem:[%s3 + $0x50] sm:$0xf]
  %v163 = vld [vmem:[%s3 + $0x54] sm:$0xff]
  %v164 = vld [vmem:[%s3 + $0x5c] sm:$0xf]
  %v165 = vld [vmem:[%s3 + $0x60] sm:$0xff]
  %v166 = vld [vmem:[%s3 + $0x68] sm:$0xf]
  %v167 = vld [vmem:[%s3 + $0x6c] sm:$0xff]
  %v168 = vld [vmem:[%s3 + $0x74] sm:$0xf]
  %v169 = vld [vmem:[%s3 + $0x78] sm:$0xff]
  %v170 = vld [vmem:[%s3 + $0x80] sm:$0xf]
  %v171 = vld [vmem:[%s3 + $0x84] sm:$0xff]
  %v172 = vld [vmem:[%s3 + $0x8c] sm:$0xf]
  %v173 = vld [vmem:[%s3 + $0x90] sm:$0xff]
  %v174 = vld [vmem:[%s3 + $0x98] sm:$0xf]
  %v175 = vld [vmem:[%s3 + $0x9c] sm:$0xff]
  %v176 = vld [vmem:[%s3 + $0xa4] sm:$0xf]
  %v177 = vld [vmem:[%s3 + $0xa8] sm:$0xff]
  %v178 = vld [vmem:[%s3 + $0xb0] sm:$0xf]
  %v179 = vld [vmem:[%s3 + $0xb4] sm:$0xff]
  %v180 = vld [vmem:[%s3 + $0xbc] sm:$0xf]
  %v213 = vunpack.c.l.b16 %v149
  %v214 = vunpack.c.h.b16 %v149
  %v215 = vunpack.c.l.b16 %v150
  %v216 = vunpack.c.l.b16 %v151
  %v217 = vunpack.c.h.b16 %v151
  %v218 = vunpack.c.l.b16 %v152
  %v219 = vunpack.c.l.b16 %v153
  %v220 = vunpack.c.h.b16 %v153
  %v221 = vunpack.c.l.b16 %v154
  %v222 = vunpack.c.l.b16 %v155
  %v223 = vunpack.c.h.b16 %v155
  %v224 = vunpack.c.l.b16 %v156
  %v225 = vunpack.c.l.b16 %v157
  %v226 = vunpack.c.h.b16 %v157
  %v227 = vunpack.c.l.b16 %v158
  %v228 = vunpack.c.l.b16 %v159
  %v229 = vunpack.c.h.b16 %v159
  %v230 = vunpack.c.l.b16 %v160
  %v231 = vunpack.c.l.b16 %v161
  %v232 = vunpack.c.h.b16 %v161
  %v233 = vunpack.c.l.b16 %v162
  %v234 = vunpack.c.l.b16 %v163
  %v235 = vunpack.c.h.b16 %v163
  %v236 = vunpack.c.l.b16 %v164
  %v237 = vunpack.c.l.b16 %v165
  %v238 = vunpack.c.h.b16 %v165
  %v239 = vunpack.c.l.b16 %v166
  %v240 = vunpack.c.l.b16 %v167
  %v241 = vunpack.c.h.b16 %v167
  %v242 = vunpack.c.l.b16 %v168
  %v243 = vunpack.c.l.b16 %v169
  %v244 = vunpack.c.h.b16 %v169
  %v245 = vunpack.c.l.b16 %v170
  %v246 = vunpack.c.l.b16 %v171
  %v247 = vunpack.c.h.b16 %v171
  %v248 = vunpack.c.l.b16 %v172
  %v249 = vunpack.c.l.b16 %v173
  %v250 = vunpack.c.h.b16 %v173
  %v251 = vunpack.c.l.b16 %v174
  %v252 = vunpack.c.l.b16 %v175
  %v253 = vunpack.c.h.b16 %v175
  %v254 = vunpack.c.l.b16 %v176
  %v255 = vunpack.c.l.b16 %v177
  %v256 = vunpack.c.h.b16 %v177
  %v257 = vunpack.c.l.b16 %v178
  %v258 = vunpack.c.l.b16 %v179
  %v259 = vunpack.c.h.b16 %v179
  %v260 = vunpack.c.l.b16 %v180
  %v261 = vpack.c.b16 %v216, %v213
  %v262 = vpack.c.b16 %v217, %v214
  %v263 = vpack.c.b16 %v218, %v215
  %v264 = vpack.c.b16 %v222, %v219
  %v265 = vpack.c.b16 %v223, %v220
  %v266 = vpack.c.b16 %v224, %v221
  %v267 = vpack.c.b16 %v228, %v225
  %v268 = vpack.c.b16 %v229, %v226
  %v269 = vpack.c.b16 %v230, %v227
  %v270 = vpack.c.b16 %v234, %v231
  %v271 = vpack.c.b16 %v235, %v232
  %v272 = vpack.c.b16 %v236, %v233
  %v273 = vpack.c.b16 %v240, %v237
  %v274 = vpack.c.b16 %v241, %v238
  %v275 = vpack.c.b16 %v242, %v239
  %v276 = vpack.c.b16 %v246, %v243
  %v277 = vpack.c.b16 %v247, %v244
  %v278 = vpack.c.b16 %v248, %v245
  %v279 = vpack.c.b16 %v252, %v249
  %v280 = vpack.c.b16 %v253, %v250
  %v281 = vpack.c.b16 %v254, %v251
  %v282 = vpack.c.b16 %v258, %v255
  %v283 = vpack.c.b16 %v259, %v256
  %v284 = vpack.c.b16 %v260, %v257
  %309 = vmatprep.subr.bf16.mxu0 %v262
  %310 = vmatpush1.bf16.msra.mxu0 %v261
  %311 = vmatprep.subr.bf16.mxu0 %v265
  %312 = vmatpush1.bf16.msra.mxu0 %v264
  %313 = vmatprep.subr.bf16.mxu0 %v268
  %314 = vmatpush1.bf16.msra.mxu0 %v267
  %315 = vmatprep.subr.bf16.mxu0 %v271
  %316 = vmatpush1.bf16.msra.mxu0 %v270
  %317 = vmatprep.subr.bf16.mxu0 %v274
  %318 = vmatpush1.bf16.msra.mxu0 %v273
  %319 = vmatprep.subr.bf16.mxu0 %v277
  %320 = vmatpush1.bf16.msra.mxu0 %v276
  %321 = vmatprep.subr.bf16.mxu0 %v280
  %322 = vmatpush1.bf16.msra.mxu0 %v279
  %323 = vmatprep.subr.bf16.mxu0 %v283
  %324 = vmatpush1.bf16.msra.mxu0 %v282
  %325 = vmatprep.subr.bf16.mxu0 0
  %326 = vmatpush1.bf16.msra.mxu0 0
  %327 = vmatprep.subr.bf16.mxu0 0
  %328 = vmatpush1.bf16.msra.mxu0 0
  %329 = vmatprep.subr.bf16.mxu0 0
  %330 = vmatpush1.bf16.msra.mxu0 0
  %331 = vmatprep.subr.bf16.mxu0 0
  %332 = vmatpush1.bf16.msra.mxu0 0
  %333 = vmatprep.subr.bf16.mxu0 0
  %334 = vmatpush1.bf16.msra.mxu0 0
  %335 = vmatprep.subr.bf16.mxu0 0
  %336 = vmatpush1.bf16.msra.mxu0 0
  %337 = vmatprep.subr.bf16.mxu0 0
  %338 = vmatpush1.bf16.msra.mxu0 0
  %339 = vmatprep.subr.bf16.mxu0 0
  %340 = vmatpush1.bf16.msra.mxu0 0
  %341 = vmatprep.mubr.bf16.mxu0 0
  %342 = vmatmul.mubr.bf16.gmra.mrb[0].mxu0 %v145
  %v343 = vpop.f32.mrb[0].mxu0
  %v344 = vadd.f32 0.0, %v343
  %v345 = vpop.f32.mrb[0].mxu0
  %v346 = vadd.f32 0.0, %v345
  %v347 = vpop.f32.mrb[0].mxu0
  %v348 = vadd.f32 0.0, %v347
  %v349 = vpop.f32.mrb[0].mxu0
  %v350 = vadd.f32 0.0, %v349
  %351 = vmatprep.mubr.bf16.mxu0 0
  %352 = vmatmul.mubr.bf16.gmra.mrb[0].mxu0 %v146
  %v353 = vpop.f32.mrb[0].mxu0
  %v354 = vadd.f32 0.0, %v353
  %v355 = vpop.f32.mrb[0].mxu0
  %v356 = vadd.f32 0.0, %v355
  %v357 = vpop.f32.mrb[0].mxu0
  %v358 = vadd.f32 0.0, %v357
  %v359 = vpop.f32.mrb[0].mxu0
  %v360 = vadd.f32 0.0, %v359
  %361 = vmatprep.mubr.bf16.mxu0 0
  %362 = vmatmul.mubr.bf16.gmra.mrb[0].mxu0 %v147
  %v363 = vpop.f32.mrb[0].mxu0
  %v364 = vadd.f32 0.0, %v363
  %v365 = vpop.f32.mrb[0].mxu0
  %v366 = vadd.f32 0.0, %v365
  %v367 = vpop.f32.mrb[0].mxu0
  %v368 = vadd.f32 0.0, %v367
  %v369 = vpop.f32.mrb[0].mxu0
  %v370 = vadd.f32 0.0, %v369
  %371 = vmatprep.mubr.bf16.mxu0 0
  %372 = vmatmul.mubr.bf16.gmra.mrb[0].mxu0 %v148
  %v373 = vpop.f32.mrb[0].mxu0
  %v374 = vadd.f32 0.0, %v373
  %v375 = vpop.f32.mrb[0].mxu0
  %v376 = vadd.f32 0.0, %v375
  %v377 = vpop.f32.mrb[0].mxu0
  %v378 = vadd.f32 0.0, %v377
  %v379 = vpop.f32.mrb[0].mxu0
  %v380 = vadd.f32 0.0, %v379
  %381 = vdwg.mxu0
  %382 = vmatprep.subr.bf16.mxu0 0
  %383 = vmatpush1.bf16.msra.mxu0 %v263
  %384 = vmatprep.subr.bf16.mxu0 0
  %385 = vmatpush1.bf16.msra.mxu0 %v266
  %386 = vmatprep.subr.bf16.mxu0 0
  %387 = vmatpush1.bf16.msra.mxu0 %v269
  %388 = vmatprep.subr.bf16.mxu0 0
  %389 = vmatpush1.bf16.msra.mxu0 %v272
  %390 = vmatprep.subr.bf16.mxu0 0
  %391 = vmatpush1.bf16.msra.mxu0 %v275
  %392 = vmatprep.subr.bf16.mxu0 0
  %393 = vmatpush1.bf16.msra.mxu0 %v278
  %394 = vmatprep.subr.bf16.mxu0 0
  %395 = vmatpush1.bf16.msra.mxu0 %v281
  %396 = vmatprep.subr.bf16.mxu0 0
  %397 = vmatpush1.bf16.msra.mxu0 %v284
  %398 = vmatprep.subr.bf16.mxu0 0
  %399 = vmatpush1.bf16.msra.mxu0 0
  %400 = vmatprep.subr.bf16.mxu0 0
  %401 = vmatpush1.bf16.msra.mxu0 0
  %402 = vmatprep.subr.bf16.mxu0 0
  %403 = vmatpush1.bf16.msra.mxu0 0
  %404 = vmatprep.subr.bf16.mxu0 0
  %405 = vmatpush1.bf16.msra.mxu0 0
  %406 = vmatprep.subr.bf16.mxu0 0
  %407 = vmatpush1.bf16.msra.mxu0 0
  %408 = vmatprep.subr.bf16.mxu0 0
  %409 = vmatpush1.bf16.msra.mxu0 0
  %410 = vmatprep.subr.bf16.mxu0 0
  %411 = vmatpush1.bf16.msra.mxu0 0
  %412 = vmatprep.subr.bf16.mxu0 0
  %413 = vmatpush1.bf16.msra.mxu0 0
  %414 = vmatprep.mubr.bf16.mxu0 0
  %415 = vmatmul.mubr.bf16.gmra.mrb[0].mxu0 %v145
  %v416 = vpop.f32.mrb[0].mxu0
  %v417 = vadd.f32 0.0, %v416
  %v418 = vpop.f32.mrb[0].mxu0
  %v419 = vpop.f32.mrb[0].mxu0
  %v420 = vadd.f32 0.0, %v419
  %v421 = vpop.f32.mrb[0].mxu0
  %422 = vmatprep.mubr.bf16.mxu0 0
  %423 = vmatmul.mubr.bf16.gmra.mrb[0].mxu0 %v146
  %v424 = vpop.f32.mrb[0].mxu0
  %v425 = vadd.f32 0.0, %v424
  %v426 = vpop.f32.mrb[0].mxu0
  %v427 = vpop.f32.mrb[0].mxu0
  %v428 = vadd.f32 0.0, %v427
  %v429 = vpop.f32.mrb[0].mxu0
  %430 = vmatprep.mubr.bf16.mxu0 0
  %431 = vmatmul.mubr.bf16.gmra.mrb[0].mxu0 %v147
  %v432 = vpop.f32.mrb[0].mxu0
  %v433 = vadd.f32 0.0, %v432
  %v434 = vpop.f32.mrb[0].mxu0
  %v435 = vpop.f32.mrb[0].mxu0
  %v436 = vadd.f32 0.0, %v435
  %v437 = vpop.f32.mrb[0].mxu0
  %438 = vmatprep.mubr.bf16.mxu0 0
  %439 = vmatmul.mubr.bf16.gmra.mrb[0].mxu0 %v148
  %v440 = vpop.f32.mrb[0].mxu0
  %v441 = vadd.f32 0.0, %v440
  %v442 = vpop.f32.mrb[0].mxu0
  %v443 = vpop.f32.mrb[0].mxu0
  %v444 = vadd.f32 0.0, %v443
  %v445 = vpop.f32.mrb[0].mxu0
  %446 = vdwg.mxu0
  %v447 = vpack.c.bf16 %v348, %v344
  %v448 = vpack.c.bf16 %v350, %v346
  %v449 = vpack.c.bf16 %v420, %v417
  %v450 = vpack.c.bf16 %v358, %v354
  %v451 = vpack.c.bf16 %v360, %v356
  %v452 = vpack.c.bf16 %v428, %v425
  %v453 = vpack.c.bf16 %v368, %v364
  %v454 = vpack.c.bf16 %v370, %v366
  %v455 = vpack.c.bf16 %v436, %v433
  %v456 = vpack.c.bf16 %v378, %v374
  %v457 = vpack.c.bf16 %v380, %v376
  %v458 = vpack.c.bf16 %v444, %v441
  %v471 = vunpack.c.l.b16 %v447
  %v472 = vunpack.c.l.b16 %v448
  %v473 = vunpack.c.l.b16 %v449
  %v474 = vunpack.c.h.b16 %v447
  %v475 = vunpack.c.h.b16 %v448
  %v476 = vunpack.c.h.b16 %v449
  %v477 = vunpack.c.l.b16 %v450
  %v478 = vunpack.c.l.b16 %v451
  %v479 = vunpack.c.l.b16 %v452
  %v480 = vunpack.c.h.b16 %v450
  %v481 = vunpack.c.h.b16 %v451
  %v482 = vunpack.c.h.b16 %v452
  %v483 = vunpack.c.l.b16 %v453
  %v484 = vunpack.c.l.b16 %v454
  %v485 = vunpack.c.l.b16 %v455
  %v486 = vunpack.c.h.b16 %v453
  %v487 = vunpack.c.h.b16 %v454
  %v488 = vunpack.c.h.b16 %v455
  %v489 = vunpack.c.l.b16 %v456
  %v490 = vunpack.c.l.b16 %v457
  %v491 = vunpack.c.l.b16 %v458
  %v492 = vunpack.c.h.b16 %v456
  %v493 = vunpack.c.h.b16 %v457
  %v494 = vunpack.c.h.b16 %v458
  %v495 = vpack.c.b16 %v472, %v471
  %v496 = vpack.c.b16 %v473, %v473
  %v497 = vpack.c.b16 %v475, %v474
  %v498 = vpack.c.b16 %v476, %v476
  %v499 = vpack.c.b16 %v478, %v477
  %v500 = vpack.c.b16 %v479, %v479
  %v501 = vpack.c.b16 %v481, %v480
  %v502 = vpack.c.b16 %v482, %v482
  %v503 = vpack.c.b16 %v484, %v483
  %v504 = vpack.c.b16 %v485, %v485
  %v505 = vpack.c.b16 %v487, %v486
  %v506 = vpack.c.b16 %v488, %v488
  %v507 = vpack.c.b16 %v490, %v489
  %v508 = vpack.c.b16 %v491, %v491
  %v509 = vpack.c.b16 %v493, %v492
  %v510 = vpack.c.b16 %v494, %v494
  %527 = vst [vmem:[%s4] sm:$0xff] %v495
  %528 = vst [vmem:[%s4 + $0x8] sm:$0xf] %v496
  %529 = vst [vmem:[%s4 + $0xc] sm:$0xff] %v497
  %530 = vst [vmem:[%s4 + $0x14] sm:$0xf] %v498
  %531 = vst [vmem:[%s4 + $0x18] sm:$0xff] %v499
  %532 = vst [vmem:[%s4 + $0x20] sm:$0xf] %v500
  %533 = vst [vmem:[%s4 + $0x24] sm:$0xff] %v501
  %534 = vst [vmem:[%s4 + $0x2c] sm:$0xf] %v502
  %535 = vst [vmem:[%s4 + $0x30] sm:$0xff] %v503
  %536 = vst [vmem:[%s4 + $0x38] sm:$0xf] %v504
  %537 = vst [vmem:[%s4 + $0x3c] sm:$0xff] %v505
  %538 = vst [vmem:[%s4 + $0x44] sm:$0xf] %v506
  %539 = vst [vmem:[%s4 + $0x48] sm:$0xff] %v507
  %540 = vst [vmem:[%s4 + $0x50] sm:$0xf] %v508
  %541 = vst [vmem:[%s4 + $0x54] sm:$0xff] %v509
  %542 = vst [vmem:[%s4 + $0x5c] sm:$0xf] %v510
  // Predicated region
  $region18: #{particle_transformer_forward.7} parent=0 // pred_check
    _
  $region19: #{particle_transformer_forward.7} parent=0 // pred_check_branch
    %544 = sbr.rel (0) target = $region21
  $region20: #{particle_transformer_forward.7} parent=0 // pred_region
    _
  $region21: #{particle_transformer_forward.7} parent=0 // pred_fallthru
    _
  // Predicated region
  $region22: #{particle_transformer_forward.7} parent=0 // pred_check
    _
  $region23: #{particle_transformer_forward.7} parent=0 // pred_check_branch
    %546 = sbr.rel (0) target = $region25
  $region24: #{particle_transformer_forward.7} parent=0 // pred_region
    _
  $region25: #{particle_transformer_forward.7} parent=0 // pred_fallthru
    _

// kernel: particle_transformer_forward.8
$region0: #{particle_transformer_forward.8}
  #allocation0 [shape = 'u32[]', space=smem, size = 0x4, offset = 0x4, fixed_abs, tag = 'smem constant byte address 0x4 - core index']
  #allocation1 [shape = 'u32[144,128]{1,0:T(1,128)}', space=vmem, size = 0x12000, scoped, tag = 'internal scratch']
  %s0 = inlined_call_operand.vmem [shape: bf16[2,32,384], index: 0, kind: input, shape index: {}]
  %s1 = inlined_call_operand.vmem [shape: f32[2,32,128], index: 1, kind: input, shape index: {}]
  %s2 = inlined_call_operand.vmem [shape: bf16[128,128], index: 2, kind: input, shape index: {}]
  %s3 = inlined_call_operand.vmem [shape: f32[2,32,128], index: 3, kind: output, shape index: {}]
  %s4 = sld [smem:[#allocation0]]
  $region45: #{particle_transformer_forward.8} parent=0
    _
  %s6 = ssub.s32 1, %s4
  %s7 = scalar_select 0, %s6, %s4
  loop: start=0, step=1, limit=4
  $region2: #{particle_transformer_forward.8} parent=0 // loop_pre_header
    _
  $region3: #{particle_transformer_forward.8} parent=0 // loop_header
    %s9 = sphi 0, %s13
    %p10 = scmp.ge.s32.totalorder %s9, 4
    %s19 = sphi 0, %s21
    %s22 = sphi 0, %s19
    %s23 = sphi 0, %s22
    %s39 = sphi 0, %s23
    %s45 = sphi 0, %s47
    %s48 = sphi 0, %s45
    %s49 = sphi 0, %s48
    %s65 = sphi 0, %s49
    %s69 = sphi 0, %s69
    %s71 = sphi 0, %s69
    %s72 = sphi 0, %s71
    %s86 = sphi 0, %s72
    %s92 = sphi 0, %s94
    %s95 = sphi 0, %s92
    %s96 = sphi 0, %s95
    %s112 = sphi 0, %s96
  $region4: #{particle_transformer_forward.8} parent=0 // loop_header_branch
    %12 = sbr.rel (%p10) target = $region8
  $region5: #{particle_transformer_forward.8} parent=0 // loop_body
    %s14 = ssub.s32 %s9, 1
    %s15 = ssub.s32 %s9, 2
    %s16 = sadd.s32 %s9, 1
    %s17 = ssub.s32 %s9, %s16
    %p18 = scmp.eq.s32.totalorder %s17, 0
    %s20 = sadd.s32 %s19, 1
    %s21 = scalar_select %p18, %s19, %s20
    %p24 = pneg %p18
    %p25 = scmp.eq.s32.totalorder %s9, 1
    %p26 = por %p24, %p25
    %p27 = scmp.ne.s32.totalorder %s19, %s22
    %p28 = scmp.eq.s32.totalorder %s9, 0
    %p29 = por %p27, %p28
    %p30 = scmp.ne.s32.totalorder %s19, %s22
    %p31 = scmp.eq.s32.totalorder %s14, 1
    %p32 = por %p30, %p31
    %p33 = scmp.ne.s32.totalorder %s22, %s23
    %p34 = scmp.eq.s32.totalorder %s14, 0
    %p35 = por %p33, %p34
    %p36 = scmp.ne.s32.totalorder %s22, %s23
    %p37 = scmp.eq.s32.totalorder %s15, 1
    %p38 = por %p36, %p37
    %p40 = scmp.ne.s32.totalorder %s23, %s39
    %p41 = scmp.eq.s32.totalorder %s15, 0
    %p42 = por %p40, %p41
    %s43 = ssub.s32 %s9, %s16
    %p44 = scmp.eq.s32.totalorder %s43, 0
    %s46 = sadd.s32 %s45, 1
    %s47 = scalar_select %p44, %s45, %s46
    %p50 = pneg %p44
    %p51 = scmp.eq.s32.totalorder %s9, 1
    %p52 = por %p50, %p51
    %p53 = scmp.ne.s32.totalorder %s45, %s48
    %p54 = scmp.eq.s32.totalorder %s9, 0
    %p55 = por %p53, %p54
    %p56 = scmp.ne.s32.totalorder %s45, %s48
    %p57 = scmp.eq.s32.totalorder %s14, 1
    %p58 = por %p56, %p57
    %p59 = scmp.ne.s32.totalorder %s48, %s49
    %p60 = scmp.eq.s32.totalorder %s14, 0
    %p61 = por %p59, %p60
    %p62 = scmp.ne.s32.totalorder %s48, %s49
    %p63 = scmp.eq.s32.totalorder %s15, 1
    %p64 = por %p62, %p63
    %p66 = scmp.ne.s32.totalorder %s49, %s65
    %p67 = scmp.eq.s32.totalorder %s15, 0
    %p68 = por %p66, %p67
    %s70 = sadd.s32 %s69, 1
    %p73 = scmp.eq.s32.totalorder %s9, 1
    %p74 = scmp.ne.s32.totalorder %s69, %s71
    %p75 = scmp.eq.s32.totalorder %s9, 0
    %p76 = por %p74, %p75
    %p77 = scmp.ne.s32.totalorder %s69, %s71
    %p78 = scmp.eq.s32.totalorder %s14, 1
    %p79 = por %p77, %p78
    %p80 = scmp.ne.s32.totalorder %s71, %s72
    %p81 = scmp.eq.s32.totalorder %s14, 0
    %p82 = por %p80, %p81
    %p83 = scmp.ne.s32.totalorder %s71, %s72
    %p84 = scmp.eq.s32.totalorder %s15, 1
    %p85 = por %p83, %p84
    %p87 = scmp.ne.s32.totalorder %s72, %s86
    %p88 = scmp.eq.s32.totalorder %s15, 0
    %p89 = por %p87, %p88
    %s90 = ssub.s32 %s9, %s16
    %p91 = scmp.eq.s32.totalorder %s90, 0
    %s93 = sadd.s32 %s92, 1
    %s94 = scalar_select %p91, %s92, %s93
    %p97 = pneg %p91
    %p98 = scmp.eq.s32.totalorder %s9, 1
    %p99 = por %p97, %p98
    %p100 = scmp.ne.s32.totalorder %s92, %s95
    %p101 = scmp.eq.s32.totalorder %s9, 0
    %p102 = por %p100, %p101
    %p103 = scmp.ne.s32.totalorder %s92, %s95
    %p104 = scmp.eq.s32.totalorder %s14, 1
    %p105 = por %p103, %p104
    %p106 = scmp.ne.s32.totalorder %s95, %s96
    %p107 = scmp.eq.s32.totalorder %s14, 0
    %p108 = por %p106, %p107
    %p109 = scmp.ne.s32.totalorder %s95, %s96
    %p110 = scmp.eq.s32.totalorder %s15, 1
    %p111 = por %p109, %p110
    %p113 = scmp.ne.s32.totalorder %s96, %s112
    %p114 = scmp.eq.s32.totalorder %s15, 0
    %p115 = por %p113, %p114
    %p116 = scmp.le.s32.totalorder 1, %s9
    %p117 = scmp.lt.s32.totalorder %s9, 3
    %p118 = pnand %p116, %p117
    %p119 = pneg %p118
    // Predicated region
    $region9: #{particle_transformer_forward.8} parent=5 // pred_check
      _
    $region10: #{particle_transformer_forward.8} parent=5 // pred_check_branch
      %121 = sbr.rel (%p118) target = $region12
    $region11: #{particle_transformer_forward.8} parent=5 // pred_region
      %s122 = ssub.s32 %s9, 1
      // Predicated region
      $region13: #{particle_transformer_forward.8} parent=11 // pred_check
        %p123 = pneg %p82
      $region14: #{particle_transformer_forward.8} parent=11 // pred_check_branch
        %125 = sbr.rel (%p123) target = $region16
      $region15: #{particle_transformer_forward.8} parent=11 // pred_region
        _
      $region16: #{particle_transformer_forward.8} parent=11 // pred_fallthru
        _
    $region12: #{particle_transformer_forward.8} parent=5 // pred_fallthru
      _
    %p126 = scmp.lt.s32.totalorder %s9, 2
    // Predicated region
    $region17: #{particle_transformer_forward.8} parent=5 // pred_check
      %p127 = pneg %p126
    $region18: #{particle_transformer_forward.8} parent=5 // pred_check_branch
      %129 = sbr.rel (%p127) target = $region20
    $region19: #{particle_transformer_forward.8} parent=5 // pred_region
      // Predicated region
      $region21: #{particle_transformer_forward.8} parent=19 // pred_check
        %p130 = pneg %p29
      $region22: #{particle_transformer_forward.8} parent=19 // pred_check_branch
        %132 = sbr.rel (%p130) target = $region24
      $region23: #{particle_transformer_forward.8} parent=19 // pred_region
        %p133 = scmp.lt.s32.totalorder %s9, 1
        %s134 = scalar_select %p133, %s9, 1
        %s135 = smul.addr %s134, 12
        %s136 = smul.addr %s135, 4
        %s137 = scalar_lea.vmem %s0, %s136
      $region24: #{particle_transformer_forward.8} parent=19 // pred_fallthru
        _
      // Predicated region
      $region25: #{particle_transformer_forward.8} parent=19 // pred_check
        %p138 = pneg %p55
      $region26: #{particle_transformer_forward.8} parent=19 // pred_check_branch
        %140 = sbr.rel (%p138) target = $region28
      $region27: #{particle_transformer_forward.8} parent=19 // pred_region
        %p141 = scmp.lt.s32.totalorder %s9, 1
        %s142 = scalar_select %p141, %s9, 1
        %s143 = smul.addr %s142, 4
        %s144 = smul.addr %s143, 8
        %s145 = scalar_lea.vmem %s1, %s144
      $region28: #{particle_transformer_forward.8} parent=19 // pred_fallthru
        _
    $region20: #{particle_transformer_forward.8} parent=5 // pred_fallthru
      _
    %p146 = scmp.le.s32.totalorder 1, %s9
    %p147 = scmp.lt.s32.totalorder %s9, 3
    %p148 = pnand %p146, %p147
    %p149 = pneg %p148
    // Predicated region
    $region29: #{particle_transformer_forward.8} parent=5 // pred_check
      _
    $region30: #{particle_transformer_forward.8} parent=5 // pred_check_branch
      %151 = sbr.rel (%p148) target = $region32
    $region31: #{particle_transformer_forward.8} parent=5 // pred_region
      %s152 = ssub.s32 %s9, 1
      %p153 = scmp.lt.s32.totalorder %s14, 1
      %s154 = scalar_select %p153, %s14, 1
      %s155 = smul.addr %s154, 12
      %s156 = smul.addr %s155, 4
      %s157 = scalar_lea.vmem %s0, %s156
      %p158 = pneg %p35
      %p159 = pneg %p32
      %p160 = scmp.lt.s32.totalorder %s14, 1
      %s161 = scalar_select %p160, %s14, 1
      %s162 = smul.addr %s161, 4
      %s163 = smul.addr %s162, 8
      %s164 = scalar_lea.vmem %s1, %s163
      %p165 = pneg %p61
      %p166 = pneg %p58
      %p167 = pneg %p82
      %p168 = pneg %p79
      %p169 = pneg %p108
      %p170 = pneg %p105
      %p171 = scmp.lt.s32.totalorder %s14, 1
      %s172 = scalar_select %p171, %s14, 1
      %s173 = smul.addr %s172, 4
      %s174 = smul.addr %s173, 8
      %s175 = scalar_lea.vmem %s3, %s174
      %p176 = scmp.lt.s32.totalorder %s14, 1
      %s177 = scalar_select %p176, %s14, 1
      %s178 = smul.addr %s177, 12
      %s179 = smul.addr %s178, 4
      %s180 = scalar_lea.vmem %s0, %s179
      %p181 = scmp.lt.s32.totalorder %s14, 1
      %s182 = scalar_select %p181, %s14, 1
      %s183 = smul.addr %s182, 4
      %s184 = smul.addr %s183, 8
      %s185 = scalar_lea.vmem %s1, %s184
      %p186 = scmp.lt.s32.totalorder %s14, 1
      %s187 = scalar_select %p186, %s14, 1
      %s188 = smul.addr %s187, 4
      %s189 = smul.addr %s188, 8
      %s190 = scalar_lea.vmem %s3, %s189
      %v192 = vld [vmem:[%s180] sm:$0xff]
      %v193 = vld [vmem:[%s180 + $0x8] sm:$0xf]
      %v194 = vld [vmem:[%s180 + $0xc] sm:$0xff]
      %v195 = vld [vmem:[%s180 + $0x14] sm:$0xf]
      %v196 = vld [vmem:[%s180 + $0x18] sm:$0xff]
      %v197 = vld [vmem:[%s180 + $0x20] sm:$0xf]
      %v198 = vld [vmem:[%s180 + $0x24] sm:$0xff]
      %v199 = vld [vmem:[%s180 + $0x2c] sm:$0xf]
      %v200 = vlaneseq
      %v201 = vshrl.u32 %v200, 7
      %v202 = vadd.s32 %v201, 8
      %v203 = vadd.s32 %v201, 16
      %v204 = vadd.s32 %v201, 24
      %vm205 = vcmp.lt.s32.totalorder %v201, 0
      %v206 = vsub.s32 0, %v201
      %v207 = vsel %vm205, %v206, %v201
      %v208 = vshrl.u32 %v207, 3
      %v209 = vand.u32 %v207, 7
      %v210 = vsub.s32 0, %v209
      %v211 = vsel %vm205, %v210, %v209
      %vm212 = vcmp.lt.s32.totalorder %v202, 0
      %v213 = vsub.s32 0, %v202
      %v214 = vsel %vm212, %v213, %v202
      %v215 = vshrl.u32 %v214, 3
      %v216 = vand.u32 %v214, 7
      %v217 = vsub.s32 0, %v216
      %v218 = vsel %vm212, %v217, %v216
      %vm219 = vcmp.lt.s32.totalorder %v203, 0
      %v220 = vsub.s32 0, %v203
      %v221 = vsel %vm219, %v220, %v203
      %v222 = vshrl.u32 %v221, 3
      %v223 = vand.u32 %v221, 7
      %v224 = vsub.s32 0, %v223
      %v225 = vsel %vm219, %v224, %v223
      %vm226 = vcmp.lt.s32.totalorder %v204, 0
      %v227 = vsub.s32 0, %v204
      %v228 = vsel %vm226, %v227, %v204
      %v229 = vshrl.u32 %v228, 3
      %v230 = vand.u32 %v228, 7
      %v231 = vsub.s32 0, %v230
      %v232 = vsel %vm226, %v231, %v230
      %vm233 = vcmp.ne.s32.totalorder %v211, 0
      %vm234 = vcmp.ne.s32.totalorder %v218, 0
      %vm235 = vcmp.ne.s32.totalorder %v225, 0
      %vm236 = vcmp.ne.s32.totalorder %v232, 0
      %vm237 = vcmp.lt.s32.totalorder %v211, 0
      %vm238 = vcmp.lt.s32.totalorder %v218, 0
      %vm239 = vcmp.lt.s32.totalorder %v225, 0
      %vm240 = vcmp.lt.s32.totalorder %v232, 0
      %vm241 = vmand %vm237, %vm233
      %vm242 = vmand %vm238, %vm234
      %vm243 = vmand %vm239, %vm235
      %vm244 = vmand %vm240, %vm236
      %v245 = vadd.s32 %v211, 8
      %v246 = vadd.s32 %v218, 8
      %v247 = vadd.s32 %v225, 8
      %v248 = vadd.s32 %v232, 8
      %v249 = vsel %vm241, %v245, %v211
      %v250 = vsel %vm242, %v246, %v218
      %v251 = vsel %vm243, %v247, %v225
      %v252 = vsel %vm244, %v248, %v232
      %v253 = vlaneseq
      %v254 = vand.u32 %v253, 127
      %vm255 = vcmp.lt.s32.totalorder %v254, 0
      %v256 = vsub.s32 0, %v254
      %v257 = vsel %vm255, %v256, %v254
      %v258 = vshrl.u32 %v257, 3
      %v259 = vand.u32 %v257, 7
      %v260 = vsub.s32 0, %v259
      %v261 = vsel %vm255, %v260, %v259
      %vm262 = vcmp.ne.s32.totalorder %v261, 0
      %vm263 = vcmp.lt.s32.totalorder %v261, 0
      %vm264 = vmand %vm263, %vm262
      %v265 = vadd.s32 %v261, 8
      %v266 = vsel %vm264, %v265, %v261
      %vm267 = vcmp.le.s32.totalorder %v266, %v249
      %vm268 = vcmp.le.s32.totalorder %v266, %v250
      %vm269 = vcmp.le.s32.totalorder %v266, %v251
      %vm270 = vcmp.le.s32.totalorder %v266, %v252
      %v275 = vunpack.c.l.b16 %v192
      %v276 = vunpack.c.l.b16 %v194
      %v277 = vunpack.c.l.b16 %v196
      %v278 = vunpack.c.l.b16 %v198
      %v279 = vpack.c.b16 %v276, %v275
      %v280 = vpack.c.b16 %v278, %v277
      %v281 = vunpack.c.h.b16 %v192
      %v282 = vunpack.c.h.b16 %v194
      %v283 = vunpack.c.h.b16 %v196
      %v284 = vunpack.c.h.b16 %v198
      %v285 = vpack.c.b16 %v282, %v281
      %v286 = vpack.c.b16 %v284, %v283
      %vm287 = vcmask 261120
      %v289 = vsel %vm287, %v279, 0
      %v292 = vsel %vm287, %v280, 0
      %v295 = vsel %vm287, %v285, 0
      %v298 = vsel %vm287, %v286, 0
      %300 = vmatprep.subr.bf16.mxu0 0
      %301 = vmatpush1.bf16.xpose.msra.mxu0 %v295
      %302 = vmatprep.subr.bf16.mxu0 0
      %303 = vmatpush1.bf16.xpose.msra.mxu0 %v298
      %304 = vmatprep.subr.bf16.mxu0 0
      %305 = vmatpush1.bf16.xpose.msra.mxu0 0
      %306 = vmatprep.subr.bf16.mxu0 0
      %307 = vmatpush1.bf16.xpose.msra.mxu0 0
      %308 = vmatprep.subr.bf16.mxu0 0
      %309 = vmatpush1.bf16.xpose.msra.mxu0 0
      %310 = vmatprep.subr.bf16.mxu0 0
      %311 = vmatpush1.bf16.xpose.msra.mxu0 0
      %312 = vmatprep.subr.bf16.mxu0 0
      %313 = vmatpush1.bf16.xpose.msra.mxu0 0
      %314 = vmatprep.subr.bf16.mxu0 0
      %315 = vmatpush1.bf16.xpose.msra.mxu0 0
      %316 = vmatprep.subr.bf16.mxu0 0
      %317 = vmatpush1.bf16.xpose.msra.mxu0 0
      %318 = vmatprep.subr.bf16.mxu0 0
      %319 = vmatpush1.bf16.xpose.msra.mxu0 0
      %320 = vmatprep.subr.bf16.mxu0 0
      %321 = vmatpush1.bf16.xpose.msra.mxu0 0
      %322 = vmatprep.subr.bf16.mxu0 0
      %323 = vmatpush1.bf16.xpose.msra.mxu0 0
      %324 = vmatprep.subr.bf16.mxu0 0
      %325 = vmatpush1.bf16.xpose.msra.mxu0 0
      %326 = vmatprep.subr.bf16.mxu0 0
      %327 = vmatpush1.bf16.xpose.msra.mxu0 0
      %328 = vmatprep.subr.bf16.mxu0 0
      %329 = vmatpush1.bf16.xpose.msra.mxu0 0
      %330 = vmatprep.subr.bf16.mxu0 0
      %331 = vmatpush1.bf16.xpose.msra.mxu0 0
      %332 = vmatprep.mubr.bf16.mxu0 0
      %333 = vmatmul.mubr.bf16.gmra.mrb[0].mxu0 %v289
      %v334 = vpop.f32.mrb[0].mxu0
      %v335 = vadd.f32 0.0, %v334
      %v336 = vpop.f32.mrb[0].mxu0
      %v337 = vpop.f32.mrb[0].mxu0
      %v338 = vadd.f32 0.0, %v337
      %v339 = vpop.f32.mrb[0].mxu0
      %340 = vmatprep.mubr.bf16.mxu0 0
      %341 = vmatmul.mubr.bf16.gmra.mrb[0].mxu0 %v292
      %v342 = vpop.f32.mrb[0].mxu0
      %v343 = vadd.f32 0.0, %v342
      %v344 = vpop.f32.mrb[0].mxu0
      %v345 = vpop.f32.mrb[0].mxu0
      %v346 = vadd.f32 0.0, %v345
      %v347 = vpop.f32.mrb[0].mxu0
      %348 = vdwg.mxu0
      %v349 = vsel %vm267, %v335, -1e+30
      %v350 = vsel %vm268, %v338, -1e+30
      %v351 = vsel %vm269, %v343, -1e+30
      %v352 = vsel %vm270, %v346, -1e+30
      %v353 = vsel %vm287, %v349, -inf
      %354 = vmax.xlane.f32.xlu0 %v353
      %v355 = vpop.xlane.xlu0 %354
      %v356 = vsel %vm287, %v350, -inf
      %357 = vmax.xlane.f32.xlu0 %v356
      %v358 = vpop.xlane.xlu0 %357
      %v359 = vsel %vm287, %v351, -inf
      %360 = vmax.xlane.f32.xlu0 %v359
      %v361 = vpop.xlane.xlu0 %360
      %v362 = vsel %vm287, %v352, -inf
      %363 = vmax.xlane.f32.xlu0 %v362
      %v364 = vpop.xlane.xlu0 %363
      %v365 = vsub.f32 %v349, %v355
      %v366 = vsub.f32 %v350, %v358
      %v367 = vsub.f32 %v351, %v361
      %v368 = vsub.f32 %v352, %v364
      %v369 = vmul.f32 %v365, 1.442695
      %v370 = vpow.pop %v369
      %v371 = vmul.f32 %v366, 1.442695
      %v372 = vpow.pop %v371
      %v373 = vmul.f32 %v367, 1.442695
      %v374 = vpow.pop %v373
      %v375 = vmul.f32 %v368, 1.442695
      %v376 = vpow.pop %v375
      %v377 = vsel %vm287, %v370, 0.0
      %378 = vadd.xlane.f32.xlu0 %v377
      %v379 = vpop.xlane.xlu0 %378
      %v380 = vsel %vm287, %v372, 0.0
      %381 = vadd.xlane.f32.xlu0 %v380
      %v382 = vpop.xlane.xlu0 %381
      %v383 = vsel %vm287, %v374, 0.0
      %384 = vadd.xlane.f32.xlu0 %v383
      %v385 = vpop.xlane.xlu0 %384
      %v386 = vsel %vm287, %v376, 0.0
      %387 = vadd.xlane.f32.xlu0 %v386
      %v388 = vpop.xlane.xlu0 %387
      %v389 = vrcp.pop %v379
      %v390 = vrcp.pop %v382
      %v391 = vrcp.pop %v385
      %v392 = vrcp.pop %v388
      %v393 = vmul.f32 %v370, %v389
      %v394 = vmul.f32 %v372, %v390
      %v395 = vmul.f32 %v374, %v391
      %v396 = vmul.f32 %v376, %v392
      %v397 = vpack.c.bf16 %v394, %v393
      %v398 = vpack.c.bf16 %v396, %v395
      %v403 = vunpack.c.l.b16 %v193
      %v404 = vunpack.c.l.b16 %v195
      %v405 = vunpack.c.l.b16 %v197
      %v406 = vunpack.c.l.b16 %v199
      %v407 = vpack.c.b16 %v404, %v403
      %v408 = vpack.c.b16 %v406, %v405
      %v412 = vsel %vm287, %v397, 0
      %v415 = vsel %vm287, %v398, 0
      %417 = vmatprep.subr.bf16.mxu0 0
      %418 = vmatpush1.bf16.msra.mxu0 %v407
      %419 = vmatprep.subr.bf16.mxu0 0
      %420 = vmatpush1.bf16.msra.mxu0 %v408
      %421 = vmatprep.subr.bf16.mxu0 0
      %422 = vmatpush1.bf16.msra.mxu0 0
      %423 = vmatprep.subr.bf16.mxu0 0
      %424 = vmatpush1.bf16.msra.mxu0 0
      %425 = vmatprep.subr.bf16.mxu0 0
      %426 = vmatpush1.bf16.msra.mxu0 0
      %427 = vmatprep.subr.bf16.mxu0 0
      %428 = vmatpush1.bf16.msra.mxu0 0
      %429 = vmatprep.subr.bf16.mxu0 0
      %430 = vmatpush1.bf16.msra.mxu0 0
      %431 = vmatprep.subr.bf16.mxu0 0
      %432 = vmatpush1.bf16.msra.mxu0 0
      %433 = vmatprep.subr.bf16.mxu0 0
      %434 = vmatpush1.bf16.msra.mxu0 0
      %435 = vmatprep.subr.bf16.mxu0 0
      %436 = vmatpush1.bf16.msra.mxu0 0
      %437 = vmatprep.subr.bf16.mxu0 0
      %438 = vmatpush1.bf16.msra.mxu0 0
      %439 = vmatprep.subr.bf16.mxu0 0
      %440 = vmatpush1.bf16.msra.mxu0 0
      %441 = vmatprep.subr.bf16.mxu0 0
      %442 = vmatpush1.bf16.msra.mxu0 0
      %443 = vmatprep.subr.bf16.mxu0 0
      %444 = vmatpush1.bf16.msra.mxu0 0
      %445 = vmatprep.subr.bf16.mxu0 0
      %446 = vmatpush1.bf16.msra.mxu0 0
      %447 = vmatprep.subr.bf16.mxu0 0
      %448 = vmatpush1.bf16.msra.mxu0 0
      %449 = vmatprep.mubr.bf16.mxu0 0
      %450 = vmatmul.mubr.bf16.gmra.mrb[0].mxu0 %v412
      %v451 = vpop.f32.mrb[0].mxu0
      %v452 = vadd.f32 0.0, %v451
      %v453 = vpop.f32.mrb[0].mxu0
      %v454 = vpop.f32.mrb[0].mxu0
      %v455 = vadd.f32 0.0, %v454
      %v456 = vpop.f32.mrb[0].mxu0
      %457 = vmatprep.mubr.bf16.mxu0 0
      %458 = vmatmul.mubr.bf16.gmra.mrb[0].mxu0 %v415
      %v459 = vpop.f32.mrb[0].mxu0
      %v460 = vadd.f32 0.0, %v459
      %v461 = vpop.f32.mrb[0].mxu0
      %v462 = vpop.f32.mrb[0].mxu0
      %v463 = vadd.f32 0.0, %v462
      %v464 = vpop.f32.mrb[0].mxu0
      %465 = vdwg.mxu0
      %466 = vrot.lane.b32.xlu0 %v279, 96
      %v467 = vpop.permute.xlu0 %466
      %468 = vrot.lane.b32.xlu0 %v280, 96
      %v469 = vpop.permute.xlu0 %468
      %470 = vrot.lane.b32.xlu0 %v285, 96
      %v471 = vpop.permute.xlu0 %470
      %472 = vrot.lane.b32.xlu0 %v286, 96
      %v473 = vpop.permute.xlu0 %472
      %v475 = vsel %vm287, %v467, 0
      %v478 = vsel %vm287, %v469, 0
      %v481 = vsel %vm287, %v471, 0
      %v484 = vsel %vm287, %v473, 0
      %486 = vmatprep.subr.bf16.mxu0 0
      %487 = vmatpush1.bf16.xpose.msra.mxu0 %v481
      %488 = vmatprep.subr.bf16.mxu0 0
      %489 = vmatpush1.bf16.xpose.msra.mxu0 %v484
      %490 = vmatprep.subr.bf16.mxu0 0
      %491 = vmatpush1.bf16.xpose.msra.mxu0 0
      %492 = vmatprep.subr.bf16.mxu0 0
      %493 = vmatpush1.bf16.xpose.msra.mxu0 0
      %494 = vmatprep.subr.bf16.mxu0 0
      %495 = vmatpush1.bf16.xpose.msra.mxu0 0
      %496 = vmatprep.subr.bf16.mxu0 0
      %497 = vmatpush1.bf16.xpose.msra.mxu0 0
      %498 = vmatprep.subr.bf16.mxu0 0
      %499 = vmatpush1.bf16.xpose.msra.mxu0 0
      %500 = vmatprep.subr.bf16.mxu0 0
      %501 = vmatpush1.bf16.xpose.msra.mxu0 0
      %502 = vmatprep.subr.bf16.mxu0 0
      %503 = vmatpush1.bf16.xpose.msra.mxu0 0
      %504 = vmatprep.subr.bf16.mxu0 0
      %505 = vmatpush1.bf16.xpose.msra.mxu0 0
      %506 = vmatprep.subr.bf16.mxu0 0
      %507 = vmatpush1.bf16.xpose.msra.mxu0 0
      %508 = vmatprep.subr.bf16.mxu0 0
      %509 = vmatpush1.bf16.xpose.msra.mxu0 0
      %510 = vmatprep.subr.bf16.mxu0 0
      %511 = vmatpush1.bf16.xpose.msra.mxu0 0
      %512 = vmatprep.subr.bf16.mxu0 0
      %513 = vmatpush1.bf16.xpose.msra.mxu0 0
      %514 = vmatprep.subr.bf16.mxu0 0
      %515 = vmatpush1.bf16.xpose.msra.mxu0 0
      %516 = vmatprep.subr.bf16.mxu0 0
      %517 = vmatpush1.bf16.xpose.msra.mxu0 0
      %518 = vmatprep.mubr.bf16.mxu0 0
      %519 = vmatmul.mubr.bf16.gmra.mrb[0].mxu0 %v475
      %v520 = vpop.f32.mrb[0].mxu0
      %v521 = vadd.f32 0.0, %v520
      %v522 = vpop.f32.mrb[0].mxu0
      %v523 = vpop.f32.mrb[0].mxu0
      %v524 = vadd.f32 0.0, %v523
      %v525 = vpop.f32.mrb[0].mxu0
      %526 = vmatprep.mubr.bf16.mxu0 0
      %527 = vmatmul.mubr.bf16.gmra.mrb[0].mxu0 %v478
      %v528 = vpop.f32.mrb[0].mxu0
      %v529 = vadd.f32 0.0, %v528
      %v530 = vpop.f32.mrb[0].mxu0
      %v531 = vpop.f32.mrb[0].mxu0
      %v532 = vadd.f32 0.0, %v531
      %v533 = vpop.f32.mrb[0].mxu0
      %534 = vdwg.mxu0
      %v535 = vsel %vm267, %v521, -1e+30
      %v536 = vsel %vm268, %v524, -1e+30
      %v537 = vsel %vm269, %v529, -1e+30
      %v538 = vsel %vm270, %v532, -1e+30
      %v539 = vsel %vm287, %v535, -inf
      %540 = vmax.xlane.f32.xlu0 %v539
      %v541 = vpop.xlane.xlu0 %540
      %v542 = vsel %vm287, %v536, -inf
      %543 = vmax.xlane.f32.xlu0 %v542
      %v544 = vpop.xlane.xlu0 %543
      %v545 = vsel %vm287, %v537, -inf
      %546 = vmax.xlane.f32.xlu0 %v545
      %v547 = vpop.xlane.xlu0 %546
      %v548 = vsel %vm287, %v538, -inf
      %549 = vmax.xlane.f32.xlu0 %v548
      %v550 = vpop.xlane.xlu0 %549
      %v551 = vsub.f32 %v535, %v541
      %v552 = vsub.f32 %v536, %v544
      %v553 = vsub.f32 %v537, %v547
      %v554 = vsub.f32 %v538, %v550
      %v555 = vmul.f32 %v551, 1.442695
      %v556 = vpow.pop %v555
      %v557 = vmul.f32 %v552, 1.442695
      %v558 = vpow.pop %v557
      %v559 = vmul.f32 %v553, 1.442695
      %v560 = vpow.pop %v559
      %v561 = vmul.f32 %v554, 1.442695
      %v562 = vpow.pop %v561
      %v563 = vsel %vm287, %v556, 0.0
      %564 = vadd.xlane.f32.xlu0 %v563
      %v565 = vpop.xlane.xlu0 %564
      %v566 = vsel %vm287, %v558, 0.0
      %567 = vadd.xlane.f32.xlu0 %v566
      %v568 = vpop.xlane.xlu0 %567
      %v569 = vsel %vm287, %v560, 0.0
      %570 = vadd.xlane.f32.xlu0 %v569
      %v571 = vpop.xlane.xlu0 %570
      %v572 = vsel %vm287, %v562, 0.0
      %573 = vadd.xlane.f32.xlu0 %v572
      %v574 = vpop.xlane.xlu0 %573
      %v575 = vrcp.pop %v565
      %v576 = vrcp.pop %v568
      %v577 = vrcp.pop %v571
      %v578 = vrcp.pop %v574
      %v579 = vmul.f32 %v556, %v575
      %v580 = vmul.f32 %v558, %v576
      %v581 = vmul.f32 %v560, %v577
      %v582 = vmul.f32 %v562, %v578
      %v583 = vpack.c.bf16 %v580, %v579
      %v584 = vpack.c.bf16 %v582, %v581
      %585 = vrot.lane.b32.xlu0 %v407, 96
      %v586 = vpop.permute.xlu0 %585
      %587 = vrot.lane.b32.xlu0 %v408, 96
      %v588 = vpop.permute.xlu0 %587
      %v592 = vsel %vm287, %v583, 0
      %v595 = vsel %vm287, %v584, 0
      %597 = vmatprep.subr.bf16.mxu0 0
      %598 = vmatpush1.bf16.msra.mxu0 %v586
      %599 = vmatprep.subr.bf16.mxu0 0
      %600 = vmatpush1.bf16.msra.mxu0 %v588
      %601 = vmatprep.subr.bf16.mxu0 0
      %602 = vmatpush1.bf16.msra.mxu0 0
      %603 = vmatprep.subr.bf16.mxu0 0
      %604 = vmatpush1.bf16.msra.mxu0 0
      %605 = vmatprep.subr.bf16.mxu0 0
      %606 = vmatpush1.bf16.msra.mxu0 0
      %607 = vmatprep.subr.bf16.mxu0 0
      %608 = vmatpush1.bf16.msra.mxu0 0
      %609 = vmatprep.subr.bf16.mxu0 0
      %610 = vmatpush1.bf16.msra.mxu0 0
      %611 = vmatprep.subr.bf16.mxu0 0
      %612 = vmatpush1.bf16.msra.mxu0 0
      %613 = vmatprep.subr.bf16.mxu0 0
      %614 = vmatpush1.bf16.msra.mxu0 0
      %615 = vmatprep.subr.bf16.mxu0 0
      %616 = vmatpush1.bf16.msra.mxu0 0
      %617 = vmatprep.subr.bf16.mxu0 0
      %618 = vmatpush1.bf16.msra.mxu0 0
      %619 = vmatprep.subr.bf16.mxu0 0
      %620 = vmatpush1.bf16.msra.mxu0 0
      %621 = vmatprep.subr.bf16.mxu0 0
      %622 = vmatpush1.bf16.msra.mxu0 0
      %623 = vmatprep.subr.bf16.mxu0 0
      %624 = vmatpush1.bf16.msra.mxu0 0
      %625 = vmatprep.subr.bf16.mxu0 0
      %626 = vmatpush1.bf16.msra.mxu0 0
      %627 = vmatprep.subr.bf16.mxu0 0
      %628 = vmatpush1.bf16.msra.mxu0 0
      %629 = vmatprep.mubr.bf16.mxu0 0
      %630 = vmatmul.mubr.bf16.gmra.mrb[0].mxu0 %v592
      %v631 = vpop.f32.mrb[0].mxu0
      %v632 = vadd.f32 0.0, %v631
      %v633 = vpop.f32.mrb[0].mxu0
      %v634 = vpop.f32.mrb[0].mxu0
      %v635 = vadd.f32 0.0, %v634
      %v636 = vpop.f32.mrb[0].mxu0
      %637 = vmatprep.mubr.bf16.mxu0 0
      %638 = vmatmul.mubr.bf16.gmra.mrb[0].mxu0 %v595
      %v639 = vpop.f32.mrb[0].mxu0
      %v640 = vadd.f32 0.0, %v639
      %v641 = vpop.f32.mrb[0].mxu0
      %v642 = vpop.f32.mrb[0].mxu0
      %v643 = vadd.f32 0.0, %v642
      %v644 = vpop.f32.mrb[0].mxu0
      %645 = vdwg.mxu0
      %646 = vrot.lane.b32.xlu0 %v279, 64
      %v647 = vpop.permute.xlu0 %646
      %648 = vrot.lane.b32.xlu0 %v280, 64
      %v649 = vpop.permute.xlu0 %648
      %650 = vrot.lane.b32.xlu0 %v285, 64
      %v651 = vpop.permute.xlu0 %650
      %652 = vrot.lane.b32.xlu0 %v286, 64
      %v653 = vpop.permute.xlu0 %652
      %v655 = vsel %vm287, %v647, 0
      %v658 = vsel %vm287, %v649, 0
      %v661 = vsel %vm287, %v651, 0
      %v664 = vsel %vm287, %v653, 0
      %666 = vmatprep.subr.bf16.mxu0 0
      %667 = vmatpush1.bf16.xpose.msra.mxu0 %v661
      %668 = vmatprep.subr.bf16.mxu0 0
      %669 = vmatpush1.bf16.xpose.msra.mxu0 %v664
      %670 = vmatprep.subr.bf16.mxu0 0
      %671 = vmatpush1.bf16.xpose.msra.mxu0 0
      %672 = vmatprep.subr.bf16.mxu0 0
      %673 = vmatpush1.bf16.xpose.msra.mxu0 0
      %674 = vmatprep.subr.bf16.mxu0 0
      %675 = vmatpush1.bf16.xpose.msra.mxu0 0
      %676 = vmatprep.subr.bf16.mxu0 0
      %677 = vmatpush1.bf16.xpose.msra.mxu0 0
      %678 = vmatprep.subr.bf16.mxu0 0
      %679 = vmatpush1.bf16.xpose.msra.mxu0 0
      %680 = vmatprep.subr.bf16.mxu0 0
      %681 = vmatpush1.bf16.xpose.msra.mxu0 0
      %682 = vmatprep.subr.bf16.mxu0 0
      %683 = vmatpush1.bf16.xpose.msra.mxu0 0
      %684 = vmatprep.subr.bf16.mxu0 0
      %685 = vmatpush1.bf16.xpose.msra.mxu0 0
      %686 = vmatprep.subr.bf16.mxu0 0
      %687 = vmatpush1.bf16.xpose.msra.mxu0 0
      %688 = vmatprep.subr.bf16.mxu0 0
      %689 = vmatpush1.bf16.xpose.msra.mxu0 0
      %690 = vmatprep.subr.bf16.mxu0 0
      %691 = vmatpush1.bf16.xpose.msra.mxu0 0
      %692 = vmatprep.subr.bf16.mxu0 0
      %693 = vmatpush1.bf16.xpose.msra.mxu0 0
      %694 = vmatprep.subr.bf16.mxu0 0
      %695 = vmatpush1.bf16.xpose.msra.mxu0 0
      %696 = vmatprep.subr.bf16.mxu0 0
      %697 = vmatpush1.bf16.xpose.msra.mxu0 0
      %698 = vmatprep.mubr.bf16.mxu0 0
      %699 = vmatmul.mubr.bf16.gmra.mrb[0].mxu0 %v655
      %v700 = vpop.f32.mrb[0].mxu0
      %v701 = vadd.f32 0.0, %v700
      %v702 = vpop.f32.mrb[0].mxu0
      %v703 = vpop.f32.mrb[0].mxu0
      %v704 = vadd.f32 0.0, %v703
      %v705 = vpop.f32.mrb[0].mxu0
      %706 = vmatprep.mubr.bf16.mxu0 0
      %707 = vmatmul.mubr.bf16.gmra.mrb[0].mxu0 %v658
      %v708 = vpop.f32.mrb[0].mxu0
      %v709 = vadd.f32 0.0, %v708
      %v710 = vpop.f32.mrb[0].mxu0
      %v711 = vpop.f32.mrb[0].mxu0
      %v712 = vadd.f32 0.0, %v711
      %v713 = vpop.f32.mrb[0].mxu0
      %714 = vdwg.mxu0
      %v715 = vsel %vm267, %v701, -1e+30
      %v716 = vsel %vm268, %v704, -1e+30
      %v717 = vsel %vm269, %v709, -1e+30
      %v718 = vsel %vm270, %v712, -1e+30
      %v719 = vsel %vm287, %v715, -inf
      %720 = vmax.xlane.f32.xlu0 %v719
      %v721 = vpop.xlane.xlu0 %720
      %v722 = vsel %vm287, %v716, -inf
      %723 = vmax.xlane.f32.xlu0 %v722
      %v724 = vpop.xlane.xlu0 %723
      %v725 = vsel %vm287, %v717, -inf
      %726 = vmax.xlane.f32.xlu0 %v725
      %v727 = vpop.xlane.xlu0 %726
      %v728 = vsel %vm287, %v718, -inf
      %729 = vmax.xlane.f32.xlu0 %v728
      %v730 = vpop.xlane.xlu0 %729
      %v731 = vsub.f32 %v715, %v721
      %v732 = vsub.f32 %v716, %v724
      %v733 = vsub.f32 %v717, %v727
      %v734 = vsub.f32 %v718, %v730
      %v735 = vmul.f32 %v731, 1.442695
      %v736 = vpow.pop %v735
      %v737 = vmul.f32 %v732, 1.442695
      %v738 = vpow.pop %v737
      %v739 = vmul.f32 %v733, 1.442695
      %v740 = vpow.pop %v739
      %v741 = vmul.f32 %v734, 1.442695
      %v742 = vpow.pop %v741
      %v743 = vsel %vm287, %v736, 0.0
      %744 = vadd.xlane.f32.xlu0 %v743
      %v745 = vpop.xlane.xlu0 %744
      %v746 = vsel %vm287, %v738, 0.0
      %747 = vadd.xlane.f32.xlu0 %v746
      %v748 = vpop.xlane.xlu0 %747
      %v749 = vsel %vm287, %v740, 0.0
      %750 = vadd.xlane.f32.xlu0 %v749
      %v751 = vpop.xlane.xlu0 %750
      %v752 = vsel %vm287, %v742, 0.0
      %753 = vadd.xlane.f32.xlu0 %v752
      %v754 = vpop.xlane.xlu0 %753
      %v755 = vrcp.pop %v745
      %v756 = vrcp.pop %v748
      %v757 = vrcp.pop %v751
      %v758 = vrcp.pop %v754
      %v759 = vmul.f32 %v736, %v755
      %v760 = vmul.f32 %v738, %v756
      %v761 = vmul.f32 %v740, %v757
      %v762 = vmul.f32 %v742, %v758
      %v763 = vpack.c.bf16 %v760, %v759
      %v764 = vpack.c.bf16 %v762, %v761
      %765 = vrot.lane.b32.xlu0 %v407, 64
      %v766 = vpop.permute.xlu0 %765
      %767 = vrot.lane.b32.xlu0 %v408, 64
      %v768 = vpop.permute.xlu0 %767
      %v772 = vsel %vm287, %v763, 0
      %v775 = vsel %vm287, %v764, 0
      %777 = vmatprep.subr.bf16.mxu0 0
      %778 = vmatpush1.bf16.msra.mxu0 %v766
      %779 = vmatprep.subr.bf16.mxu0 0
      %780 = vmatpush1.bf16.msra.mxu0 %v768
      %781 = vmatprep.subr.bf16.mxu0 0
      %782 = vmatpush1.bf16.msra.mxu0 0
      %783 = vmatprep.subr.bf16.mxu0 0
      %784 = vmatpush1.bf16.msra.mxu0 0
      %785 = vmatprep.subr.bf16.mxu0 0
      %786 = vmatpush1.bf16.msra.mxu0 0
      %787 = vmatprep.subr.bf16.mxu0 0
      %788 = vmatpush1.bf16.msra.mxu0 0
      %789 = vmatprep.subr.bf16.mxu0 0
      %790 = vmatpush1.bf16.msra.mxu0 0
      %791 = vmatprep.subr.bf16.mxu0 0
      %792 = vmatpush1.bf16.msra.mxu0 0
      %793 = vmatprep.subr.bf16.mxu0 0
      %794 = vmatpush1.bf16.msra.mxu0 0
      %795 = vmatprep.subr.bf16.mxu0 0
      %796 = vmatpush1.bf16.msra.mxu0 0
      %797 = vmatprep.subr.bf16.mxu0 0
      %798 = vmatpush1.bf16.msra.mxu0 0
      %799 = vmatprep.subr.bf16.mxu0 0
      %800 = vmatpush1.bf16.msra.mxu0 0
      %801 = vmatprep.subr.bf16.mxu0 0
      %802 = vmatpush1.bf16.msra.mxu0 0
      %803 = vmatprep.subr.bf16.mxu0 0
      %804 = vmatpush1.bf16.msra.mxu0 0
      %805 = vmatprep.subr.bf16.mxu0 0
      %806 = vmatpush1.bf16.msra.mxu0 0
      %807 = vmatprep.subr.bf16.mxu0 0
      %808 = vmatpush1.bf16.msra.mxu0 0
      %809 = vmatprep.mubr.bf16.mxu0 0
      %810 = vmatmul.mubr.bf16.gmra.mrb[0].mxu0 %v772
      %v811 = vpop.f32.mrb[0].mxu0
      %v812 = vadd.f32 0.0, %v811
      %v813 = vpop.f32.mrb[0].mxu0
      %v814 = vpop.f32.mrb[0].mxu0
      %v815 = vadd.f32 0.0, %v814
      %v816 = vpop.f32.mrb[0].mxu0
      %817 = vmatprep.mubr.bf16.mxu0 0
      %818 = vmatmul.mubr.bf16.gmra.mrb[0].mxu0 %v775
      %v819 = vpop.f32.mrb[0].mxu0
      %v820 = vadd.f32 0.0, %v819
      %v821 = vpop.f32.mrb[0].mxu0
      %v822 = vpop.f32.mrb[0].mxu0
      %v823 = vadd.f32 0.0, %v822
      %v824 = vpop.f32.mrb[0].mxu0
      %825 = vdwg.mxu0
      %826 = vrot.lane.b32.xlu0 %v279, 32
      %v827 = vpop.permute.xlu0 %826
      %828 = vrot.lane.b32.xlu0 %v280, 32
      %v829 = vpop.permute.xlu0 %828
      %830 = vrot.lane.b32.xlu0 %v285, 32
      %v831 = vpop.permute.xlu0 %830
      %832 = vrot.lane.b32.xlu0 %v286, 32
      %v833 = vpop.permute.xlu0 %832
      %v835 = vsel %vm287, %v827, 0
      %v838 = vsel %vm287, %v829, 0
      %v841 = vsel %vm287, %v831, 0
      %v844 = vsel %vm287, %v833, 0
      %846 = vmatprep.subr.bf16.mxu0 0
      %847 = vmatpush1.bf16.xpose.msra.mxu0 %v841
      %848 = vmatprep.subr.bf16.mxu0 0
      %849 = vmatpush1.bf16.xpose.msra.mxu0 %v844
      %850 = vmatprep.subr.bf16.mxu0 0
      %851 = vmatpush1.bf16.xpose.msra.mxu0 0
      %852 = vmatprep.subr.bf16.mxu0 0
      %853 = vmatpush1.bf16.xpose.msra.mxu0 0
      %854 = vmatprep.subr.bf16.mxu0 0
      %855 = vmatpush1.bf16.xpose.msra.mxu0 0
      %856 = vmatprep.subr.bf16.mxu0 0
      %857 = vmatpush1.bf16.xpose.msra.mxu0 0
      %858 = vmatprep.subr.bf16.mxu0 0
      %859 = vmatpush1.bf16.xpose.msra.mxu0 0
      %860 = vmatprep.subr.bf16.mxu0 0
      %861 = vmatpush1.bf16.xpose.msra.mxu0 0
      %862 = vmatprep.subr.bf16.mxu0 0
      %863 = vmatpush1.bf16.xpose.msra.mxu0 0
      %864 = vmatprep.subr.bf16.mxu0 0
      %865 = vmatpush1.bf16.xpose.msra.mxu0 0
      %866 = vmatprep.subr.bf16.mxu0 0
      %867 = vmatpush1.bf16.xpose.msra.mxu0 0
      %868 = vmatprep.subr.bf16.mxu0 0
      %869 = vmatpush1.bf16.xpose.msra.mxu0 0
      %870 = vmatprep.subr.bf16.mxu0 0
      %871 = vmatpush1.bf16.xpose.msra.mxu0 0
      %872 = vmatprep.subr.bf16.mxu0 0
      %873 = vmatpush1.bf16.xpose.msra.mxu0 0
      %874 = vmatprep.subr.bf16.mxu0 0
      %875 = vmatpush1.bf16.xpose.msra.mxu0 0
      %876 = vmatprep.subr.bf16.mxu0 0
      %877 = vmatpush1.bf16.xpose.msra.mxu0 0
      %878 = vmatprep.mubr.bf16.mxu0 0
      %879 = vmatmul.mubr.bf16.gmra.mrb[0].mxu0 %v835
      %v880 = vpop.f32.mrb[0].mxu0
      %v881 = vadd.f32 0.0, %v880
      %v882 = vpop.f32.mrb[0].mxu0
      %v883 = vpop.f32.mrb[0].mxu0
      %v884 = vadd.f32 0.0, %v883
      %v885 = vpop.f32.mrb[0].mxu0
      %886 = vmatprep.mubr.bf16.mxu0 0
      %887 = vmatmul.mubr.bf16.gmra.mrb[0].mxu0 %v838
      %v888 = vpop.f32.mrb[0].mxu0
      %v889 = vadd.f32 0.0, %v888
      %v890 = vpop.f32.mrb[0].mxu0
      %v891 = vpop.f32.mrb[0].mxu0
      %v892 = vadd.f32 0.0, %v891
      %v893 = vpop.f32.mrb[0].mxu0
      %894 = vdwg.mxu0
      %v895 = vsel %vm267, %v881, -1e+30
      %v896 = vsel %vm268, %v884, -1e+30
      %v897 = vsel %vm269, %v889, -1e+30
      %v898 = vsel %vm270, %v892, -1e+30
      %v899 = vsel %vm287, %v895, -inf
      %900 = vmax.xlane.f32.xlu0 %v899
      %v901 = vpop.xlane.xlu0 %900
      %v902 = vsel %vm287, %v896, -inf
      %903 = vmax.xlane.f32.xlu0 %v902
      %v904 = vpop.xlane.xlu0 %903
      %v905 = vsel %vm287, %v897, -inf
      %906 = vmax.xlane.f32.xlu0 %v905
      %v907 = vpop.xlane.xlu0 %906
      %v908 = vsel %vm287, %v898, -inf
      %909 = vmax.xlane.f32.xlu0 %v908
      %v910 = vpop.xlane.xlu0 %909
      %v911 = vsub.f32 %v895, %v901
      %v912 = vsub.f32 %v896, %v904
      %v913 = vsub.f32 %v897, %v907
      %v914 = vsub.f32 %v898, %v910
      %v915 = vmul.f32 %v911, 1.442695
      %v916 = vpow.pop %v915
      %v917 = vmul.f32 %v912, 1.442695
      %v918 = vpow.pop %v917
      %v919 = vmul.f32 %v913, 1.442695
      %v920 = vpow.pop %v919
      %v921 = vmul.f32 %v914, 1.442695
      %v922 = vpow.pop %v921
      %v923 = vsel %vm287, %v916, 0.0
      %924 = vadd.xlane.f32.xlu0 %v923
      %v925 = vpop.xlane.xlu0 %924
      %v926 = vsel %vm287, %v918, 0.0
      %927 = vadd.xlane.f32.xlu0 %v926
      %v928 = vpop.xlane.xlu0 %927
      %v929 = vsel %vm287, %v920, 0.0
      %930 = vadd.xlane.f32.xlu0 %v929
      %v931 = vpop.xlane.xlu0 %930
      %v932 = vsel %vm287, %v922, 0.0
      %933 = vadd.xlane.f32.xlu0 %v932
      %v934 = vpop.xlane.xlu0 %933
      %v935 = vrcp.pop %v925
      %v936 = vrcp.pop %v928
      %v937 = vrcp.pop %v931
      %v938 = vrcp.pop %v934
      %v939 = vmul.f32 %v916, %v935
      %v940 = vmul.f32 %v918, %v936
      %v941 = vmul.f32 %v920, %v937
      %v942 = vmul.f32 %v922, %v938
      %v943 = vpack.c.bf16 %v940, %v939
      %v944 = vpack.c.bf16 %v942, %v941
      %945 = vrot.lane.b32.xlu0 %v407, 32
      %v946 = vpop.permute.xlu0 %945
      %947 = vrot.lane.b32.xlu0 %v408, 32
      %v948 = vpop.permute.xlu0 %947
      %v952 = vsel %vm287, %v943, 0
      %v955 = vsel %vm287, %v944, 0
      %957 = vmatprep.subr.bf16.mxu0 0
      %958 = vmatpush1.bf16.msra.mxu0 %v946
      %959 = vmatprep.subr.bf16.mxu0 0
      %960 = vmatpush1.bf16.msra.mxu0 %v948
      %961 = vmatprep.subr.bf16.mxu0 0
      %962 = vmatpush1.bf16.msra.mxu0 0
      %963 = vmatprep.subr.bf16.mxu0 0
      %964 = vmatpush1.bf16.msra.mxu0 0
      %965 = vmatprep.subr.bf16.mxu0 0
      %966 = vmatpush1.bf16.msra.mxu0 0
      %967 = vmatprep.subr.bf16.mxu0 0
      %968 = vmatpush1.bf16.msra.mxu0 0
      %969 = vmatprep.subr.bf16.mxu0 0
      %970 = vmatpush1.bf16.msra.mxu0 0
      %971 = vmatprep.subr.bf16.mxu0 0
      %972 = vmatpush1.bf16.msra.mxu0 0
      %973 = vmatprep.subr.bf16.mxu0 0
      %974 = vmatpush1.bf16.msra.mxu0 0
      %975 = vmatprep.subr.bf16.mxu0 0
      %976 = vmatpush1.bf16.msra.mxu0 0
      %977 = vmatprep.subr.bf16.mxu0 0
      %978 = vmatpush1.bf16.msra.mxu0 0
      %979 = vmatprep.subr.bf16.mxu0 0
      %980 = vmatpush1.bf16.msra.mxu0 0
      %981 = vmatprep.subr.bf16.mxu0 0
      %982 = vmatpush1.bf16.msra.mxu0 0
      %983 = vmatprep.subr.bf16.mxu0 0
      %984 = vmatpush1.bf16.msra.mxu0 0
      %985 = vmatprep.subr.bf16.mxu0 0
      %986 = vmatpush1.bf16.msra.mxu0 0
      %987 = vmatprep.subr.bf16.mxu0 0
      %988 = vmatpush1.bf16.msra.mxu0 0
      %989 = vmatprep.mubr.bf16.mxu0 0
      %990 = vmatmul.mubr.bf16.gmra.mrb[0].mxu0 %v952
      %v991 = vpop.f32.mrb[0].mxu0
      %v992 = vadd.f32 0.0, %v991
      %v993 = vpop.f32.mrb[0].mxu0
      %v994 = vpop.f32.mrb[0].mxu0
      %v995 = vadd.f32 0.0, %v994
      %v996 = vpop.f32.mrb[0].mxu0
      %997 = vmatprep.mubr.bf16.mxu0 0
      %998 = vmatmul.mubr.bf16.gmra.mrb[0].mxu0 %v955
      %v999 = vpop.f32.mrb[0].mxu0
      %v1000 = vadd.f32 0.0, %v999
      %v1001 = vpop.f32.mrb[0].mxu0
      %v1002 = vpop.f32.mrb[0].mxu0
      %v1003 = vadd.f32 0.0, %v1002
      %v1004 = vpop.f32.mrb[0].mxu0
      %1005 = vdwg.mxu0
      %1010 = vrot.lane.b32.xlu0 %v632, 32
      %v1011 = vpop.permute.xlu0 %1010
      %1012 = vrot.lane.b32.xlu0 %v635, 32
      %v1013 = vpop.permute.xlu0 %1012
      %1014 = vrot.lane.b32.xlu0 %v640, 32
      %v1015 = vpop.permute.xlu0 %1014
      %1016 = vrot.lane.b32.xlu0 %v643, 32
      %v1017 = vpop.permute.xlu0 %1016
      %1026 = vrot.lane.b32.xlu0 %v812, 64
      %v1027 = vpop.permute.xlu0 %1026
      %1028 = vrot.lane.b32.xlu0 %v815, 64
      %v1029 = vpop.permute.xlu0 %1028
      %1030 = vrot.lane.b32.xlu0 %v820, 64
      %v1031 = vpop.permute.xlu0 %1030
      %1032 = vrot.lane.b32.xlu0 %v823, 64
      %v1033 = vpop.permute.xlu0 %1032
      %1042 = vrot.lane.b32.xlu0 %v992, 96
      %v1043 = vpop.permute.xlu0 %1042
      %1044 = vrot.lane.b32.xlu0 %v995, 96
      %v1045 = vpop.permute.xlu0 %1044
      %1046 = vrot.lane.b32.xlu0 %v1000, 96
      %v1047 = vpop.permute.xlu0 %1046
      %1048 = vrot.lane.b32.xlu0 %v1003, 96
      %v1049 = vpop.permute.xlu0 %1048
      %v1054 = vsel %vm287, %v452, %v1011
      %v1055 = vsel %vm287, %v455, %v1013
      %v1056 = vsel %vm287, %v460, %v1015
      %v1057 = vsel %vm287, %v463, %v1017
      %vm1058 = vcmask 523264
      %v1059 = vsel %vm1058, %v1054, %v1027
      %v1060 = vsel %vm1058, %v1055, %v1029
      %v1061 = vsel %vm1058, %v1056, %v1031
      %v1062 = vsel %vm1058, %v1057, %v1033
      %vm1063 = vcmask 785408
      %v1064 = vsel %vm1063, %v1059, %v1043
      %v1065 = vsel %vm1063, %v1060, %v1045
      %v1066 = vsel %vm1063, %v1061, %v1047
      %v1067 = vsel %vm1063, %v1062, %v1049
      %v1068 = vpack.c.bf16 %v1065, %v1064
      %v1069 = vpack.c.bf16 %v1067, %v1066
      %v1070 = vld [vmem:[%s2] sm:$0xf]
      %v1071 = vld [vmem:[%s2 + $0x4] sm:$0xf]
      %v1072 = vld [vmem:[%s2 + $0x8] sm:$0xf]
      %v1073 = vld [vmem:[%s2 + $0xc] sm:$0xf]
      %v1074 = vld [vmem:[%s2 + $0x10] sm:$0xf]
      %v1075 = vld [vmem:[%s2 + $0x14] sm:$0xf]
      %v1076 = vld [vmem:[%s2 + $0x18] sm:$0xf]
      %v1077 = vld [vmem:[%s2 + $0x1c] sm:$0xf]
      %v1078 = vld [vmem:[%s2 + $0x20] sm:$0xf]
      %v1079 = vld [vmem:[%s2 + $0x24] sm:$0xf]
      %v1080 = vld [vmem:[%s2 + $0x28] sm:$0xf]
      %v1081 = vld [vmem:[%s2 + $0x2c] sm:$0xf]
      %v1082 = vld [vmem:[%s2 + $0x30] sm:$0xf]
      %v1083 = vld [vmem:[%s2 + $0x34] sm:$0xf]
      %v1084 = vld [vmem:[%s2 + $0x38] sm:$0xf]
      %v1085 = vld [vmem:[%s2 + $0x3c] sm:$0xf]
      %v1086 = vld [vmem:[%s185] sm:$0xff]
      %v1087 = vld [vmem:[%s185 + $0x8] sm:$0xff]
      %v1088 = vld [vmem:[%s185 + $0x10] sm:$0xff]
      %v1089 = vld [vmem:[%s185 + $0x18] sm:$0xff]
      %v1106 = vunpack.c.l.b16 %v1070
      %v1107 = vunpack.c.l.b16 %v1071
      %v1108 = vunpack.c.l.b16 %v1072
      %v1109 = vunpack.c.l.b16 %v1073
      %v1110 = vunpack.c.l.b16 %v1074
      %v1111 = vunpack.c.l.b16 %v1075
      %v1112 = vunpack.c.l.b16 %v1076
      %v1113 = vunpack.c.l.b16 %v1077
      %v1114 = vunpack.c.l.b16 %v1078
      %v1115 = vunpack.c.l.b16 %v1079
      %v1116 = vunpack.c.l.b16 %v1080
      %v1117 = vunpack.c.l.b16 %v1081
      %v1118 = vunpack.c.l.b16 %v1082
      %v1119 = vunpack.c.l.b16 %v1083
      %v1120 = vunpack.c.l.b16 %v1084
      %v1121 = vunpack.c.l.b16 %v1085
      %v1122 = vpack.c.b16 %v1107, %v1106
      %v1123 = vpack.c.b16 %v1109, %v1108
      %v1124 = vpack.c.b16 %v1111, %v1110
      %v1125 = vpack.c.b16 %v1113, %v1112
      %v1126 = vpack.c.b16 %v1115, %v1114
      %v1127 = vpack.c.b16 %v1117, %v1116
      %v1128 = vpack.c.b16 %v1119, %v1118
      %v1129 = vpack.c.b16 %v1121, %v1120
      %1138 = vmatprep.subr.bf16.mxu0 0
      %1139 = vmatpush1.bf16.msra.mxu0 %v1122
      %1140 = vmatprep.subr.bf16.mxu0 0
      %1141 = vmatpush1.bf16.msra.mxu0 %v1123
      %1142 = vmatprep.subr.bf16.mxu0 0
      %1143 = vmatpush1.bf16.msra.mxu0 %v1124
      %1144 = vmatprep.subr.bf16.mxu0 0
      %1145 = vmatpush1.bf16.msra.mxu0 %v1125
      %1146 = vmatprep.subr.bf16.mxu0 0
      %1147 = vmatpush1.bf16.msra.mxu0 %v1126
      %1148 = vmatprep.subr.bf16.mxu0 0
      %1149 = vmatpush1.bf16.msra.mxu0 %v1127
      %1150 = vmatprep.subr.bf16.mxu0 0
      %1151 = vmatpush1.bf16.msra.mxu0 %v1128
      %1152 = vmatprep.subr.bf16.mxu0 0
      %1153 = vmatpush1.bf16.msra.mxu0 %v1129
      %1154 = vmatprep.subr.bf16.mxu0 0
      %1155 = vmatpush1.bf16.msra.mxu0 0
      %1156 = vmatprep.subr.bf16.mxu0 0
      %1157 = vmatpush1.bf16.msra.mxu0 0
      %1158 = vmatprep.subr.bf16.mxu0 0
      %1159 = vmatpush1.bf16.msra.mxu0 0
      %1160 = vmatprep.subr.bf16.mxu0 0
      %1161 = vmatpush1.bf16.msra.mxu0 0
      %1162 = vmatprep.subr.bf16.mxu0 0
      %1163 = vmatpush1.bf16.msra.mxu0 0
      %1164 = vmatprep.subr.bf16.mxu0 0
      %1165 = vmatpush1.bf16.msra.mxu0 0
      %1166 = vmatprep.subr.bf16.mxu0 0
      %1167 = vmatpush1.bf16.msra.mxu0 0
      %1168 = vmatprep.subr.bf16.mxu0 0
      %1169 = vmatpush1.bf16.msra.mxu0 0
      %1170 = vmatprep.mubr.bf16.mxu0 0
      %1171 = vmatmul.mubr.bf16.gmra.mrb[0].mxu0 %v1068
      %v1172 = vpop.f32.mrb[0].mxu0
      %v1173 = vadd.f32 %v1086, %v1172
      %v1174 = vpop.f32.mrb[0].mxu0
      %v1175 = vpop.f32.mrb[0].mxu0
      %v1176 = vadd.f32 %v1087, %v1175
      %v1177 = vpop.f32.mrb[0].mxu0
      %1178 = vmatprep.mubr.bf16.mxu0 0
      %1179 = vmatmul.mubr.bf16.gmra.mrb[0].mxu0 %v1069
      %v1180 = vpop.f32.mrb[0].mxu0
      %v1181 = vadd.f32 %v1088, %v1180
      %v1182 = vpop.f32.mrb[0].mxu0
      %v1183 = vpop.f32.mrb[0].mxu0
      %v1184 = vadd.f32 %v1089, %v1183
      %v1185 = vpop.f32.mrb[0].mxu0
      %1186 = vdwg.mxu0
      %1187 = vst [vmem:[%s190] sm:$0xff] %v1173
      %1188 = vst [vmem:[%s190 + $0x8] sm:$0xff] %v1176
      %1189 = vst [vmem:[%s190 + $0x10] sm:$0xff] %v1181
      %1190 = vst [vmem:[%s190 + $0x18] sm:$0xff] %v1184
      %p1191 = scmp.lt.s32.totalorder %s14, 1
      %s1192 = scalar_select %p1191, %s14, 1
      %s1193 = smul.addr %s1192, 4
      %s1194 = smul.addr %s1193, 8
      %s1195 = scalar_lea.vmem %s3, %s1194
      // Predicated region
      $region33: #{particle_transformer_forward.8} parent=31 // pred_check
        %p1196 = pneg %p105
      $region34: #{particle_transformer_forward.8} parent=31 // pred_check_branch
        %1198 = sbr.rel (%p1196) target = $region36
      $region35: #{particle_transformer_forward.8} parent=31 // pred_region
        _
      $region36: #{particle_transformer_forward.8} parent=31 // pred_fallthru
        _
    $region32: #{particle_transformer_forward.8} parent=5 // pred_fallthru
      _
    %p1199 = scmp.le.s32.totalorder 2, %s9
    // Predicated region
    $region37: #{particle_transformer_forward.8} parent=5 // pred_check
      %p1200 = pneg %p1199
    $region38: #{particle_transformer_forward.8} parent=5 // pred_check_branch
      %1202 = sbr.rel (%p1200) target = $region40
    $region39: #{particle_transformer_forward.8} parent=5 // pred_region
      %s1203 = ssub.s32 %s9, 2
      // Predicated region
      $region41: #{particle_transformer_forward.8} parent=39 // pred_check
        %p1204 = pneg %p111
      $region42: #{particle_transformer_forward.8} parent=39 // pred_check_branch
        %1206 = sbr.rel (%p1204) target = $region44
      $region43: #{particle_transformer_forward.8} parent=39 // pred_region
        %p1207 = scmp.lt.s32.totalorder %s15, 1
        %s1208 = scalar_select %p1207, %s15, 1
        %s1209 = smul.addr %s1208, 4
        %s1210 = smul.addr %s1209, 8
        %s1211 = scalar_lea.vmem %s3, %s1210
      $region44: #{particle_transformer_forward.8} parent=39 // pred_fallthru
        _
    $region40: #{particle_transformer_forward.8} parent=5 // pred_fallthru
      _
  $region6: #{particle_transformer_forward.8} parent=0 // loop_footer
    %s13 = sadd.s32 1, %s9
  $region7: #{particle_transformer_forward.8} parent=0 // loop_footer_branch
    %8 = sbr.rel target = $region3
  $region8: #{particle_transformer_forward.8} parent=0 // loop_exit
    _

// kernel: particle_transformer_forward.9
$region0: #{particle_transformer_forward.9}
  #allocation0 [shape = 'u32[]', space=smem, size = 0x4, offset = 0x4, fixed_abs, tag = 'smem constant byte address 0x4 - core index']
  #allocation1 [shape = 'u32[144,128]{1,0:T(1,128)}', space=vmem, size = 0x12000, scoped, tag = 'internal scratch']
  #allocation2 [shape = 'f32[64,128]{1,0:T(8,128)}', space=vmem, size = 0x8000, scoped, tag = 'scratch operand']
  #allocation3 [shape = 'bf16[64,128]{1,0:T(16,128)(2,1)}', space=vmem, size = 0x4000, scoped, tag = 'scratch operand']
  %s0 = inlined_call_operand.vmem [shape: f32[64,128], index: 0, kind: input, shape index: {}]
  %s1 = inlined_call_operand.vmem [shape: f32[1,128], index: 1, kind: input, shape index: {}]
  %s2 = inlined_call_operand.vmem [shape: f32[1,128], index: 2, kind: input, shape index: {}]
  %s3 = inlined_call_operand.vmem [shape: bf16[128,512], index: 3, kind: input, shape index: {}]
  %s4 = inlined_call_operand.vmem [shape: f32[1,512], index: 4, kind: input, shape index: {}]
  %s5 = inlined_call_operand.vmem [shape: bf16[512,128], index: 5, kind: input, shape index: {}]
  %s6 = inlined_call_operand.vmem [shape: f32[1,128], index: 6, kind: input, shape index: {}]
  %s7 = inlined_call_operand.vmem [shape: f32[64,128], index: 7, kind: output, shape index: {}]
  %s8 = sld [smem:[#allocation0]]
  $region46: #{particle_transformer_forward.9} parent=0
    _
  %s10 = ssub.s32 1, %s8
  %s11 = scalar_select 0, %s10, %s8
  // Predicated region
  $region2: #{particle_transformer_forward.9} parent=0 // pred_check
    _
  $region3: #{particle_transformer_forward.9} parent=0 // pred_check_branch
    %13 = sbr.rel (0) target = $region5
  $region4: #{particle_transformer_forward.9} parent=0 // pred_region
    _
  $region5: #{particle_transformer_forward.9} parent=0 // pred_fallthru
    _
  // Predicated region
  $region6: #{particle_transformer_forward.9} parent=0 // pred_check
    _
  $region7: #{particle_transformer_forward.9} parent=0 // pred_check_branch
    %15 = sbr.rel (0) target = $region9
  $region8: #{particle_transformer_forward.9} parent=0 // pred_region
    _
  $region9: #{particle_transformer_forward.9} parent=0 // pred_fallthru
    _
  // Predicated region
  $region10: #{particle_transformer_forward.9} parent=0 // pred_check
    _
  $region11: #{particle_transformer_forward.9} parent=0 // pred_check_branch
    %17 = sbr.rel (0) target = $region13
  $region12: #{particle_transformer_forward.9} parent=0 // pred_region
    _
  $region13: #{particle_transformer_forward.9} parent=0 // pred_fallthru
    _
  // Predicated region
  $region14: #{particle_transformer_forward.9} parent=0 // pred_check
    _
  $region15: #{particle_transformer_forward.9} parent=0 // pred_check_branch
    %19 = sbr.rel (0) target = $region17
  $region16: #{particle_transformer_forward.9} parent=0 // pred_region
    _
  $region17: #{particle_transformer_forward.9} parent=0 // pred_fallthru
    _
  // Predicated region
  $region18: #{particle_transformer_forward.9} parent=0 // pred_check
    _
  $region19: #{particle_transformer_forward.9} parent=0 // pred_check_branch
    %21 = sbr.rel (0) target = $region21
  $region20: #{particle_transformer_forward.9} parent=0 // pred_region
    _
  $region21: #{particle_transformer_forward.9} parent=0 // pred_fallthru
    _
  // Predicated region
  $region22: #{particle_transformer_forward.9} parent=0 // pred_check
    _
  $region23: #{particle_transformer_forward.9} parent=0 // pred_check_branch
    %23 = sbr.rel (0) target = $region25
  $region24: #{particle_transformer_forward.9} parent=0 // pred_region
    _
  $region25: #{particle_transformer_forward.9} parent=0 // pred_fallthru
    _
  // Predicated region
  $region26: #{particle_transformer_forward.9} parent=0 // pred_check
    _
  $region27: #{particle_transformer_forward.9} parent=0 // pred_check_branch
    %25 = sbr.rel (0) target = $region29
  $region28: #{particle_transformer_forward.9} parent=0 // pred_region
    _
  $region29: #{particle_transformer_forward.9} parent=0 // pred_fallthru
    _
  %p27 = scmp.eq.s32.totalorder 0, 0
  // Predicated region
  $region30: #{particle_transformer_forward.9} parent=0 // pred_check
    %p28 = pneg %p27
  $region31: #{particle_transformer_forward.9} parent=0 // pred_check_branch
    %30 = sbr.rel (%p28) target = $region33
  $region32: #{particle_transformer_forward.9} parent=0 // pred_region
    %v31 = vld [vmem:[%s0] sm:$0xff]
    %v32 = vld [vmem:[%s0 + $0x8] sm:$0xff]
    %v33 = vld [vmem:[%s0 + $0x10] sm:$0xff]
    %v34 = vld [vmem:[%s0 + $0x18] sm:$0xff]
    %v35 = vld [vmem:[%s0 + $0x20] sm:$0xff]
    %v36 = vld [vmem:[%s0 + $0x28] sm:$0xff]
    %v37 = vld [vmem:[%s0 + $0x30] sm:$0xff]
    %v38 = vld [vmem:[%s0 + $0x38] sm:$0xff]
    %v39 = vld [vmem:[%s1] sm:$0x1]
    %v40 = vld [vmem:[%s2] sm:$0x1]
    %41 = vadd.xlane.f32.xlu0 %v31
    %v42 = vpop.xlane.xlu0 %41
    %43 = vadd.xlane.f32.xlu0 %v32
    %v44 = vpop.xlane.xlu0 %43
    %45 = vadd.xlane.f32.xlu0 %v33
    %v46 = vpop.xlane.xlu0 %45
    %47 = vadd.xlane.f32.xlu0 %v34
    %v48 = vpop.xlane.xlu0 %47
    %49 = vadd.xlane.f32.xlu0 %v35
    %v50 = vpop.xlane.xlu0 %49
    %51 = vadd.xlane.f32.xlu0 %v36
    %v52 = vpop.xlane.xlu0 %51
    %53 = vadd.xlane.f32.xlu0 %v37
    %v54 = vpop.xlane.xlu0 %53
    %55 = vadd.xlane.f32.xlu0 %v38
    %v56 = vpop.xlane.xlu0 %55
    %v57 = vrcp.pop 128.0
    %v58 = vmul.f32 %v42, %v57
    %v59 = vmul.f32 %v44, %v57
    %v60 = vmul.f32 %v46, %v57
    %v61 = vmul.f32 %v48, %v57
    %v62 = vmul.f32 %v50, %v57
    %v63 = vmul.f32 %v52, %v57
    %v64 = vmul.f32 %v54, %v57
    %v65 = vmul.f32 %v56, %v57
    %v66 = vsub.f32 %v31, %v58
    %v67 = vsub.f32 %v32, %v59
    %v68 = vsub.f32 %v33, %v60
    %v69 = vsub.f32 %v34, %v61
    %v70 = vsub.f32 %v35, %v62
    %v71 = vsub.f32 %v36, %v63
    %v72 = vsub.f32 %v37, %v64
    %v73 = vsub.f32 %v38, %v65
    %v74 = vmul.f32 %v66, %v66
    %v75 = vmul.f32 %v67, %v67
    %v76 = vmul.f32 %v68, %v68
    %v77 = vmul.f32 %v69, %v69
    %v78 = vmul.f32 %v70, %v70
    %v79 = vmul.f32 %v71, %v71
    %v80 = vmul.f32 %v72, %v72
    %v81 = vmul.f32 %v73, %v73
    %82 = vadd.xlane.f32.xlu0 %v74
    %v83 = vpop.xlane.xlu0 %82
    %84 = vadd.xlane.f32.xlu0 %v75
    %v85 = vpop.xlane.xlu0 %84
    %86 = vadd.xlane.f32.xlu0 %v76
    %v87 = vpop.xlane.xlu0 %86
    %88 = vadd.xlane.f32.xlu0 %v77
    %v89 = vpop.xlane.xlu0 %88
    %90 = vadd.xlane.f32.xlu0 %v78
    %v91 = vpop.xlane.xlu0 %90
    %92 = vadd.xlane.f32.xlu0 %v79
    %v93 = vpop.xlane.xlu0 %92
    %94 = vadd.xlane.f32.xlu0 %v80
    %v95 = vpop.xlane.xlu0 %94
    %96 = vadd.xlane.f32.xlu0 %v81
    %v97 = vpop.xlane.xlu0 %96
    %v98 = vmul.f32 %v83, %v57
    %v99 = vmul.f32 %v85, %v57
    %v100 = vmul.f32 %v87, %v57
    %v101 = vmul.f32 %v89, %v57
    %v102 = vmul.f32 %v91, %v57
    %v103 = vmul.f32 %v93, %v57
    %v104 = vmul.f32 %v95, %v57
    %v105 = vmul.f32 %v97, %v57
    %v106 = vadd.f32 %v98, 1e-05
    %v107 = vadd.f32 %v99, 1e-05
    %v108 = vadd.f32 %v100, 1e-05
    %v109 = vadd.f32 %v101, 1e-05
    %v110 = vadd.f32 %v102, 1e-05
    %v111 = vadd.f32 %v103, 1e-05
    %v112 = vadd.f32 %v104, 1e-05
    %v113 = vadd.f32 %v105, 1e-05
    %v114 = vrsqrt.pop %v106
    %v115 = vrsqrt.pop %v107
    %v116 = vrsqrt.pop %v108
    %v117 = vrsqrt.pop %v109
    %v118 = vrsqrt.pop %v110
    %v119 = vrsqrt.pop %v111
    %v120 = vrsqrt.pop %v112
    %v121 = vrsqrt.pop %v113
    %v122 = vmul.f32 %v66, %v114
    %v123 = vmul.f32 %v67, %v115
    %v124 = vmul.f32 %v68, %v116
    %v125 = vmul.f32 %v69, %v117
    %v126 = vmul.f32 %v70, %v118
    %v127 = vmul.f32 %v71, %v119
    %v128 = vmul.f32 %v72, %v120
    %v129 = vmul.f32 %v73, %v121
    %v131 = vlaneseq
    %v132 = vshrl.u32 %v131, 7
    %v133 = vsub.s32 0, %v132
    %v134 = vrot.slane %v39, %v133
    %v136 = vmul.f32 %v122, %v134
    %v137 = vmul.f32 %v123, %v134
    %v138 = vmul.f32 %v124, %v134
    %v139 = vmul.f32 %v125, %v134
    %v140 = vmul.f32 %v126, %v134
    %v141 = vmul.f32 %v127, %v134
    %v142 = vmul.f32 %v128, %v134
    %v143 = vmul.f32 %v129, %v134
    %v145 = vlaneseq
    %v146 = vshrl.u32 %v145, 7
    %v147 = vsub.s32 0, %v146
    %v148 = vrot.slane %v40, %v147
    %v150 = vadd.f32 %v136, %v148
    %v151 = vadd.f32 %v137, %v148
    %v152 = vadd.f32 %v138, %v148
    %v153 = vadd.f32 %v139, %v148
    %v154 = vadd.f32 %v140, %v148
    %v155 = vadd.f32 %v141, %v148
    %v156 = vadd.f32 %v142, %v148
    %v157 = vadd.f32 %v143, %v148
    %v158 = vpack.c.bf16 %v151, %v150
    %v159 = vpack.c.bf16 %v153, %v152
    %v160 = vpack.c.bf16 %v155, %v154
    %v161 = vpack.c.bf16 %v157, %v156
    %162 = vst [vmem:[#allocation3] sm:$0xff] %v158
    %163 = vst [vmem:[#allocation3 + $0x8] sm:$0xff] %v159
    %164 = vst [vmem:[#allocation3 + $0x10] sm:$0xff] %v160
    %165 = vst [vmem:[#allocation3 + $0x18] sm:$0xff] %v161
    %166 = vst [vmem:[#allocation2] sm:$0xff] 0.0
    %167 = vst [vmem:[#allocation2 + $0x8] sm:$0xff] 0.0
    %168 = vst [vmem:[#allocation2 + $0x10] sm:$0xff] 0.0
    %169 = vst [vmem:[#allocation2 + $0x18] sm:$0xff] 0.0
    %170 = vst [vmem:[#allocation2 + $0x20] sm:$0xff] 0.0
    %171 = vst [vmem:[#allocation2 + $0x28] sm:$0xff] 0.0
    %172 = vst [vmem:[#allocation2 + $0x30] sm:$0xff] 0.0
    %173 = vst [vmem:[#allocation2 + $0x38] sm:$0xff] 0.0
  $region33: #{particle_transformer_forward.9} parent=0 // pred_fallthru
    _
  %v174 = vld [vmem:[#allocation3] sm:$0xff]
  %v175 = vld [vmem:[#allocation3 + $0x8] sm:$0xff]
  %v176 = vld [vmem:[#allocation3 + $0x10] sm:$0xff]
  %v177 = vld [vmem:[#allocation3 + $0x18] sm:$0xff]
  %v178 = vld [vmem:[%s3] sm:$0xff]
  %v179 = vld [vmem:[%s3 + $0x8] sm:$0xff]
  %v180 = vld [vmem:[%s3 + $0x10] sm:$0xff]
  %v181 = vld [vmem:[%s3 + $0x18] sm:$0xff]
  %v182 = vld [vmem:[%s3 + $0x20] sm:$0xff]
  %v183 = vld [vmem:[%s3 + $0x28] sm:$0xff]
  %v184 = vld [vmem:[%s3 + $0x30] sm:$0xff]
  %v185 = vld [vmem:[%s3 + $0x38] sm:$0xff]
  %v186 = vld [vmem:[%s3 + $0x40] sm:$0xff]
  %v187 = vld [vmem:[%s3 + $0x48] sm:$0xff]
  %v188 = vld [vmem:[%s3 + $0x50] sm:$0xff]
  %v189 = vld [vmem:[%s3 + $0x58] sm:$0xff]
  %v190 = vld [vmem:[%s3 + $0x60] sm:$0xff]
  %v191 = vld [vmem:[%s3 + $0x68] sm:$0xff]
  %v192 = vld [vmem:[%s3 + $0x70] sm:$0xff]
  %v193 = vld [vmem:[%s3 + $0x78] sm:$0xff]
  %v194 = vld [vmem:[%s3 + $0x80] sm:$0xff]
  %v195 = vld [vmem:[%s3 + $0x88] sm:$0xff]
  %v196 = vld [vmem:[%s3 + $0x90] sm:$0xff]
  %v197 = vld [vmem:[%s3 + $0x98] sm:$0xff]
  %v198 = vld [vmem:[%s3 + $0xa0] sm:$0xff]
  %v199 = vld [vmem:[%s3 + $0xa8] sm:$0xff]
  %v200 = vld [vmem:[%s3 + $0xb0] sm:$0xff]
  %v201 = vld [vmem:[%s3 + $0xb8] sm:$0xff]
  %v202 = vld [vmem:[%s3 + $0xc0] sm:$0xff]
  %v203 = vld [vmem:[%s3 + $0xc8] sm:$0xff]
  %v204 = vld [vmem:[%s3 + $0xd0] sm:$0xff]
  %v205 = vld [vmem:[%s3 + $0xd8] sm:$0xff]
  %v206 = vld [vmem:[%s3 + $0xe0] sm:$0xff]
  %v207 = vld [vmem:[%s3 + $0xe8] sm:$0xff]
  %v208 = vld [vmem:[%s3 + $0xf0] sm:$0xff]
  %v209 = vld [vmem:[%s3 + $0xf8] sm:$0xff]
  %v210 = vld [vmem:[%s4] sm:$0xf]
  %v212 = vlaneseq
  %v213 = vshrl.u32 %v212, 7
  %v214 = vsub.s32 0, %v213
  %v215 = vrot.slane %v210, %v214
  %v216 = vlaneseq
  %v217 = vshrl.u32 %v216, 7
  %v218 = vsub.s32 1, %v217
  %v219 = vrot.slane %v210, %v218
  %v220 = vlaneseq
  %v221 = vshrl.u32 %v220, 7
  %v222 = vsub.s32 2, %v221
  %v223 = vrot.slane %v210, %v222
  %v224 = vlaneseq
  %v225 = vshrl.u32 %v224, 7
  %v226 = vsub.s32 3, %v225
  %v227 = vrot.slane %v210, %v226
  %v264 = vunpack.c.l.b16 %v178
  %v265 = vunpack.c.h.b16 %v178
  %v266 = vunpack.c.l.b16 %v179
  %v267 = vunpack.c.h.b16 %v179
  %v268 = vunpack.c.l.b16 %v180
  %v269 = vunpack.c.h.b16 %v180
  %v270 = vunpack.c.l.b16 %v181
  %v271 = vunpack.c.h.b16 %v181
  %v272 = vunpack.c.l.b16 %v182
  %v273 = vunpack.c.h.b16 %v182
  %v274 = vunpack.c.l.b16 %v183
  %v275 = vunpack.c.h.b16 %v183
  %v276 = vunpack.c.l.b16 %v184
  %v277 = vunpack.c.h.b16 %v184
  %v278 = vunpack.c.l.b16 %v185
  %v279 = vunpack.c.h.b16 %v185
  %v280 = vunpack.c.l.b16 %v186
  %v281 = vunpack.c.h.b16 %v186
  %v282 = vunpack.c.l.b16 %v187
  %v283 = vunpack.c.h.b16 %v187
  %v284 = vunpack.c.l.b16 %v188
  %v285 = vunpack.c.h.b16 %v188
  %v286 = vunpack.c.l.b16 %v189
  %v287 = vunpack.c.h.b16 %v189
  %v288 = vunpack.c.l.b16 %v190
  %v289 = vunpack.c.h.b16 %v190
  %v290 = vunpack.c.l.b16 %v191
  %v291 = vunpack.c.h.b16 %v191
  %v292 = vunpack.c.l.b16 %v192
  %v293 = vunpack.c.h.b16 %v192
  %v294 = vunpack.c.l.b16 %v193
  %v295 = vunpack.c.h.b16 %v193
  %v296 = vunpack.c.l.b16 %v194
  %v297 = vunpack.c.h.b16 %v194
  %v298 = vunpack.c.l.b16 %v195
  %v299 = vunpack.c.h.b16 %v195
  %v300 = vunpack.c.l.b16 %v196
  %v301 = vunpack.c.h.b16 %v196
  %v302 = vunpack.c.l.b16 %v197
  %v303 = vunpack.c.h.b16 %v197
  %v304 = vunpack.c.l.b16 %v198
  %v305 = vunpack.c.h.b16 %v198
  %v306 = vunpack.c.l.b16 %v199
  %v307 = vunpack.c.h.b16 %v199
  %v308 = vunpack.c.l.b16 %v200
  %v309 = vunpack.c.h.b16 %v200
  %v310 = vunpack.c.l.b16 %v201
  %v311 = vunpack.c.h.b16 %v201
  %v312 = vunpack.c.l.b16 %v202
  %v313 = vunpack.c.h.b16 %v202
  %v314 = vunpack.c.l.b16 %v203
  %v315 = vunpack.c.h.b16 %v203
  %v316 = vunpack.c.l.b16 %v204
  %v317 = vunpack.c.h.b16 %v204
  %v318 = vunpack.c.l.b16 %v205
  %v319 = vunpack.c.h.b16 %v205
  %v320 = vunpack.c.l.b16 %v206
  %v321 = vunpack.c.h.b16 %v206
  %v322 = vunpack.c.l.b16 %v207
  %v323 = vunpack.c.h.b16 %v207
  %v324 = vunpack.c.l.b16 %v208
  %v325 = vunpack.c.h.b16 %v208
  %v326 = vunpack.c.l.b16 %v209
  %v327 = vunpack.c.h.b16 %v209
  %v328 = vpack.c.b16 %v268, %v264
  %v329 = vpack.c.b16 %v269, %v265
  %v330 = vpack.c.b16 %v270, %v266
  %v331 = vpack.c.b16 %v271, %v267
  %v332 = vpack.c.b16 %v276, %v272
  %v333 = vpack.c.b16 %v277, %v273
  %v334 = vpack.c.b16 %v278, %v274
  %v335 = vpack.c.b16 %v279, %v275
  %v336 = vpack.c.b16 %v284, %v280
  %v337 = vpack.c.b16 %v285, %v281
  %v338 = vpack.c.b16 %v286, %v282
  %v339 = vpack.c.b16 %v287, %v283
  %v340 = vpack.c.b16 %v292, %v288
  %v341 = vpack.c.b16 %v293, %v289
  %v342 = vpack.c.b16 %v294, %v290
  %v343 = vpack.c.b16 %v295, %v291
  %v344 = vpack.c.b16 %v300, %v296
  %v345 = vpack.c.b16 %v301, %v297
  %v346 = vpack.c.b16 %v302, %v298
  %v347 = vpack.c.b16 %v303, %v299
  %v348 = vpack.c.b16 %v308, %v304
  %v349 = vpack.c.b16 %v309, %v305
  %v350 = vpack.c.b16 %v310, %v306
  %v351 = vpack.c.b16 %v311, %v307
  %v352 = vpack.c.b16 %v316, %v312
  %v353 = vpack.c.b16 %v317, %v313
  %v354 = vpack.c.b16 %v318, %v314
  %v355 = vpack.c.b16 %v319, %v315
  %v356 = vpack.c.b16 %v324, %v320
  %v357 = vpack.c.b16 %v325, %v321
  %v358 = vpack.c.b16 %v326, %v322
  %v359 = vpack.c.b16 %v327, %v323
  %392 = vmatprep.subr.bf16.mxu0 %v329
  %393 = vmatpush1.bf16.msra.mxu0 %v328
  %394 = vmatprep.subr.bf16.mxu0 %v333
  %395 = vmatpush1.bf16.msra.mxu0 %v332
  %396 = vmatprep.subr.bf16.mxu0 %v337
  %397 = vmatpush1.bf16.msra.mxu0 %v336
  %398 = vmatprep.subr.bf16.mxu0 %v341
  %399 = vmatpush1.bf16.msra.mxu0 %v340
  %400 = vmatprep.subr.bf16.mxu0 %v345
  %401 = vmatpush1.bf16.msra.mxu0 %v344
  %402 = vmatprep.subr.bf16.mxu0 %v349
  %403 = vmatpush1.bf16.msra.mxu0 %v348
  %404 = vmatprep.subr.bf16.mxu0 %v353
  %405 = vmatpush1.bf16.msra.mxu0 %v352
  %406 = vmatprep.subr.bf16.mxu0 %v357
  %407 = vmatpush1.bf16.msra.mxu0 %v356
  %408 = vmatprep.subr.bf16.mxu0 0
  %409 = vmatpush1.bf16.msra.mxu0 0
  %410 = vmatprep.subr.bf16.mxu0 0
  %411 = vmatpush1.bf16.msra.mxu0 0
  %412 = vmatprep.subr.bf16.mxu0 0
  %413 = vmatpush1.bf16.msra.mxu0 0
  %414 = vmatprep.subr.bf16.mxu0 0
  %415 = vmatpush1.bf16.msra.mxu0 0
  %416 = vmatprep.subr.bf16.mxu0 0
  %417 = vmatpush1.bf16.msra.mxu0 0
  %418 = vmatprep.subr.bf16.mxu0 0
  %419 = vmatpush1.bf16.msra.mxu0 0
  %420 = vmatprep.subr.bf16.mxu0 0
  %421 = vmatpush1.bf16.msra.mxu0 0
  %422 = vmatprep.subr.bf16.mxu0 0
  %423 = vmatpush1.bf16.msra.mxu0 0
  %424 = vmatprep.mubr.bf16.mxu0 0
  %425 = vmatmul.mubr.bf16.gmra.mrb[0].mxu0 %v174
  %v426 = vpop.f32.mrb[0].mxu0
  %v427 = vadd.f32 %v215, %v426
  %v428 = vpop.f32.mrb[0].mxu0
  %v429 = vadd.f32 %v219, %v428
  %v430 = vpop.f32.mrb[0].mxu0
  %v431 = vadd.f32 %v215, %v430
  %v432 = vpop.f32.mrb[0].mxu0
  %v433 = vadd.f32 %v219, %v432
  %434 = vmatprep.mubr.bf16.mxu0 0
  %435 = vmatmul.mubr.bf16.gmra.mrb[0].mxu0 %v175
  %v436 = vpop.f32.mrb[0].mxu0
  %v437 = vadd.f32 %v215, %v436
  %v438 = vpop.f32.mrb[0].mxu0
  %v439 = vadd.f32 %v219, %v438
  %v440 = vpop.f32.mrb[0].mxu0
  %v441 = vadd.f32 %v215, %v440
  %v442 = vpop.f32.mrb[0].mxu0
  %v443 = vadd.f32 %v219, %v442
  %444 = vmatprep.mubr.bf16.mxu0 0
  %445 = vmatmul.mubr.bf16.gmra.mrb[0].mxu0 %v176
  %v446 = vpop.f32.mrb[0].mxu0
  %v447 = vadd.f32 %v215, %v446
  %v448 = vpop.f32.mrb[0].mxu0
  %v449 = vadd.f32 %v219, %v448
  %v450 = vpop.f32.mrb[0].mxu0
  %v451 = vadd.f32 %v215, %v450
  %v452 = vpop.f32.mrb[0].mxu0
  %v453 = vadd.f32 %v219, %v452
  %454 = vmatprep.mubr.bf16.mxu0 0
  %455 = vmatmul.mubr.bf16.gmra.mrb[0].mxu0 %v177
  %v456 = vpop.f32.mrb[0].mxu0
  %v457 = vadd.f32 %v215, %v456
  %v458 = vpop.f32.mrb[0].mxu0
  %v459 = vadd.f32 %v219, %v458
  %v460 = vpop.f32.mrb[0].mxu0
  %v461 = vadd.f32 %v215, %v460
  %v462 = vpop.f32.mrb[0].mxu0
  %v463 = vadd.f32 %v219, %v462
  %464 = vdwg.mxu0
  %465 = vmatprep.subr.bf16.mxu0 %v331
  %466 = vmatpush1.bf16.msra.mxu0 %v330
  %467 = vmatprep.subr.bf16.mxu0 %v335
  %468 = vmatpush1.bf16.msra.mxu0 %v334
  %469 = vmatprep.subr.bf16.mxu0 %v339
  %470 = vmatpush1.bf16.msra.mxu0 %v338
  %471 = vmatprep.subr.bf16.mxu0 %v343
  %472 = vmatpush1.bf16.msra.mxu0 %v342
  %473 = vmatprep.subr.bf16.mxu0 %v347
  %474 = vmatpush1.bf16.msra.mxu0 %v346
  %475 = vmatprep.subr.bf16.mxu0 %v351
  %476 = vmatpush1.bf16.msra.mxu0 %v350
  %477 = vmatprep.subr.bf16.mxu0 %v355
  %478 = vmatpush1.bf16.msra.mxu0 %v354
  %479 = vmatprep.subr.bf16.mxu0 %v359
  %480 = vmatpush1.bf16.msra.mxu0 %v358
  %481 = vmatprep.subr.bf16.mxu0 0
  %482 = vmatpush1.bf16.msra.mxu0 0
  %483 = vmatprep.subr.bf16.mxu0 0
  %484 = vmatpush1.bf16.msra.mxu0 0
  %485 = vmatprep.subr.bf16.mxu0 0
  %486 = vmatpush1.bf16.msra.mxu0 0
  %487 = vmatprep.subr.bf16.mxu0 0
  %488 = vmatpush1.bf16.msra.mxu0 0
  %489 = vmatprep.subr.bf16.mxu0 0
  %490 = vmatpush1.bf16.msra.mxu0 0
  %491 = vmatprep.subr.bf16.mxu0 0
  %492 = vmatpush1.bf16.msra.mxu0 0
  %493 = vmatprep.subr.bf16.mxu0 0
  %494 = vmatpush1.bf16.msra.mxu0 0
  %495 = vmatprep.subr.bf16.mxu0 0
  %496 = vmatpush1.bf16.msra.mxu0 0
  %497 = vmatprep.mubr.bf16.mxu0 0
  %498 = vmatmul.mubr.bf16.gmra.mrb[0].mxu0 %v174
  %v499 = vpop.f32.mrb[0].mxu0
  %v500 = vadd.f32 %v223, %v499
  %v501 = vpop.f32.mrb[0].mxu0
  %v502 = vadd.f32 %v227, %v501
  %v503 = vpop.f32.mrb[0].mxu0
  %v504 = vadd.f32 %v223, %v503
  %v505 = vpop.f32.mrb[0].mxu0
  %v506 = vadd.f32 %v227, %v505
  %507 = vmatprep.mubr.bf16.mxu0 0
  %508 = vmatmul.mubr.bf16.gmra.mrb[0].mxu0 %v175
  %v509 = vpop.f32.mrb[0].mxu0
  %v510 = vadd.f32 %v223, %v509
  %v511 = vpop.f32.mrb[0].mxu0
  %v512 = vadd.f32 %v227, %v511
  %v513 = vpop.f32.mrb[0].mxu0
  %v514 = vadd.f32 %v223, %v513
  %v515 = vpop.f32.mrb[0].mxu0
  %v516 = vadd.f32 %v227, %v515
  %517 = vmatprep.mubr.bf16.mxu0 0
  %518 = vmatmul.mubr.bf16.gmra.mrb[0].mxu0 %v176
  %v519 = vpop.f32.mrb[0].mxu0
  %v520 = vadd.f32 %v223, %v519
  %v521 = vpop.f32.mrb[0].mxu0
  %v522 = vadd.f32 %v227, %v521
  %v523 = vpop.f32.mrb[0].mxu0
  %v524 = vadd.f32 %v223, %v523
  %v525 = vpop.f32.mrb[0].mxu0
  %v526 = vadd.f32 %v227, %v525
  %527 = vmatprep.mubr.bf16.mxu0 0
  %528 = vmatmul.mubr.bf16.gmra.mrb[0].mxu0 %v177
  %v529 = vpop.f32.mrb[0].mxu0
  %v530 = vadd.f32 %v223, %v529
  %v531 = vpop.f32.mrb[0].mxu0
  %v532 = vadd.f32 %v227, %v531
  %v533 = vpop.f32.mrb[0].mxu0
  %v534 = vadd.f32 %v223, %v533
  %v535 = vpop.f32.mrb[0].mxu0
  %v536 = vadd.f32 %v227, %v535
  %537 = vdwg.mxu0
  %v538 = vmul.f32 %v427, 0.5
  %v539 = vmul.f32 %v429, 0.5
  %v540 = vmul.f32 %v500, 0.5
  %v541 = vmul.f32 %v502, 0.5
  %v542 = vmul.f32 %v431, 0.5
  %v543 = vmul.f32 %v433, 0.5
  %v544 = vmul.f32 %v504, 0.5
  %v545 = vmul.f32 %v506, 0.5
  %v546 = vmul.f32 %v437, 0.5
  %v547 = vmul.f32 %v439, 0.5
  %v548 = vmul.f32 %v510, 0.5
  %v549 = vmul.f32 %v512, 0.5
  %v550 = vmul.f32 %v441, 0.5
  %v551 = vmul.f32 %v443, 0.5
  %v552 = vmul.f32 %v514, 0.5
  %v553 = vmul.f32 %v516, 0.5
  %v554 = vmul.f32 %v447, 0.5
  %v555 = vmul.f32 %v449, 0.5
  %v556 = vmul.f32 %v520, 0.5
  %v557 = vmul.f32 %v522, 0.5
  %v558 = vmul.f32 %v451, 0.5
  %v559 = vmul.f32 %v453, 0.5
  %v560 = vmul.f32 %v524, 0.5
  %v561 = vmul.f32 %v526, 0.5
  %v562 = vmul.f32 %v457, 0.5
  %v563 = vmul.f32 %v459, 0.5
  %v564 = vmul.f32 %v530, 0.5
  %v565 = vmul.f32 %v532, 0.5
  %v566 = vmul.f32 %v461, 0.5
  %v567 = vmul.f32 %v463, 0.5
  %v568 = vmul.f32 %v534, 0.5
  %v569 = vmul.f32 %v536, 0.5
  %v570 = vmul.f32 %v427, 0.70710677
  %v571 = vmul.f32 %v429, 0.70710677
  %v572 = vmul.f32 %v500, 0.70710677
  %v573 = vmul.f32 %v502, 0.70710677
  %v574 = vmul.f32 %v431, 0.70710677
  %v575 = vmul.f32 %v433, 0.70710677
  %v576 = vmul.f32 %v504, 0.70710677
  %v577 = vmul.f32 %v506, 0.70710677
  %v578 = vmul.f32 %v437, 0.70710677
  %v579 = vmul.f32 %v439, 0.70710677
  %v580 = vmul.f32 %v510, 0.70710677
  %v581 = vmul.f32 %v512, 0.70710677
  %v582 = vmul.f32 %v441, 0.70710677
  %v583 = vmul.f32 %v443, 0.70710677
  %v584 = vmul.f32 %v514, 0.70710677
  %v585 = vmul.f32 %v516, 0.70710677
  %v586 = vmul.f32 %v447, 0.70710677
  %v587 = vmul.f32 %v449, 0.70710677
  %v588 = vmul.f32 %v520, 0.70710677
  %v589 = vmul.f32 %v522, 0.70710677
  %v590 = vmul.f32 %v451, 0.70710677
  %v591 = vmul.f32 %v453, 0.70710677
  %v592 = vmul.f32 %v524, 0.70710677
  %v593 = vmul.f32 %v526, 0.70710677
  %v594 = vmul.f32 %v457, 0.70710677
  %v595 = vmul.f32 %v459, 0.70710677
  %v596 = vmul.f32 %v530, 0.70710677
  %v597 = vmul.f32 %v532, 0.70710677
  %v598 = vmul.f32 %v461, 0.70710677
  %v599 = vmul.f32 %v463, 0.70710677
  %v600 = vmul.f32 %v534, 0.70710677
  %v601 = vmul.f32 %v536, 0.70710677
  %v602 = verf.f32.pop %v570
  %v603 = verf.f32.pop %v571
  %v604 = verf.f32.pop %v572
  %v605 = verf.f32.pop %v573
  %v606 = verf.f32.pop %v574
  %v607 = verf.f32.pop %v575
  %v608 = verf.f32.pop %v576
  %v609 = verf.f32.pop %v577
  %v610 = verf.f32.pop %v578
  %v611 = verf.f32.pop %v579
  %v612 = verf.f32.pop %v580
  %v613 = verf.f32.pop %v581
  %v614 = verf.f32.pop %v582
  %v615 = verf.f32.pop %v583
  %v616 = verf.f32.pop %v584
  %v617 = verf.f32.pop %v585
  %v618 = verf.f32.pop %v586
  %v619 = verf.f32.pop %v587
  %v620 = verf.f32.pop %v588
  %v621 = verf.f32.pop %v589
  %v622 = verf.f32.pop %v590
  %v623 = verf.f32.pop %v591
  %v624 = verf.f32.pop %v592
  %v625 = verf.f32.pop %v593
  %v626 = verf.f32.pop %v594
  %v627 = verf.f32.pop %v595
  %v628 = verf.f32.pop %v596
  %v629 = verf.f32.pop %v597
  %v630 = verf.f32.pop %v598
  %v631 = verf.f32.pop %v599
  %v632 = verf.f32.pop %v600
  %v633 = verf.f32.pop %v601
  %v634 = vadd.f32 %v602, 1.0
  %v635 = vadd.f32 %v603, 1.0
  %v636 = vadd.f32 %v604, 1.0
  %v637 = vadd.f32 %v605, 1.0
  %v638 = vadd.f32 %v606, 1.0
  %v639 = vadd.f32 %v607, 1.0
  %v640 = vadd.f32 %v608, 1.0
  %v641 = vadd.f32 %v609, 1.0
  %v642 = vadd.f32 %v610, 1.0
  %v643 = vadd.f32 %v611, 1.0
  %v644 = vadd.f32 %v612, 1.0
  %v645 = vadd.f32 %v613, 1.0
  %v646 = vadd.f32 %v614, 1.0
  %v647 = vadd.f32 %v615, 1.0
  %v648 = vadd.f32 %v616, 1.0
  %v649 = vadd.f32 %v617, 1.0
  %v650 = vadd.f32 %v618, 1.0
  %v651 = vadd.f32 %v619, 1.0
  %v652 = vadd.f32 %v620, 1.0
  %v653 = vadd.f32 %v621, 1.0
  %v654 = vadd.f32 %v622, 1.0
  %v655 = vadd.f32 %v623, 1.0
  %v656 = vadd.f32 %v624, 1.0
  %v657 = vadd.f32 %v625, 1.0
  %v658 = vadd.f32 %v626, 1.0
  %v659 = vadd.f32 %v627, 1.0
  %v660 = vadd.f32 %v628, 1.0
  %v661 = vadd.f32 %v629, 1.0
  %v662 = vadd.f32 %v630, 1.0
  %v663 = vadd.f32 %v631, 1.0
  %v664 = vadd.f32 %v632, 1.0
  %v665 = vadd.f32 %v633, 1.0
  %v666 = vmul.f32 %v538, %v634
  %v667 = vmul.f32 %v539, %v635
  %v668 = vmul.f32 %v540, %v636
  %v669 = vmul.f32 %v541, %v637
  %v670 = vmul.f32 %v542, %v638
  %v671 = vmul.f32 %v543, %v639
  %v672 = vmul.f32 %v544, %v640
  %v673 = vmul.f32 %v545, %v641
  %v674 = vmul.f32 %v546, %v642
  %v675 = vmul.f32 %v547, %v643
  %v676 = vmul.f32 %v548, %v644
  %v677 = vmul.f32 %v549, %v645
  %v678 = vmul.f32 %v550, %v646
  %v679 = vmul.f32 %v551, %v647
  %v680 = vmul.f32 %v552, %v648
  %v681 = vmul.f32 %v553, %v649
  %v682 = vmul.f32 %v554, %v650
  %v683 = vmul.f32 %v555, %v651
  %v684 = vmul.f32 %v556, %v652
  %v685 = vmul.f32 %v557, %v653
  %v686 = vmul.f32 %v558, %v654
  %v687 = vmul.f32 %v559, %v655
  %v688 = vmul.f32 %v560, %v656
  %v689 = vmul.f32 %v561, %v657
  %v690 = vmul.f32 %v562, %v658
  %v691 = vmul.f32 %v563, %v659
  %v692 = vmul.f32 %v564, %v660
  %v693 = vmul.f32 %v565, %v661
  %v694 = vmul.f32 %v566, %v662
  %v695 = vmul.f32 %v567, %v663
  %v696 = vmul.f32 %v568, %v664
  %v697 = vmul.f32 %v569, %v665
  %v698 = vld [vmem:[#allocation2] sm:$0xff]
  %v699 = vld [vmem:[#allocation2 + $0x8] sm:$0xff]
  %v700 = vld [vmem:[#allocation2 + $0x10] sm:$0xff]
  %v701 = vld [vmem:[#allocation2 + $0x18] sm:$0xff]
  %v702 = vld [vmem:[#allocation2 + $0x20] sm:$0xff]
  %v703 = vld [vmem:[#allocation2 + $0x28] sm:$0xff]
  %v704 = vld [vmem:[#allocation2 + $0x30] sm:$0xff]
  %v705 = vld [vmem:[#allocation2 + $0x38] sm:$0xff]
  %v706 = vpack.c.bf16 %v670, %v666
  %v707 = vpack.c.bf16 %v671, %v667
  %v708 = vpack.c.bf16 %v672, %v668
  %v709 = vpack.c.bf16 %v673, %v669
  %v710 = vpack.c.bf16 %v678, %v674
  %v711 = vpack.c.bf16 %v679, %v675
  %v712 = vpack.c.bf16 %v680, %v676
  %v713 = vpack.c.bf16 %v681, %v677
  %v714 = vpack.c.bf16 %v686, %v682
  %v715 = vpack.c.bf16 %v687, %v683
  %v716 = vpack.c.bf16 %v688, %v684
  %v717 = vpack.c.bf16 %v689, %v685
  %v718 = vpack.c.bf16 %v694, %v690
  %v719 = vpack.c.bf16 %v695, %v691
  %v720 = vpack.c.bf16 %v696, %v692
  %v721 = vpack.c.bf16 %v697, %v693
  %v722 = vld [vmem:[%s5] sm:$0xf]
  %v723 = vld [vmem:[%s5 + $0x4] sm:$0xf]
  %v724 = vld [vmem:[%s5 + $0x8] sm:$0xf]
  %v725 = vld [vmem:[%s5 + $0xc] sm:$0xf]
  %v726 = vld [vmem:[%s5 + $0x10] sm:$0xf]
  %v727 = vld [vmem:[%s5 + $0x14] sm:$0xf]
  %v728 = vld [vmem:[%s5 + $0x18] sm:$0xf]
  %v729 = vld [vmem:[%s5 + $0x1c] sm:$0xf]
  %v730 = vld [vmem:[%s5 + $0x20] sm:$0xf]
  %v731 = vld [vmem:[%s5 + $0x24] sm:$0xf]
  %v732 = vld [vmem:[%s5 + $0x28] sm:$0xf]
  %v733 = vld [vmem:[%s5 + $0x2c] sm:$0xf]
  %v734 = vld [vmem:[%s5 + $0x30] sm:$0xf]
  %v735 = vld [vmem:[%s5 + $0x34] sm:$0xf]
  %v736 = vld [vmem:[%s5 + $0x38] sm:$0xf]
  %v737 = vld [vmem:[%s5 + $0x3c] sm:$0xf]
  %v738 = vld [vmem:[%s5 + $0x40] sm:$0xf]
  %v739 = vld [vmem:[%s5 + $0x44] sm:$0xf]
  %v740 = vld [vmem:[%s5 + $0x48] sm:$0xf]
  %v741 = vld [vmem:[%s5 + $0x4c] sm:$0xf]
  %v742 = vld [vmem:[%s5 + $0x50] sm:$0xf]
  %v743 = vld [vmem:[%s5 + $0x54] sm:$0xf]
  %v744 = vld [vmem:[%s5 + $0x58] sm:$0xf]
  %v745 = vld [vmem:[%s5 + $0x5c] sm:$0xf]
  %v746 = vld [vmem:[%s5 + $0x60] sm:$0xf]
  %v747 = vld [vmem:[%s5 + $0x64] sm:$0xf]
  %v748 = vld [vmem:[%s5 + $0x68] sm:$0xf]
  %v749 = vld [vmem:[%s5 + $0x6c] sm:$0xf]
  %v750 = vld [vmem:[%s5 + $0x70] sm:$0xf]
  %v751 = vld [vmem:[%s5 + $0x74] sm:$0xf]
  %v752 = vld [vmem:[%s5 + $0x78] sm:$0xf]
  %v753 = vld [vmem:[%s5 + $0x7c] sm:$0xf]
  %v754 = vld [vmem:[%s5 + $0x80] sm:$0xf]
  %v755 = vld [vmem:[%s5 + $0x84] sm:$0xf]
  %v756 = vld [vmem:[%s5 + $0x88] sm:$0xf]
  %v757 = vld [vmem:[%s5 + $0x8c] sm:$0xf]
  %v758 = vld [vmem:[%s5 + $0x90] sm:$0xf]
  %v759 = vld [vmem:[%s5 + $0x94] sm:$0xf]
  %v760 = vld [vmem:[%s5 + $0x98] sm:$0xf]
  %v761 = vld [vmem:[%s5 + $0x9c] sm:$0xf]
  %v762 = vld [vmem:[%s5 + $0xa0] sm:$0xf]
  %v763 = vld [vmem:[%s5 + $0xa4] sm:$0xf]
  %v764 = vld [vmem:[%s5 + $0xa8] sm:$0xf]
  %v765 = vld [vmem:[%s5 + $0xac] sm:$0xf]
  %v766 = vld [vmem:[%s5 + $0xb0] sm:$0xf]
  %v767 = vld [vmem:[%s5 + $0xb4] sm:$0xf]
  %v768 = vld [vmem:[%s5 + $0xb8] sm:$0xf]
  %v769 = vld [vmem:[%s5 + $0xbc] sm:$0xf]
  %v770 = vld [vmem:[%s5 + $0xc0] sm:$0xf]
  %v771 = vld [vmem:[%s5 + $0xc4] sm:$0xf]
  %v772 = vld [vmem:[%s5 + $0xc8] sm:$0xf]
  %v773 = vld [vmem:[%s5 + $0xcc] sm:$0xf]
  %v774 = vld [vmem:[%s5 + $0xd0] sm:$0xf]
  %v775 = vld [vmem:[%s5 + $0xd4] sm:$0xf]
  %v776 = vld [vmem:[%s5 + $0xd8] sm:$0xf]
  %v777 = vld [vmem:[%s5 + $0xdc] sm:$0xf]
  %v778 = vld [vmem:[%s5 + $0xe0] sm:$0xf]
  %v779 = vld [vmem:[%s5 + $0xe4] sm:$0xf]
  %v780 = vld [vmem:[%s5 + $0xe8] sm:$0xf]
  %v781 = vld [vmem:[%s5 + $0xec] sm:$0xf]
  %v782 = vld [vmem:[%s5 + $0xf0] sm:$0xf]
  %v783 = vld [vmem:[%s5 + $0xf4] sm:$0xf]
  %v784 = vld [vmem:[%s5 + $0xf8] sm:$0xf]
  %v785 = vld [vmem:[%s5 + $0xfc] sm:$0xf]
  %v850 = vunpack.c.l.b16 %v722
  %v851 = vunpack.c.l.b16 %v723
  %v852 = vunpack.c.l.b16 %v724
  %v853 = vunpack.c.l.b16 %v725
  %v854 = vunpack.c.l.b16 %v726
  %v855 = vunpack.c.l.b16 %v727
  %v856 = vunpack.c.l.b16 %v728
  %v857 = vunpack.c.l.b16 %v729
  %v858 = vunpack.c.l.b16 %v730
  %v859 = vunpack.c.l.b16 %v731
  %v860 = vunpack.c.l.b16 %v732
  %v861 = vunpack.c.l.b16 %v733
  %v862 = vunpack.c.l.b16 %v734
  %v863 = vunpack.c.l.b16 %v735
  %v864 = vunpack.c.l.b16 %v736
  %v865 = vunpack.c.l.b16 %v737
  %v866 = vunpack.c.l.b16 %v738
  %v867 = vunpack.c.l.b16 %v739
  %v868 = vunpack.c.l.b16 %v740
  %v869 = vunpack.c.l.b16 %v741
  %v870 = vunpack.c.l.b16 %v742
  %v871 = vunpack.c.l.b16 %v743
  %v872 = vunpack.c.l.b16 %v744
  %v873 = vunpack.c.l.b16 %v745
  %v874 = vunpack.c.l.b16 %v746
  %v875 = vunpack.c.l.b16 %v747
  %v876 = vunpack.c.l.b16 %v748
  %v877 = vunpack.c.l.b16 %v749
  %v878 = vunpack.c.l.b16 %v750
  %v879 = vunpack.c.l.b16 %v751
  %v880 = vunpack.c.l.b16 %v752
  %v881 = vunpack.c.l.b16 %v753
  %v882 = vunpack.c.l.b16 %v754
  %v883 = vunpack.c.l.b16 %v755
  %v884 = vunpack.c.l.b16 %v756
  %v885 = vunpack.c.l.b16 %v757
  %v886 = vunpack.c.l.b16 %v758
  %v887 = vunpack.c.l.b16 %v759
  %v888 = vunpack.c.l.b16 %v760
  %v889 = vunpack.c.l.b16 %v761
  %v890 = vunpack.c.l.b16 %v762
  %v891 = vunpack.c.l.b16 %v763
  %v892 = vunpack.c.l.b16 %v764
  %v893 = vunpack.c.l.b16 %v765
  %v894 = vunpack.c.l.b16 %v766
  %v895 = vunpack.c.l.b16 %v767
  %v896 = vunpack.c.l.b16 %v768
  %v897 = vunpack.c.l.b16 %v769
  %v898 = vunpack.c.l.b16 %v770
  %v899 = vunpack.c.l.b16 %v771
  %v900 = vunpack.c.l.b16 %v772
  %v901 = vunpack.c.l.b16 %v773
  %v902 = vunpack.c.l.b16 %v774
  %v903 = vunpack.c.l.b16 %v775
  %v904 = vunpack.c.l.b16 %v776
  %v905 = vunpack.c.l.b16 %v777
  %v906 = vunpack.c.l.b16 %v778
  %v907 = vunpack.c.l.b16 %v779
  %v908 = vunpack.c.l.b16 %v780
  %v909 = vunpack.c.l.b16 %v781
  %v910 = vunpack.c.l.b16 %v782
  %v911 = vunpack.c.l.b16 %v783
  %v912 = vunpack.c.l.b16 %v784
  %v913 = vunpack.c.l.b16 %v785
  %v914 = vpack.c.b16 %v851, %v850
  %v915 = vpack.c.b16 %v853, %v852
  %v916 = vpack.c.b16 %v855, %v854
  %v917 = vpack.c.b16 %v857, %v856
  %v918 = vpack.c.b16 %v859, %v858
  %v919 = vpack.c.b16 %v861, %v860
  %v920 = vpack.c.b16 %v863, %v862
  %v921 = vpack.c.b16 %v865, %v864
  %v922 = vpack.c.b16 %v867, %v866
  %v923 = vpack.c.b16 %v869, %v868
  %v924 = vpack.c.b16 %v871, %v870
  %v925 = vpack.c.b16 %v873, %v872
  %v926 = vpack.c.b16 %v875, %v874
  %v927 = vpack.c.b16 %v877, %v876
  %v928 = vpack.c.b16 %v879, %v878
  %v929 = vpack.c.b16 %v881, %v880
  %v930 = vpack.c.b16 %v883, %v882
  %v931 = vpack.c.b16 %v885, %v884
  %v932 = vpack.c.b16 %v887, %v886
  %v933 = vpack.c.b16 %v889, %v888
  %v934 = vpack.c.b16 %v891, %v890
  %v935 = vpack.c.b16 %v893, %v892
  %v936 = vpack.c.b16 %v895, %v894
  %v937 = vpack.c.b16 %v897, %v896
  %v938 = vpack.c.b16 %v899, %v898
  %v939 = vpack.c.b16 %v901, %v900
  %v940 = vpack.c.b16 %v903, %v902
  %v941 = vpack.c.b16 %v905, %v904
  %v942 = vpack.c.b16 %v907, %v906
  %v943 = vpack.c.b16 %v909, %v908
  %v944 = vpack.c.b16 %v911, %v910
  %v945 = vpack.c.b16 %v913, %v912
  %978 = vmatprep.subr.bf16.mxu0 0
  %979 = vmatpush1.bf16.msra.mxu0 %v914
  %980 = vmatprep.subr.bf16.mxu0 0
  %981 = vmatpush1.bf16.msra.mxu0 %v915
  %982 = vmatprep.subr.bf16.mxu0 0
  %983 = vmatpush1.bf16.msra.mxu0 %v916
  %984 = vmatprep.subr.bf16.mxu0 0
  %985 = vmatpush1.bf16.msra.mxu0 %v917
  %986 = vmatprep.subr.bf16.mxu0 0
  %987 = vmatpush1.bf16.msra.mxu0 %v918
  %988 = vmatprep.subr.bf16.mxu0 0
  %989 = vmatpush1.bf16.msra.mxu0 %v919
  %990 = vmatprep.subr.bf16.mxu0 0
  %991 = vmatpush1.bf16.msra.mxu0 %v920
  %992 = vmatprep.subr.bf16.mxu0 0
  %993 = vmatpush1.bf16.msra.mxu0 %v921
  %994 = vmatprep.subr.bf16.mxu0 0
  %995 = vmatpush1.bf16.msra.mxu0 %v922
  %996 = vmatprep.subr.bf16.mxu0 0
  %997 = vmatpush1.bf16.msra.mxu0 %v923
  %998 = vmatprep.subr.bf16.mxu0 0
  %999 = vmatpush1.bf16.msra.mxu0 %v924
  %1000 = vmatprep.subr.bf16.mxu0 0
  %1001 = vmatpush1.bf16.msra.mxu0 %v925
  %1002 = vmatprep.subr.bf16.mxu0 0
  %1003 = vmatpush1.bf16.msra.mxu0 %v926
  %1004 = vmatprep.subr.bf16.mxu0 0
  %1005 = vmatpush1.bf16.msra.mxu0 %v927
  %1006 = vmatprep.subr.bf16.mxu0 0
  %1007 = vmatpush1.bf16.msra.mxu0 %v928
  %1008 = vmatprep.subr.bf16.mxu0 0
  %1009 = vmatpush1.bf16.msra.mxu0 %v929
  %1010 = vmatprep.mubr.bf16.mxu0 %v707
  %1011 = vmatmul.mubr.bf16.gmra.mrb[0].mxu0 %v706
  %v1012 = vpop.f32.mrb[0].mxu0
  %v1013 = vadd.f32 0.0, %v1012
  %v1014 = vpop.f32.mrb[0].mxu0
  %v1015 = vpop.f32.mrb[0].mxu0
  %v1016 = vadd.f32 0.0, %v1015
  %v1017 = vpop.f32.mrb[0].mxu0
  %1018 = vmatprep.mubr.bf16.mxu0 %v711
  %1019 = vmatmul.mubr.bf16.gmra.mrb[0].mxu0 %v710
  %v1020 = vpop.f32.mrb[0].mxu0
  %v1021 = vadd.f32 0.0, %v1020
  %v1022 = vpop.f32.mrb[0].mxu0
  %v1023 = vpop.f32.mrb[0].mxu0
  %v1024 = vadd.f32 0.0, %v1023
  %v1025 = vpop.f32.mrb[0].mxu0
  %1026 = vmatprep.mubr.bf16.mxu0 %v715
  %1027 = vmatmul.mubr.bf16.gmra.mrb[0].mxu0 %v714
  %v1028 = vpop.f32.mrb[0].mxu0
  %v1029 = vadd.f32 0.0, %v1028
  %v1030 = vpop.f32.mrb[0].mxu0
  %v1031 = vpop.f32.mrb[0].mxu0
  %v1032 = vadd.f32 0.0, %v1031
  %v1033 = vpop.f32.mrb[0].mxu0
  %1034 = vmatprep.mubr.bf16.mxu0 %v719
  %1035 = vmatmul.mubr.bf16.gmra.mrb[0].mxu0 %v718
  %v1036 = vpop.f32.mrb[0].mxu0
  %v1037 = vadd.f32 0.0, %v1036
  %v1038 = vpop.f32.mrb[0].mxu0
  %v1039 = vpop.f32.mrb[0].mxu0
  %v1040 = vadd.f32 0.0, %v1039
  %v1041 = vpop.f32.mrb[0].mxu0
  %1042 = vdwg.mxu0
  %1043 = vmatprep.subr.bf16.mxu0 0
  %1044 = vmatpush1.bf16.msra.mxu0 %v930
  %1045 = vmatprep.subr.bf16.mxu0 0
  %1046 = vmatpush1.bf16.msra.mxu0 %v931
  %1047 = vmatprep.subr.bf16.mxu0 0
  %1048 = vmatpush1.bf16.msra.mxu0 %v932
  %1049 = vmatprep.subr.bf16.mxu0 0
  %1050 = vmatpush1.bf16.msra.mxu0 %v933
  %1051 = vmatprep.subr.bf16.mxu0 0
  %1052 = vmatpush1.bf16.msra.mxu0 %v934
  %1053 = vmatprep.subr.bf16.mxu0 0
  %1054 = vmatpush1.bf16.msra.mxu0 %v935
  %1055 = vmatprep.subr.bf16.mxu0 0
  %1056 = vmatpush1.bf16.msra.mxu0 %v936
  %1057 = vmatprep.subr.bf16.mxu0 0
  %1058 = vmatpush1.bf16.msra.mxu0 %v937
  %1059 = vmatprep.subr.bf16.mxu0 0
  %1060 = vmatpush1.bf16.msra.mxu0 %v938
  %1061 = vmatprep.subr.bf16.mxu0 0
  %1062 = vmatpush1.bf16.msra.mxu0 %v939
  %1063 = vmatprep.subr.bf16.mxu0 0
  %1064 = vmatpush1.bf16.msra.mxu0 %v940
  %1065 = vmatprep.subr.bf16.mxu0 0
  %1066 = vmatpush1.bf16.msra.mxu0 %v941
  %1067 = vmatprep.subr.bf16.mxu0 0
  %1068 = vmatpush1.bf16.msra.mxu0 %v942
  %1069 = vmatprep.subr.bf16.mxu0 0
  %1070 = vmatpush1.bf16.msra.mxu0 %v943
  %1071 = vmatprep.subr.bf16.mxu0 0
  %1072 = vmatpush1.bf16.msra.mxu0 %v944
  %1073 = vmatprep.subr.bf16.mxu0 0
  %1074 = vmatpush1.bf16.msra.mxu0 %v945
  %1075 = vmatprep.mubr.bf16.mxu0 %v709
  %1076 = vmatmul.mubr.bf16.gmra.mrb[0].mxu0 %v708
  %v1077 = vpop.f32.mrb[0].mxu0
  %v1078 = vadd.f32 %v1013, %v1077
  %v1079 = vpop.f32.mrb[0].mxu0
  %v1080 = vpop.f32.mrb[0].mxu0
  %v1081 = vadd.f32 %v1016, %v1080
  %v1082 = vpop.f32.mrb[0].mxu0
  %1083 = vmatprep.mubr.bf16.mxu0 %v713
  %1084 = vmatmul.mubr.bf16.gmra.mrb[0].mxu0 %v712
  %v1085 = vpop.f32.mrb[0].mxu0
  %v1086 = vadd.f32 %v1021, %v1085
  %v1087 = vpop.f32.mrb[0].mxu0
  %v1088 = vpop.f32.mrb[0].mxu0
  %v1089 = vadd.f32 %v1024, %v1088
  %v1090 = vpop.f32.mrb[0].mxu0
  %1091 = vmatprep.mubr.bf16.mxu0 %v717
  %1092 = vmatmul.mubr.bf16.gmra.mrb[0].mxu0 %v716
  %v1093 = vpop.f32.mrb[0].mxu0
  %v1094 = vadd.f32 %v1029, %v1093
  %v1095 = vpop.f32.mrb[0].mxu0
  %v1096 = vpop.f32.mrb[0].mxu0
  %v1097 = vadd.f32 %v1032, %v1096
  %v1098 = vpop.f32.mrb[0].mxu0
  %1099 = vmatprep.mubr.bf16.mxu0 %v721
  %1100 = vmatmul.mubr.bf16.gmra.mrb[0].mxu0 %v720
  %v1101 = vpop.f32.mrb[0].mxu0
  %v1102 = vadd.f32 %v1037, %v1101
  %v1103 = vpop.f32.mrb[0].mxu0
  %v1104 = vpop.f32.mrb[0].mxu0
  %v1105 = vadd.f32 %v1040, %v1104
  %v1106 = vpop.f32.mrb[0].mxu0
  %1107 = vdwg.mxu0
  %v1108 = vadd.f32 %v698, %v1078
  %v1109 = vadd.f32 %v699, %v1081
  %v1110 = vadd.f32 %v700, %v1086
  %v1111 = vadd.f32 %v701, %v1089
  %v1112 = vadd.f32 %v702, %v1094
  %v1113 = vadd.f32 %v703, %v1097
  %v1114 = vadd.f32 %v704, %v1102
  %v1115 = vadd.f32 %v705, %v1105
  %1116 = vst [vmem:[#allocation2] sm:$0xff] %v1108
  %1117 = vst [vmem:[#allocation2 + $0x8] sm:$0xff] %v1109
  %1118 = vst [vmem:[#allocation2 + $0x10] sm:$0xff] %v1110
  %1119 = vst [vmem:[#allocation2 + $0x18] sm:$0xff] %v1111
  %1120 = vst [vmem:[#allocation2 + $0x20] sm:$0xff] %v1112
  %1121 = vst [vmem:[#allocation2 + $0x28] sm:$0xff] %v1113
  %1122 = vst [vmem:[#allocation2 + $0x30] sm:$0xff] %v1114
  %1123 = vst [vmem:[#allocation2 + $0x38] sm:$0xff] %v1115
  // Predicated region
  $region34: #{particle_transformer_forward.9} parent=0 // pred_check
    %p1124 = pneg %p27
  $region35: #{particle_transformer_forward.9} parent=0 // pred_check_branch
    %1126 = sbr.rel (%p1124) target = $region37
  $region36: #{particle_transformer_forward.9} parent=0 // pred_region
    %v1127 = vld [vmem:[#allocation2] sm:$0xff]
    %v1128 = vld [vmem:[#allocation2 + $0x8] sm:$0xff]
    %v1129 = vld [vmem:[#allocation2 + $0x10] sm:$0xff]
    %v1130 = vld [vmem:[#allocation2 + $0x18] sm:$0xff]
    %v1131 = vld [vmem:[#allocation2 + $0x20] sm:$0xff]
    %v1132 = vld [vmem:[#allocation2 + $0x28] sm:$0xff]
    %v1133 = vld [vmem:[#allocation2 + $0x30] sm:$0xff]
    %v1134 = vld [vmem:[#allocation2 + $0x38] sm:$0xff]
    %v1135 = vld [vmem:[%s6] sm:$0x1]
    %v1137 = vlaneseq
    %v1138 = vshrl.u32 %v1137, 7
    %v1139 = vsub.s32 0, %v1138
    %v1140 = vrot.slane %v1135, %v1139
    %v1142 = vadd.f32 %v1127, %v1140
    %v1143 = vadd.f32 %v1128, %v1140
    %v1144 = vadd.f32 %v1129, %v1140
    %v1145 = vadd.f32 %v1130, %v1140
    %v1146 = vadd.f32 %v1131, %v1140
    %v1147 = vadd.f32 %v1132, %v1140
    %v1148 = vadd.f32 %v1133, %v1140
    %v1149 = vadd.f32 %v1134, %v1140
    %v1150 = vld [vmem:[%s0] sm:$0xff]
    %v1151 = vld [vmem:[%s0 + $0x8] sm:$0xff]
    %v1152 = vld [vmem:[%s0 + $0x10] sm:$0xff]
    %v1153 = vld [vmem:[%s0 + $0x18] sm:$0xff]
    %v1154 = vld [vmem:[%s0 + $0x20] sm:$0xff]
    %v1155 = vld [vmem:[%s0 + $0x28] sm:$0xff]
    %v1156 = vld [vmem:[%s0 + $0x30] sm:$0xff]
    %v1157 = vld [vmem:[%s0 + $0x38] sm:$0xff]
    %v1158 = vadd.f32 %v1142, %v1150
    %v1159 = vadd.f32 %v1143, %v1151
    %v1160 = vadd.f32 %v1144, %v1152
    %v1161 = vadd.f32 %v1145, %v1153
    %v1162 = vadd.f32 %v1146, %v1154
    %v1163 = vadd.f32 %v1147, %v1155
    %v1164 = vadd.f32 %v1148, %v1156
    %v1165 = vadd.f32 %v1149, %v1157
    %1166 = vst [vmem:[%s7] sm:$0xff] %v1158
    %1167 = vst [vmem:[%s7 + $0x8] sm:$0xff] %v1159
    %1168 = vst [vmem:[%s7 + $0x10] sm:$0xff] %v1160
    %1169 = vst [vmem:[%s7 + $0x18] sm:$0xff] %v1161
    %1170 = vst [vmem:[%s7 + $0x20] sm:$0xff] %v1162
    %1171 = vst [vmem:[%s7 + $0x28] sm:$0xff] %v1163
    %1172 = vst [vmem:[%s7 + $0x30] sm:$0xff] %v1164
    %1173 = vst [vmem:[%s7 + $0x38] sm:$0xff] %v1165
  $region37: #{particle_transformer_forward.9} parent=0 // pred_fallthru
    _
  // Predicated region
  $region38: #{particle_transformer_forward.9} parent=0 // pred_check
    _
  $region39: #{particle_transformer_forward.9} parent=0 // pred_check_branch
    %1175 = sbr.rel (0) target = $region41
  $region40: #{particle_transformer_forward.9} parent=0 // pred_region
    _
  $region41: #{particle_transformer_forward.9} parent=0 // pred_fallthru
    _
  // Predicated region
  $region42: #{particle_transformer_forward.9} parent=0 // pred_check
    _
  $region43: #{particle_transformer_forward.9} parent=0 // pred_check_branch
    %1177 = sbr.rel (0) target = $region45
  $region44: #{particle_transformer_forward.9} parent=0 // pred_region
    _
  $region45: #{particle_transformer_forward.9} parent=0 // pred_fallthru
    _

</llo_original>
